<compile_context>
chip_gen: v6e
topology: v6e:2x2x1
jax: 0.10.0
libtpu: 0.0.40
codegen_flags: <defaults>
</compile_context>

<pallas_src>
import functools

import jax
import jax.numpy as jnp
import numpy as np
from jax import lax
from jax.experimental import pallas as pl
from jax.experimental.pallas import tpu as pltpu

EM_DIM = 64          # each of em / eq
INPUT_DIM = 128      # concat of em (64) and eq (64)
HIDDEN_DIM = 256
OUTPUT_DIM = 64
N_LAYERS = 6
LN_EPS = 1e-5        # PyTorch nn.LayerNorm default
STD_MIN = 1e-6
OUT_W = 3 * OUTPUT_DIM   # output slab [latent | mu | std] -> 192 lanes


def timbre_kernel(em_ref, eq_ref, eps_ref, w0m_ref, w0q_ref, wrest_ref,
                  b_ref, g_ref, be_ref, ones_ref, wha_ref, bha_ref,
                  whb_ref, bhb_ref, out_ref, *, n, ln_on_mxu):
    tm = em_ref.shape[0]

    def ln_relu(y, l):
        gamma = g_ref[pl.ds(l, 1), :]
        beta = be_ref[pl.ds(l, 1), :]
        if ln_on_mxu:
            # MXU-based stats: mean and E[y^2] via matmul with ones/256 (bf16 operands,
            # f32 accumulation).  The MXU returns them pre-broadcast across all lanes.
            yb = y.astype(jnp.bfloat16)
            m = jnp.dot(yb, ones_ref[...], preferred_element_type=jnp.float32)
            ey2 = jnp.dot(yb * yb, ones_ref[...], preferred_element_type=jnp.float32)
        else:
            # v5e path: single-pass XLU statistics (the two reductions are independent).
            m = jnp.mean(y, axis=-1, keepdims=True)
            ey2 = jnp.mean(y * y, axis=-1, keepdims=True)
        var = jnp.maximum(ey2 - m * m, 0.0)
        yn = (y - m) * lax.rsqrt(var + LN_EPS)
        h = jnp.maximum(yn * gamma + beta, 0.0)
        return h.astype(jnp.bfloat16)

    em = em_ref[...]
    eq = eq_ref[...]
    eps = eps_ref[...]
    if n % tm != 0:
        # Ragged last tile: zero out-of-bounds rows so they stay finite (their output
        # rows are discarded by Pallas anyway).
        row = pl.program_id(0) * tm + lax.broadcasted_iota(jnp.int32, (tm, EM_DIM), 0)
        valid = row < n
        em = jnp.where(valid, em, jnp.zeros_like(em))
        eq = jnp.where(valid, eq, jnp.zeros_like(eq))
        eps = jnp.where(valid, eps, jnp.zeros_like(eps))

    # layer 0: em @ W0[:64] + eq @ W0[64:]  (no wrapper-side concat pass).
    y0 = (jnp.dot(em.astype(jnp.bfloat16), w0m_ref[...],
                  preferred_element_type=jnp.float32)
          + jnp.dot(eq.astype(jnp.bfloat16), w0q_ref[...],
                    preferred_element_type=jnp.float32)
          + b_ref[pl.ds(0, 1), :])
    h = ln_relu(y0, 0)

    # layers 1..5: (tm,256) @ (256,256) bf16 operands, f32 accumulation.
    def layer(l, h):
        y = jnp.dot(h, wrest_ref[l - 1], preferred_element_type=jnp.float32)
        y = y + b_ref[pl.ds(l, 1), :]
        return ln_relu(y, l)

    h = lax.fori_loop(1, N_LAYERS, layer, h, unroll=True)

    # heads: head_a = [mu | mu | logvar] lands mu/logvar at their final lane offsets;
    # head_b is a 64-wide logvar used (lane-aligned at 0..63) to form the latent.
    head_a = jnp.dot(h, wha_ref[...], preferred_element_type=jnp.float32) + bha_ref[...]
    head_b = jnp.dot(h, whb_ref[...], preferred_element_type=jnp.float32) + bhb_ref[...]

    lane = lax.broadcasted_iota(jnp.int32, (tm, OUT_W), 1)
    std_all = jnp.maximum(jnp.exp(0.5 * head_a), STD_MIN)
    slab = jnp.where(lane >= 2 * OUTPUT_DIM, std_all, head_a)      # [mu | mu | std]
    std_lat = jnp.maximum(jnp.exp(0.5 * head_b), STD_MIN)          # (tm, 64)
    lat_add = std_lat * eps.astype(jnp.float32)                    # std * eps at lanes 0..63
    addend = jnp.concatenate(
        [lat_add, jnp.zeros((tm, 2 * OUTPUT_DIM), jnp.float32)], axis=-1)
    out_ref[...] = (slab + addend).astype(out_ref.dtype)           # [latent | mu | std]


def prepare_params(params):
    """One-time weight prep (call once, NOT per step): bf16 casts, W0 split,
    lane-arranged fused heads, ones/256 matrix for MXU-based LayerNorm stats."""
    w0, wrest, b, g, be, wm, bm, wv, bv = params
    w0m = w0[:EM_DIM].astype(jnp.bfloat16)                 # (64, 256)
    w0q = w0[EM_DIM:].astype(jnp.bfloat16)                 # (64, 256)
    wrest_b = wrest.astype(jnp.bfloat16)                   # (5, 256, 256)
    wha = jnp.concatenate([wm, wm, wv], axis=1).astype(jnp.bfloat16)   # (256, 192)
    bha = jnp.concatenate([bm, bm, bv], axis=1).astype(jnp.float32)    # (1, 192)
    whb = wv.astype(jnp.bfloat16)                          # (256, 64)
    bhb = bv.astype(jnp.float32)                           # (1, 64)
    ones = jnp.full((HIDDEN_DIM, HIDDEN_DIM), 1.0 / HIDDEN_DIM, jnp.bfloat16)
    return (w0m, w0q, wrest_b, b.astype(jnp.float32), g.astype(jnp.float32),
            be.astype(jnp.float32), ones, wha, bha, whb, bhb)


def _pick_tm(n):
    """Biggest tile that still leaves >=2 grid steps (megacore), capped at 1024."""
    tm = min(1024, ((max(-(-n // 2), 1) + 7) // 8) * 8)
    return max(tm, 8)


def _detect_ln_on_mxu():
    """Move LN reductions to the MXU on v6e/v7x; keep them on the XLU otherwise."""
    try:
        kind = jax.devices()[0].device_kind.lower()
    except Exception:
        return True
    return ("v6" in kind) or ("v7" in kind)


@functools.partial(jax.jit, static_argnames=("ln_on_mxu",))
def timbre_encoder_pallas(em, eq, prepped, eps, *, ln_on_mxu=True):
    """em, eq, eps: (N, 64) (bf16 preferred).  prepped: output of prepare_params.
    Returns (timbre_latent, mu, std), each (N, 64) float32."""
    n = em.shape[0]
    tm = _pick_tm(n)
    grid = (pl.cdiv(n, tm),)
    w0m, w0q, wrest, b, g, be, ones, wha, bha, whb, bhb = prepped

    kern = functools.partial(timbre_kernel, n=n, ln_on_mxu=ln_on_mxu)

    row64 = pl.BlockSpec((tm, EM_DIM), lambda i: (i, 0))
    row_out = pl.BlockSpec((tm, OUT_W), lambda i: (i, 0))
    const2 = lambda a: pl.BlockSpec(a.shape, lambda i: (0, 0))      # grid-invariant
    const3 = lambda a: pl.BlockSpec(a.shape, lambda i: (0, 0, 0))   # (no re-DMA per step)

    out = pl.pallas_call(
        kern,
        out_shape=jax.ShapeDtypeStruct((n, OUT_W), jnp.float32),
        grid_spec=pltpu.PrefetchScalarGridSpec(
            num_scalar_prefetch=0,
            grid=grid,
            in_specs=[
                row64,            # em (N,64)
                row64,            # eq (N,64)
                row64,            # eps (N,64)
                const2(w0m),      # W0[:64]  (64,256) bf16
                const2(w0q),      # W0[64:]  (64,256) bf16
                const3(wrest),    # W1..W5   (5,256,256) bf16
                const2(b),        # biases   (6,256) f32
                const2(g),        # ln gamma (6,256) f32
                const2(be),       # ln beta  (6,256) f32
                const2(ones),     # ones/256 (256,256) bf16
                const2(wha),      # head [wm|wm|wv] (256,192) bf16
                const2(bha),      # head bias (1,192) f32
                const2(whb),      # logvar head (256,64) bf16
                const2(bhb),      # logvar bias (1,64) f32
            ],
            out_specs=row_out,
        ),
        compiler_params=pltpu.CompilerParams(
            dimension_semantics=("parallel",)),
    )(em, eq, eps, w0m, w0q, wrest, b, g, be, ones, wha, bha, whb, bhb)

    latent = out[:, :OUTPUT_DIM]
    mu = out[:, OUTPUT_DIM:2 * OUTPUT_DIM]
    std = out[:, 2 * OUTPUT_DIM:3 * OUTPUT_DIM]
    return latent, mu, std


def make_params(key):
    ks = jax.random.split(key, 16)
    scale = 0.05
    w0 = scale * jax.random.normal(ks[0], (INPUT_DIM, HIDDEN_DIM), jnp.float32)
    wrest = scale * jax.random.normal(ks[1], (N_LAYERS - 1, HIDDEN_DIM, HIDDEN_DIM),
                                      jnp.float32)
    b = scale * jax.random.normal(ks[2], (N_LAYERS, HIDDEN_DIM), jnp.float32)
    g = 1.0 + scale * jax.random.normal(ks[3], (N_LAYERS, HIDDEN_DIM), jnp.float32)
    be = scale * jax.random.normal(ks[4], (N_LAYERS, HIDDEN_DIM), jnp.float32)
    wm = scale * jax.random.normal(ks[5], (HIDDEN_DIM, OUTPUT_DIM), jnp.float32)
    bm = scale * jax.random.normal(ks[6], (1, OUTPUT_DIM), jnp.float32)
    wv = scale * jax.random.normal(ks[7], (HIDDEN_DIM, OUTPUT_DIM), jnp.float32)
    bv = scale * jax.random.normal(ks[8], (1, OUTPUT_DIM), jnp.float32)
    return (w0, wrest, b, g, be, wm, bm, wv, bv)


def reference_jax(em, eq, params, eps):
    """Pure-JAX f32 mirror of the PyTorch forward (for verification)."""
    w0, wrest, b, g, be, wm, bm, wv, bv = params
    h = jnp.concatenate([em, eq], axis=-1)
    ws = [w0] + [wrest[i] for i in range(N_LAYERS - 1)]
    for l in range(N_LAYERS):
        y = h @ ws[l] + b[l]
        m = jnp.mean(y, axis=-1, keepdims=True)
        v = jnp.mean((y - m) ** 2, axis=-1, keepdims=True)
        y = (y - m) / jnp.sqrt(v + LN_EPS) * g[l] + be[l]
        h = jnp.maximum(y, 0.0)
    mu = h @ wm + bm
    logvar = h @ wv + bv
    std = jnp.maximum(jnp.exp(0.5 * logvar), STD_MIN)
    return mu + std * eps, mu, std


if __name__ == "__main__":
    key = jax.random.PRNGKey(0)
    kp, kem, keq, keps = jax.random.split(key, 4)

    N = 200          # deliberately NOT a multiple of the tile -> exercises ragged block
    em = jax.random.normal(kem, (N, EM_DIM), jnp.float32)
    eq = jax.random.normal(keq, (N, EM_DIM), jnp.float32)
    eps = jax.random.normal(keps, (N, OUTPUT_DIM), jnp.float32)   # rsample noise
    params = make_params(kp)

    # One-time weight prep (outside the per-call path); bf16 activations into the kernel.
    prepped = jax.block_until_ready(prepare_params(params))
    em_k = em.astype(jnp.bfloat16)
    eq_k = eq.astype(jnp.bfloat16)
    eps_k = eps.astype(jnp.bfloat16)
    ln_on_mxu = _detect_ln_on_mxu()

    latent, mu, std = jax.block_until_ready(
        timbre_encoder_pallas(em_k, eq_k, prepped, eps_k, ln_on_mxu=ln_on_mxu))

    # Reference sees the same (bf16-rounded) inputs the kernel sees, computed in f32.
    ref_latent, ref_mu, ref_std = reference_jax(
        em_k.astype(jnp.float32), eq_k.astype(jnp.float32), params,
        eps_k.astype(jnp.float32))

    assert not np.isnan(np.asarray(mu)).any()
    assert not np.isnan(np.asarray(std)).any()
    assert not np.isnan(np.asarray(latent)).any()
    # Hidden stack, heads and (on v6e/v7x) LayerNorm statistics all use bf16 operands
    # with f32 accumulation, so compare against the pure-f32 reference at
    # correspondingly loose tolerances.
    np.testing.assert_allclose(np.asarray(mu), np.asarray(ref_mu), atol=8e-2, rtol=8e-2)
    np.testing.assert_allclose(np.asarray(std), np.asarray(ref_std), atol=8e-2, rtol=8e-2)
    np.testing.assert_allclose(np.asarray(latent), np.asarray(ref_latent),
                               atol=1.5e-1, rtol=1.5e-1)

    print("KERNEL_OK")
</pallas_src>

<mosaic_0001>
module attributes {stable_mosaic.version = 11 : i64} {
  func.func @timbre_kernel(%arg0: i32, %arg1: memref<104x64xbf16, #tpu.memory_space<vmem>>, %arg2: memref<104x64xbf16, #tpu.memory_space<vmem>>, %arg3: memref<104x64xbf16, #tpu.memory_space<vmem>>, %arg4: memref<64x256xbf16, #tpu.memory_space<vmem>>, %arg5: memref<64x256xbf16, #tpu.memory_space<vmem>>, %arg6: memref<5x256x256xbf16, #tpu.memory_space<vmem>>, %arg7: memref<6x256xf32, #tpu.memory_space<vmem>>, %arg8: memref<6x256xf32, #tpu.memory_space<vmem>>, %arg9: memref<6x256xf32, #tpu.memory_space<vmem>>, %arg10: memref<256x256xbf16, #tpu.memory_space<vmem>>, %arg11: memref<256x192xbf16, #tpu.memory_space<vmem>>, %arg12: memref<1x192xf32, #tpu.memory_space<vmem>>, %arg13: memref<256x64xbf16, #tpu.memory_space<vmem>>, %arg14: memref<1x64xf32, #tpu.memory_space<vmem>>, %arg15: memref<104x192xf32, #tpu.memory_space<vmem>>) attributes {dimension_semantics = [#tpu.dimension_semantics<parallel>], iteration_bounds = array<i64: 2>, scalar_prefetch = 0 : i64, scratch_operands = 0 : i64, tpu.core_type = #tpu.core_type<tc>, window_params = [{transform_indices = @transform_0, window_bounds = array<i64: 104, 64>}, {transform_indices = @transform_1, window_bounds = array<i64: 104, 64>}, {transform_indices = @transform_2, window_bounds = array<i64: 104, 64>}, {pipeline_mode = #tpu.pipeline_mode<synchronous>, transform_indices = @transform_3, window_bounds = array<i64: 64, 256>}, {pipeline_mode = #tpu.pipeline_mode<synchronous>, transform_indices = @transform_4, window_bounds = array<i64: 64, 256>}, {pipeline_mode = #tpu.pipeline_mode<synchronous>, transform_indices = @transform_5, window_bounds = array<i64: 5, 256, 256>}, {pipeline_mode = #tpu.pipeline_mode<synchronous>, transform_indices = @transform_6, window_bounds = array<i64: 6, 256>}, {pipeline_mode = #tpu.pipeline_mode<synchronous>, transform_indices = @transform_7, window_bounds = array<i64: 6, 256>}, {pipeline_mode = #tpu.pipeline_mode<synchronous>, transform_indices = @transform_8, window_bounds = array<i64: 6, 256>}, {pipeline_mode = #tpu.pipeline_mode<synchronous>, transform_indices = @transform_9, window_bounds = array<i64: 256, 256>}, {pipeline_mode = #tpu.pipeline_mode<synchronous>, transform_indices = @transform_10, window_bounds = array<i64: 256, 192>}, {pipeline_mode = #tpu.pipeline_mode<synchronous>, transform_indices = @transform_11, window_bounds = array<i64: 1, 192>}, {pipeline_mode = #tpu.pipeline_mode<synchronous>, transform_indices = @transform_12, window_bounds = array<i64: 256, 64>}, {pipeline_mode = #tpu.pipeline_mode<synchronous>, transform_indices = @transform_13, window_bounds = array<i64: 1, 64>}, {transform_indices = @transform_14, window_bounds = array<i64: 104, 192>}]} {
    %c0 = arith.constant 0 : index
    %c0_0 = arith.constant 0 : index
    %0 = vector.load %arg1[%c0, %c0_0] : memref<104x64xbf16, #tpu.memory_space<vmem>>, vector<104x64xbf16>
    %c0_1 = arith.constant 0 : index
    %c0_2 = arith.constant 0 : index
    %1 = vector.load %arg2[%c0_1, %c0_2] : memref<104x64xbf16, #tpu.memory_space<vmem>>, vector<104x64xbf16>
    %c0_3 = arith.constant 0 : index
    %c0_4 = arith.constant 0 : index
    %2 = vector.load %arg3[%c0_3, %c0_4] : memref<104x64xbf16, #tpu.memory_space<vmem>>, vector<104x64xbf16>
    %c104_i32 = arith.constant 104 : i32
    %3 = arith.muli %arg0, %c104_i32 : i32
    %4 = tpu.iota {dimensions = array<i32: 0>} : vector<104x64xi32>
    %5 = vector.broadcast %3 : i32 to vector<104x64xi32>
    %6 = arith.addi %5, %4 : vector<104x64xi32>
    %c200_i32 = arith.constant 200 : i32
    %7 = vector.broadcast %c200_i32 : i32 to vector<104x64xi32>
    %8 = arith.cmpi slt, %6, %7 : vector<104x64xi32>
    %cst = arith.constant 0.000000e+00 : bf16
    %9 = vector.broadcast %cst : bf16 to vector<104x64xbf16>
    %10 = arith.select %8, %0, %9 : vector<104x64xi1>, vector<104x64xbf16>
    %cst_5 = arith.constant 0.000000e+00 : bf16
    %11 = vector.broadcast %cst_5 : bf16 to vector<104x64xbf16>
    %12 = arith.select %8, %1, %11 : vector<104x64xi1>, vector<104x64xbf16>
    %cst_6 = arith.constant 0.000000e+00 : bf16
    %13 = vector.broadcast %cst_6 : bf16 to vector<104x64xbf16>
    %14 = arith.select %8, %2, %13 : vector<104x64xi1>, vector<104x64xbf16>
    %c0_7 = arith.constant 0 : index
    %c0_8 = arith.constant 0 : index
    %15 = vector.load %arg4[%c0_7, %c0_8] : memref<64x256xbf16, #tpu.memory_space<vmem>>, vector<64x256xbf16>
    %cst_9 = arith.constant dense<0.000000e+00> : vector<104x256xf32>
    %16 = tpu.matmul %10, %15, %cst_9 {dimension_numbers = #tpu.dot_dimension_numbers<[1], [0], [0], [1], [0, 0, 1, 1], [], []>} : vector<104x64xbf16>, vector<64x256xbf16>, vector<104x256xf32> -> vector<104x256xf32>
    %c0_10 = arith.constant 0 : index
    %c0_11 = arith.constant 0 : index
    %17 = vector.load %arg5[%c0_10, %c0_11] : memref<64x256xbf16, #tpu.memory_space<vmem>>, vector<64x256xbf16>
    %cst_12 = arith.constant dense<0.000000e+00> : vector<104x256xf32>
    %18 = tpu.matmul %12, %17, %cst_12 {dimension_numbers = #tpu.dot_dimension_numbers<[1], [0], [0], [1], [0, 0, 1, 1], [], []>} : vector<104x64xbf16>, vector<64x256xbf16>, vector<104x256xf32> -> vector<104x256xf32>
    %19 = arith.addf %16, %18 : vector<104x256xf32>
    %c0_13 = arith.constant 0 : index
    %c0_14 = arith.constant 0 : index
    %20 = vector.load %arg7[%c0_13, %c0_14] : memref<6x256xf32, #tpu.memory_space<vmem>>, vector<1x256xf32>
    %21 = vector.broadcast %20 : vector<1x256xf32> to vector<104x256xf32>
    %22 = arith.addf %19, %21 : vector<104x256xf32>
    %c0_15 = arith.constant 0 : index
    %c0_16 = arith.constant 0 : index
    %23 = vector.load %arg8[%c0_15, %c0_16] : memref<6x256xf32, #tpu.memory_space<vmem>>, vector<1x256xf32>
    %c0_17 = arith.constant 0 : index
    %c0_18 = arith.constant 0 : index
    %24 = vector.load %arg9[%c0_17, %c0_18] : memref<6x256xf32, #tpu.memory_space<vmem>>, vector<1x256xf32>
    %cst_19 = arith.constant dense<0.000000e+00> : vector<104xf32>
    %25 = vector.multi_reduction <add>, %22, %cst_19 [1] : vector<104x256xf32> to vector<104xf32>
    %26 = vector.shape_cast %25 : vector<104xf32> to vector<104x1xf32>
    %cst_20 = arith.constant 2.560000e+02 : f32
    %27 = vector.broadcast %cst_20 : f32 to vector<104x1xf32>
    %28 = arith.divf %26, %27 : vector<104x1xf32>
    %29 = arith.mulf %22, %22 : vector<104x256xf32>
    %cst_21 = arith.constant dense<0.000000e+00> : vector<104xf32>
    %30 = vector.multi_reduction <add>, %29, %cst_21 [1] : vector<104x256xf32> to vector<104xf32>
    %31 = vector.shape_cast %30 : vector<104xf32> to vector<104x1xf32>
    %cst_22 = arith.constant 2.560000e+02 : f32
    %32 = vector.broadcast %cst_22 : f32 to vector<104x1xf32>
    %33 = arith.divf %31, %32 : vector<104x1xf32>
    %34 = arith.mulf %28, %28 : vector<104x1xf32>
    %35 = arith.subf %33, %34 : vector<104x1xf32>
    %cst_23 = arith.constant 0.000000e+00 : f32
    %36 = vector.broadcast %cst_23 : f32 to vector<104x1xf32>
    %37 = arith.maximumf %35, %36 : vector<104x1xf32>
    %38 = vector.broadcast %28 : vector<104x1xf32> to vector<104x256xf32>
    %39 = arith.subf %22, %38 : vector<104x256xf32>
    %cst_24 = arith.constant 9.99999974E-6 : f32
    %40 = vector.broadcast %cst_24 : f32 to vector<104x1xf32>
    %41 = arith.addf %37, %40 : vector<104x1xf32>
    %42 = math.rsqrt %41 : vector<104x1xf32>
    %43 = vector.broadcast %42 : vector<104x1xf32> to vector<104x256xf32>
    %44 = arith.mulf %39, %43 : vector<104x256xf32>
    %45 = vector.broadcast %23 : vector<1x256xf32> to vector<104x256xf32>
    %46 = arith.mulf %44, %45 : vector<104x256xf32>
    %47 = vector.broadcast %24 : vector<1x256xf32> to vector<104x256xf32>
    %48 = arith.addf %46, %47 : vector<104x256xf32>
    %cst_25 = arith.constant 0.000000e+00 : f32
    %49 = vector.broadcast %cst_25 : f32 to vector<104x256xf32>
    %50 = arith.maximumf %48, %49 : vector<104x256xf32>
    %51 = arith.truncf %50 : vector<104x256xf32> to vector<104x256xbf16>
    %c1_i32 = arith.constant 1 : i32
    %c1_i32_26 = arith.constant 1 : i32
    %52 = arith.subi %c1_i32, %c1_i32_26 : i32
    %53 = arith.index_cast %52 : i32 to index
    %c0_27 = arith.constant 0 : index
    %c0_28 = arith.constant 0 : index
    %54 = vector.load %arg6[%53, %c0_27, %c0_28] : memref<5x256x256xbf16, #tpu.memory_space<vmem>>, vector<1x256x256xbf16>
    %55 = vector.shape_cast %54 : vector<1x256x256xbf16> to vector<256x256xbf16>
    %cst_29 = arith.constant dense<0.000000e+00> : vector<104x256xf32>
    %56 = tpu.matmul %51, %55, %cst_29 {dimension_numbers = #tpu.dot_dimension_numbers<[1], [0], [0], [1], [0, 0, 1, 1], [], []>} : vector<104x256xbf16>, vector<256x256xbf16>, vector<104x256xf32> -> vector<104x256xf32>
    %57 = arith.index_cast %c1_i32 : i32 to index
    %c0_30 = arith.constant 0 : index
    %58 = vector.load %arg7[%57, %c0_30] : memref<6x256xf32, #tpu.memory_space<vmem>>, vector<1x256xf32>
    %59 = vector.broadcast %58 : vector<1x256xf32> to vector<104x256xf32>
    %60 = arith.addf %56, %59 : vector<104x256xf32>
    %61 = arith.index_cast %c1_i32 : i32 to index
    %c0_31 = arith.constant 0 : index
    %62 = vector.load %arg8[%61, %c0_31] : memref<6x256xf32, #tpu.memory_space<vmem>>, vector<1x256xf32>
    %63 = arith.index_cast %c1_i32 : i32 to index
    %c0_32 = arith.constant 0 : index
    %64 = vector.load %arg9[%63, %c0_32] : memref<6x256xf32, #tpu.memory_space<vmem>>, vector<1x256xf32>
    %cst_33 = arith.constant dense<0.000000e+00> : vector<104xf32>
    %65 = vector.multi_reduction <add>, %60, %cst_33 [1] : vector<104x256xf32> to vector<104xf32>
    %66 = vector.shape_cast %65 : vector<104xf32> to vector<104x1xf32>
    %cst_34 = arith.constant 2.560000e+02 : f32
    %67 = vector.broadcast %cst_34 : f32 to vector<104x1xf32>
    %68 = arith.divf %66, %67 : vector<104x1xf32>
    %69 = arith.mulf %60, %60 : vector<104x256xf32>
    %cst_35 = arith.constant dense<0.000000e+00> : vector<104xf32>
    %70 = vector.multi_reduction <add>, %69, %cst_35 [1] : vector<104x256xf32> to vector<104xf32>
    %71 = vector.shape_cast %70 : vector<104xf32> to vector<104x1xf32>
    %cst_36 = arith.constant 2.560000e+02 : f32
    %72 = vector.broadcast %cst_36 : f32 to vector<104x1xf32>
    %73 = arith.divf %71, %72 : vector<104x1xf32>
    %74 = arith.mulf %68, %68 : vector<104x1xf32>
    %75 = arith.subf %73, %74 : vector<104x1xf32>
    %cst_37 = arith.constant 0.000000e+00 : f32
    %76 = vector.broadcast %cst_37 : f32 to vector<104x1xf32>
    %77 = arith.maximumf %75, %76 : vector<104x1xf32>
    %78 = vector.broadcast %68 : vector<104x1xf32> to vector<104x256xf32>
    %79 = arith.subf %60, %78 : vector<104x256xf32>
    %cst_38 = arith.constant 9.99999974E-6 : f32
    %80 = vector.broadcast %cst_38 : f32 to vector<104x1xf32>
    %81 = arith.addf %77, %80 : vector<104x1xf32>
    %82 = math.rsqrt %81 : vector<104x1xf32>
    %83 = vector.broadcast %82 : vector<104x1xf32> to vector<104x256xf32>
    %84 = arith.mulf %79, %83 : vector<104x256xf32>
    %85 = vector.broadcast %62 : vector<1x256xf32> to vector<104x256xf32>
    %86 = arith.mulf %84, %85 : vector<104x256xf32>
    %87 = vector.broadcast %64 : vector<1x256xf32> to vector<104x256xf32>
    %88 = arith.addf %86, %87 : vector<104x256xf32>
    %cst_39 = arith.constant 0.000000e+00 : f32
    %89 = vector.broadcast %cst_39 : f32 to vector<104x256xf32>
    %90 = arith.maximumf %88, %89 : vector<104x256xf32>
    %91 = arith.truncf %90 : vector<104x256xf32> to vector<104x256xbf16>
    %c2_i32 = arith.constant 2 : i32
    %c1_i32_40 = arith.constant 1 : i32
    %92 = arith.subi %c2_i32, %c1_i32_40 : i32
    %93 = arith.index_cast %92 : i32 to index
    %c0_41 = arith.constant 0 : index
    %c0_42 = arith.constant 0 : index
    %94 = vector.load %arg6[%93, %c0_41, %c0_42] : memref<5x256x256xbf16, #tpu.memory_space<vmem>>, vector<1x256x256xbf16>
    %95 = vector.shape_cast %94 : vector<1x256x256xbf16> to vector<256x256xbf16>
    %cst_43 = arith.constant dense<0.000000e+00> : vector<104x256xf32>
    %96 = tpu.matmul %91, %95, %cst_43 {dimension_numbers = #tpu.dot_dimension_numbers<[1], [0], [0], [1], [0, 0, 1, 1], [], []>} : vector<104x256xbf16>, vector<256x256xbf16>, vector<104x256xf32> -> vector<104x256xf32>
    %97 = arith.index_cast %c2_i32 : i32 to index
    %c0_44 = arith.constant 0 : index
    %98 = vector.load %arg7[%97, %c0_44] : memref<6x256xf32, #tpu.memory_space<vmem>>, vector<1x256xf32>
    %99 = vector.broadcast %98 : vector<1x256xf32> to vector<104x256xf32>
    %100 = arith.addf %96, %99 : vector<104x256xf32>
    %101 = arith.index_cast %c2_i32 : i32 to index
    %c0_45 = arith.constant 0 : index
    %102 = vector.load %arg8[%101, %c0_45] : memref<6x256xf32, #tpu.memory_space<vmem>>, vector<1x256xf32>
    %103 = arith.index_cast %c2_i32 : i32 to index
    %c0_46 = arith.constant 0 : index
    %104 = vector.load %arg9[%103, %c0_46] : memref<6x256xf32, #tpu.memory_space<vmem>>, vector<1x256xf32>
    %cst_47 = arith.constant dense<0.000000e+00> : vector<104xf32>
    %105 = vector.multi_reduction <add>, %100, %cst_47 [1] : vector<104x256xf32> to vector<104xf32>
    %106 = vector.shape_cast %105 : vector<104xf32> to vector<104x1xf32>
    %cst_48 = arith.constant 2.560000e+02 : f32
    %107 = vector.broadcast %cst_48 : f32 to vector<104x1xf32>
    %108 = arith.divf %106, %107 : vector<104x1xf32>
    %109 = arith.mulf %100, %100 : vector<104x256xf32>
    %cst_49 = arith.constant dense<0.000000e+00> : vector<104xf32>
    %110 = vector.multi_reduction <add>, %109, %cst_49 [1] : vector<104x256xf32> to vector<104xf32>
    %111 = vector.shape_cast %110 : vector<104xf32> to vector<104x1xf32>
    %cst_50 = arith.constant 2.560000e+02 : f32
    %112 = vector.broadcast %cst_50 : f32 to vector<104x1xf32>
    %113 = arith.divf %111, %112 : vector<104x1xf32>
    %114 = arith.mulf %108, %108 : vector<104x1xf32>
    %115 = arith.subf %113, %114 : vector<104x1xf32>
    %cst_51 = arith.constant 0.000000e+00 : f32
    %116 = vector.broadcast %cst_51 : f32 to vector<104x1xf32>
    %117 = arith.maximumf %115, %116 : vector<104x1xf32>
    %118 = vector.broadcast %108 : vector<104x1xf32> to vector<104x256xf32>
    %119 = arith.subf %100, %118 : vector<104x256xf32>
    %cst_52 = arith.constant 9.99999974E-6 : f32
    %120 = vector.broadcast %cst_52 : f32 to vector<104x1xf32>
    %121 = arith.addf %117, %120 : vector<104x1xf32>
    %122 = math.rsqrt %121 : vector<104x1xf32>
    %123 = vector.broadcast %122 : vector<104x1xf32> to vector<104x256xf32>
    %124 = arith.mulf %119, %123 : vector<104x256xf32>
    %125 = vector.broadcast %102 : vector<1x256xf32> to vector<104x256xf32>
    %126 = arith.mulf %124, %125 : vector<104x256xf32>
    %127 = vector.broadcast %104 : vector<1x256xf32> to vector<104x256xf32>
    %128 = arith.addf %126, %127 : vector<104x256xf32>
    %cst_53 = arith.constant 0.000000e+00 : f32
    %129 = vector.broadcast %cst_53 : f32 to vector<104x256xf32>
    %130 = arith.maximumf %128, %129 : vector<104x256xf32>
    %131 = arith.truncf %130 : vector<104x256xf32> to vector<104x256xbf16>
    %c3_i32 = arith.constant 3 : i32
    %c1_i32_54 = arith.constant 1 : i32
    %132 = arith.subi %c3_i32, %c1_i32_54 : i32
    %133 = arith.index_cast %132 : i32 to index
    %c0_55 = arith.constant 0 : index
    %c0_56 = arith.constant 0 : index
    %134 = vector.load %arg6[%133, %c0_55, %c0_56] : memref<5x256x256xbf16, #tpu.memory_space<vmem>>, vector<1x256x256xbf16>
    %135 = vector.shape_cast %134 : vector<1x256x256xbf16> to vector<256x256xbf16>
    %cst_57 = arith.constant dense<0.000000e+00> : vector<104x256xf32>
    %136 = tpu.matmul %131, %135, %cst_57 {dimension_numbers = #tpu.dot_dimension_numbers<[1], [0], [0], [1], [0, 0, 1, 1], [], []>} : vector<104x256xbf16>, vector<256x256xbf16>, vector<104x256xf32> -> vector<104x256xf32>
    %137 = arith.index_cast %c3_i32 : i32 to index
    %c0_58 = arith.constant 0 : index
    %138 = vector.load %arg7[%137, %c0_58] : memref<6x256xf32, #tpu.memory_space<vmem>>, vector<1x256xf32>
    %139 = vector.broadcast %138 : vector<1x256xf32> to vector<104x256xf32>
    %140 = arith.addf %136, %139 : vector<104x256xf32>
    %141 = arith.index_cast %c3_i32 : i32 to index
    %c0_59 = arith.constant 0 : index
    %142 = vector.load %arg8[%141, %c0_59] : memref<6x256xf32, #tpu.memory_space<vmem>>, vector<1x256xf32>
    %143 = arith.index_cast %c3_i32 : i32 to index
    %c0_60 = arith.constant 0 : index
    %144 = vector.load %arg9[%143, %c0_60] : memref<6x256xf32, #tpu.memory_space<vmem>>, vector<1x256xf32>
    %cst_61 = arith.constant dense<0.000000e+00> : vector<104xf32>
    %145 = vector.multi_reduction <add>, %140, %cst_61 [1] : vector<104x256xf32> to vector<104xf32>
    %146 = vector.shape_cast %145 : vector<104xf32> to vector<104x1xf32>
    %cst_62 = arith.constant 2.560000e+02 : f32
    %147 = vector.broadcast %cst_62 : f32 to vector<104x1xf32>
    %148 = arith.divf %146, %147 : vector<104x1xf32>
    %149 = arith.mulf %140, %140 : vector<104x256xf32>
    %cst_63 = arith.constant dense<0.000000e+00> : vector<104xf32>
    %150 = vector.multi_reduction <add>, %149, %cst_63 [1] : vector<104x256xf32> to vector<104xf32>
    %151 = vector.shape_cast %150 : vector<104xf32> to vector<104x1xf32>
    %cst_64 = arith.constant 2.560000e+02 : f32
    %152 = vector.broadcast %cst_64 : f32 to vector<104x1xf32>
    %153 = arith.divf %151, %152 : vector<104x1xf32>
    %154 = arith.mulf %148, %148 : vector<104x1xf32>
    %155 = arith.subf %153, %154 : vector<104x1xf32>
    %cst_65 = arith.constant 0.000000e+00 : f32
    %156 = vector.broadcast %cst_65 : f32 to vector<104x1xf32>
    %157 = arith.maximumf %155, %156 : vector<104x1xf32>
    %158 = vector.broadcast %148 : vector<104x1xf32> to vector<104x256xf32>
    %159 = arith.subf %140, %158 : vector<104x256xf32>
    %cst_66 = arith.constant 9.99999974E-6 : f32
    %160 = vector.broadcast %cst_66 : f32 to vector<104x1xf32>
    %161 = arith.addf %157, %160 : vector<104x1xf32>
    %162 = math.rsqrt %161 : vector<104x1xf32>
    %163 = vector.broadcast %162 : vector<104x1xf32> to vector<104x256xf32>
    %164 = arith.mulf %159, %163 : vector<104x256xf32>
    %165 = vector.broadcast %142 : vector<1x256xf32> to vector<104x256xf32>
    %166 = arith.mulf %164, %165 : vector<104x256xf32>
    %167 = vector.broadcast %144 : vector<1x256xf32> to vector<104x256xf32>
    %168 = arith.addf %166, %167 : vector<104x256xf32>
    %cst_67 = arith.constant 0.000000e+00 : f32
    %169 = vector.broadcast %cst_67 : f32 to vector<104x256xf32>
    %170 = arith.maximumf %168, %169 : vector<104x256xf32>
    %171 = arith.truncf %170 : vector<104x256xf32> to vector<104x256xbf16>
    %c4_i32 = arith.constant 4 : i32
    %c1_i32_68 = arith.constant 1 : i32
    %172 = arith.subi %c4_i32, %c1_i32_68 : i32
    %173 = arith.index_cast %172 : i32 to index
    %c0_69 = arith.constant 0 : index
    %c0_70 = arith.constant 0 : index
    %174 = vector.load %arg6[%173, %c0_69, %c0_70] : memref<5x256x256xbf16, #tpu.memory_space<vmem>>, vector<1x256x256xbf16>
    %175 = vector.shape_cast %174 : vector<1x256x256xbf16> to vector<256x256xbf16>
    %cst_71 = arith.constant dense<0.000000e+00> : vector<104x256xf32>
    %176 = tpu.matmul %171, %175, %cst_71 {dimension_numbers = #tpu.dot_dimension_numbers<[1], [0], [0], [1], [0, 0, 1, 1], [], []>} : vector<104x256xbf16>, vector<256x256xbf16>, vector<104x256xf32> -> vector<104x256xf32>
    %177 = arith.index_cast %c4_i32 : i32 to index
    %c0_72 = arith.constant 0 : index
    %178 = vector.load %arg7[%177, %c0_72] : memref<6x256xf32, #tpu.memory_space<vmem>>, vector<1x256xf32>
    %179 = vector.broadcast %178 : vector<1x256xf32> to vector<104x256xf32>
    %180 = arith.addf %176, %179 : vector<104x256xf32>
    %181 = arith.index_cast %c4_i32 : i32 to index
    %c0_73 = arith.constant 0 : index
    %182 = vector.load %arg8[%181, %c0_73] : memref<6x256xf32, #tpu.memory_space<vmem>>, vector<1x256xf32>
    %183 = arith.index_cast %c4_i32 : i32 to index
    %c0_74 = arith.constant 0 : index
    %184 = vector.load %arg9[%183, %c0_74] : memref<6x256xf32, #tpu.memory_space<vmem>>, vector<1x256xf32>
    %cst_75 = arith.constant dense<0.000000e+00> : vector<104xf32>
    %185 = vector.multi_reduction <add>, %180, %cst_75 [1] : vector<104x256xf32> to vector<104xf32>
    %186 = vector.shape_cast %185 : vector<104xf32> to vector<104x1xf32>
    %cst_76 = arith.constant 2.560000e+02 : f32
    %187 = vector.broadcast %cst_76 : f32 to vector<104x1xf32>
    %188 = arith.divf %186, %187 : vector<104x1xf32>
    %189 = arith.mulf %180, %180 : vector<104x256xf32>
    %cst_77 = arith.constant dense<0.000000e+00> : vector<104xf32>
    %190 = vector.multi_reduction <add>, %189, %cst_77 [1] : vector<104x256xf32> to vector<104xf32>
    %191 = vector.shape_cast %190 : vector<104xf32> to vector<104x1xf32>
    %cst_78 = arith.constant 2.560000e+02 : f32
    %192 = vector.broadcast %cst_78 : f32 to vector<104x1xf32>
    %193 = arith.divf %191, %192 : vector<104x1xf32>
    %194 = arith.mulf %188, %188 : vector<104x1xf32>
    %195 = arith.subf %193, %194 : vector<104x1xf32>
    %cst_79 = arith.constant 0.000000e+00 : f32
    %196 = vector.broadcast %cst_79 : f32 to vector<104x1xf32>
    %197 = arith.maximumf %195, %196 : vector<104x1xf32>
    %198 = vector.broadcast %188 : vector<104x1xf32> to vector<104x256xf32>
    %199 = arith.subf %180, %198 : vector<104x256xf32>
    %cst_80 = arith.constant 9.99999974E-6 : f32
    %200 = vector.broadcast %cst_80 : f32 to vector<104x1xf32>
    %201 = arith.addf %197, %200 : vector<104x1xf32>
    %202 = math.rsqrt %201 : vector<104x1xf32>
    %203 = vector.broadcast %202 : vector<104x1xf32> to vector<104x256xf32>
    %204 = arith.mulf %199, %203 : vector<104x256xf32>
    %205 = vector.broadcast %182 : vector<1x256xf32> to vector<104x256xf32>
    %206 = arith.mulf %204, %205 : vector<104x256xf32>
    %207 = vector.broadcast %184 : vector<1x256xf32> to vector<104x256xf32>
    %208 = arith.addf %206, %207 : vector<104x256xf32>
    %cst_81 = arith.constant 0.000000e+00 : f32
    %209 = vector.broadcast %cst_81 : f32 to vector<104x256xf32>
    %210 = arith.maximumf %208, %209 : vector<104x256xf32>
    %211 = arith.truncf %210 : vector<104x256xf32> to vector<104x256xbf16>
    %c5_i32 = arith.constant 5 : i32
    %c1_i32_82 = arith.constant 1 : i32
    %212 = arith.subi %c5_i32, %c1_i32_82 : i32
    %213 = arith.index_cast %212 : i32 to index
    %c0_83 = arith.constant 0 : index
    %c0_84 = arith.constant 0 : index
    %214 = vector.load %arg6[%213, %c0_83, %c0_84] : memref<5x256x256xbf16, #tpu.memory_space<vmem>>, vector<1x256x256xbf16>
    %215 = vector.shape_cast %214 : vector<1x256x256xbf16> to vector<256x256xbf16>
    %cst_85 = arith.constant dense<0.000000e+00> : vector<104x256xf32>
    %216 = tpu.matmul %211, %215, %cst_85 {dimension_numbers = #tpu.dot_dimension_numbers<[1], [0], [0], [1], [0, 0, 1, 1], [], []>} : vector<104x256xbf16>, vector<256x256xbf16>, vector<104x256xf32> -> vector<104x256xf32>
    %217 = arith.index_cast %c5_i32 : i32 to index
    %c0_86 = arith.constant 0 : index
    %218 = vector.load %arg7[%217, %c0_86] : memref<6x256xf32, #tpu.memory_space<vmem>>, vector<1x256xf32>
    %219 = vector.broadcast %218 : vector<1x256xf32> to vector<104x256xf32>
    %220 = arith.addf %216, %219 : vector<104x256xf32>
    %221 = arith.index_cast %c5_i32 : i32 to index
    %c0_87 = arith.constant 0 : index
    %222 = vector.load %arg8[%221, %c0_87] : memref<6x256xf32, #tpu.memory_space<vmem>>, vector<1x256xf32>
    %223 = arith.index_cast %c5_i32 : i32 to index
    %c0_88 = arith.constant 0 : index
    %224 = vector.load %arg9[%223, %c0_88] : memref<6x256xf32, #tpu.memory_space<vmem>>, vector<1x256xf32>
    %cst_89 = arith.constant dense<0.000000e+00> : vector<104xf32>
    %225 = vector.multi_reduction <add>, %220, %cst_89 [1] : vector<104x256xf32> to vector<104xf32>
    %226 = vector.shape_cast %225 : vector<104xf32> to vector<104x1xf32>
    %cst_90 = arith.constant 2.560000e+02 : f32
    %227 = vector.broadcast %cst_90 : f32 to vector<104x1xf32>
    %228 = arith.divf %226, %227 : vector<104x1xf32>
    %229 = arith.mulf %220, %220 : vector<104x256xf32>
    %cst_91 = arith.constant dense<0.000000e+00> : vector<104xf32>
    %230 = vector.multi_reduction <add>, %229, %cst_91 [1] : vector<104x256xf32> to vector<104xf32>
    %231 = vector.shape_cast %230 : vector<104xf32> to vector<104x1xf32>
    %cst_92 = arith.constant 2.560000e+02 : f32
    %232 = vector.broadcast %cst_92 : f32 to vector<104x1xf32>
    %233 = arith.divf %231, %232 : vector<104x1xf32>
    %234 = arith.mulf %228, %228 : vector<104x1xf32>
    %235 = arith.subf %233, %234 : vector<104x1xf32>
    %cst_93 = arith.constant 0.000000e+00 : f32
    %236 = vector.broadcast %cst_93 : f32 to vector<104x1xf32>
    %237 = arith.maximumf %235, %236 : vector<104x1xf32>
    %238 = vector.broadcast %228 : vector<104x1xf32> to vector<104x256xf32>
    %239 = arith.subf %220, %238 : vector<104x256xf32>
    %cst_94 = arith.constant 9.99999974E-6 : f32
    %240 = vector.broadcast %cst_94 : f32 to vector<104x1xf32>
    %241 = arith.addf %237, %240 : vector<104x1xf32>
    %242 = math.rsqrt %241 : vector<104x1xf32>
    %243 = vector.broadcast %242 : vector<104x1xf32> to vector<104x256xf32>
    %244 = arith.mulf %239, %243 : vector<104x256xf32>
    %245 = vector.broadcast %222 : vector<1x256xf32> to vector<104x256xf32>
    %246 = arith.mulf %244, %245 : vector<104x256xf32>
    %247 = vector.broadcast %224 : vector<1x256xf32> to vector<104x256xf32>
    %248 = arith.addf %246, %247 : vector<104x256xf32>
    %cst_95 = arith.constant 0.000000e+00 : f32
    %249 = vector.broadcast %cst_95 : f32 to vector<104x256xf32>
    %250 = arith.maximumf %248, %249 : vector<104x256xf32>
    %251 = arith.truncf %250 : vector<104x256xf32> to vector<104x256xbf16>
    %c5_i32_96 = arith.constant 5 : i32
    %c0_97 = arith.constant 0 : index
    %c0_98 = arith.constant 0 : index
    %252 = vector.load %arg11[%c0_97, %c0_98] : memref<256x192xbf16, #tpu.memory_space<vmem>>, vector<256x192xbf16>
    %cst_99 = arith.constant dense<0.000000e+00> : vector<104x192xf32>
    %253 = tpu.matmul %251, %252, %cst_99 {dimension_numbers = #tpu.dot_dimension_numbers<[1], [0], [0], [1], [0, 0, 1, 1], [], []>} : vector<104x256xbf16>, vector<256x192xbf16>, vector<104x192xf32> -> vector<104x192xf32>
    %c0_100 = arith.constant 0 : index
    %c0_101 = arith.constant 0 : index
    %254 = vector.load %arg12[%c0_100, %c0_101] : memref<1x192xf32, #tpu.memory_space<vmem>>, vector<1x192xf32>
    %255 = vector.broadcast %254 : vector<1x192xf32> to vector<104x192xf32>
    %256 = arith.addf %253, %255 : vector<104x192xf32>
    %c0_102 = arith.constant 0 : index
    %c0_103 = arith.constant 0 : index
    %257 = vector.load %arg13[%c0_102, %c0_103] : memref<256x64xbf16, #tpu.memory_space<vmem>>, vector<256x64xbf16>
    %cst_104 = arith.constant dense<0.000000e+00> : vector<104x64xf32>
    %258 = tpu.matmul %251, %257, %cst_104 {dimension_numbers = #tpu.dot_dimension_numbers<[1], [0], [0], [1], [0, 0, 1, 1], [], []>} : vector<104x256xbf16>, vector<256x64xbf16>, vector<104x64xf32> -> vector<104x64xf32>
    %c0_105 = arith.constant 0 : index
    %c0_106 = arith.constant 0 : index
    %259 = vector.load %arg14[%c0_105, %c0_106] : memref<1x64xf32, #tpu.memory_space<vmem>>, vector<1x64xf32>
    %260 = vector.broadcast %259 : vector<1x64xf32> to vector<104x64xf32>
    %261 = arith.addf %258, %260 : vector<104x64xf32>
    %262 = tpu.iota {dimensions = array<i32: 1>} : vector<104x192xi32>
    %cst_107 = arith.constant 5.000000e-01 : f32
    %263 = vector.broadcast %cst_107 : f32 to vector<104x192xf32>
    %264 = arith.mulf %263, %256 : vector<104x192xf32>
    %265 = math.exp %264 : vector<104x192xf32>
    %cst_108 = arith.constant 9.99999997E-7 : f32
    %266 = vector.broadcast %cst_108 : f32 to vector<104x192xf32>
    %267 = arith.maximumf %265, %266 : vector<104x192xf32>
    %c128_i32 = arith.constant 128 : i32
    %268 = vector.broadcast %c128_i32 : i32 to vector<104x192xi32>
    %269 = arith.cmpi sge, %262, %268 : vector<104x192xi32>
    %270 = arith.select %269, %267, %256 : vector<104x192xi1>, vector<104x192xf32>
    %cst_109 = arith.constant 5.000000e-01 : f32
    %271 = vector.broadcast %cst_109 : f32 to vector<104x64xf32>
    %272 = arith.mulf %271, %261 : vector<104x64xf32>
    %273 = math.exp %272 : vector<104x64xf32>
    %cst_110 = arith.constant 9.99999997E-7 : f32
    %274 = vector.broadcast %cst_110 : f32 to vector<104x64xf32>
    %275 = arith.maximumf %273, %274 : vector<104x64xf32>
    %276 = arith.extf %14 : vector<104x64xbf16> to vector<104x64xf32>
    %277 = arith.mulf %275, %276 : vector<104x64xf32>
    %cst_111 = arith.constant 0.000000e+00 : f32
    %278 = vector.broadcast %cst_111 : f32 to vector<104x128xf32>
    %279 = tpu.concatenate %277, %278 in 1 : vector<104x64xf32>, vector<104x128xf32> -> vector<104x192xf32>
    %280 = arith.addf %270, %279 : vector<104x192xf32>
    %c0_112 = arith.constant 0 : index
    %c0_113 = arith.constant 0 : index
    %281 = vector.load %arg15[%c0_112, %c0_113] : memref<104x192xf32, #tpu.memory_space<vmem>>, vector<104x192xf32>
    tpu.vector_store %arg15[%c0_112, %c0_113], %280 {strides = array<i32>} : memref<104x192xf32, #tpu.memory_space<vmem>>, vector<104x192xf32>,
    return
  }
  func.func @transform_0(%arg0: i32) -> (i32, i32) {
    %c0_i32 = arith.constant 0 : i32
    %c0_i32_0 = arith.constant 0 : i32
    return %arg0, %c0_i32 : i32, i32
  }
  func.func @transform_1(%arg0: i32) -> (i32, i32) {
    %c0_i32 = arith.constant 0 : i32
    %c0_i32_0 = arith.constant 0 : i32
    return %arg0, %c0_i32 : i32, i32
  }
  func.func @transform_2(%arg0: i32) -> (i32, i32) {
    %c0_i32 = arith.constant 0 : i32
    %c0_i32_0 = arith.constant 0 : i32
    return %arg0, %c0_i32 : i32, i32
  }
  func.func @transform_3(%arg0: i32) -> (i32, i32) {
    %c0_i32 = arith.constant 0 : i32
    %c0_i32_0 = arith.constant 0 : i32
    %c0_i32_1 = arith.constant 0 : i32
    return %c0_i32, %c0_i32_0 : i32, i32
  }
  func.func @transform_4(%arg0: i32) -> (i32, i32) {
    %c0_i32 = arith.constant 0 : i32
    %c0_i32_0 = arith.constant 0 : i32
    %c0_i32_1 = arith.constant 0 : i32
    return %c0_i32, %c0_i32_0 : i32, i32
  }
  func.func @transform_5(%arg0: i32) -> (i32, i32, i32) {
    %c0_i32 = arith.constant 0 : i32
    %c0_i32_0 = arith.constant 0 : i32
    %c0_i32_1 = arith.constant 0 : i32
    %c0_i32_2 = arith.constant 0 : i32
    return %c0_i32, %c0_i32_0, %c0_i32_1 : i32, i32, i32
  }
  func.func @transform_6(%arg0: i32) -> (i32, i32) {
    %c0_i32 = arith.constant 0 : i32
    %c0_i32_0 = arith.constant 0 : i32
    %c0_i32_1 = arith.constant 0 : i32
    return %c0_i32, %c0_i32_0 : i32, i32
  }
  func.func @transform_7(%arg0: i32) -> (i32, i32) {
    %c0_i32 = arith.constant 0 : i32
    %c0_i32_0 = arith.constant 0 : i32
    %c0_i32_1 = arith.constant 0 : i32
    return %c0_i32, %c0_i32_0 : i32, i32
  }
  func.func @transform_8(%arg0: i32) -> (i32, i32) {
    %c0_i32 = arith.constant 0 : i32
    %c0_i32_0 = arith.constant 0 : i32
    %c0_i32_1 = arith.constant 0 : i32
    return %c0_i32, %c0_i32_0 : i32, i32
  }
  func.func @transform_9(%arg0: i32) -> (i32, i32) {
    %c0_i32 = arith.constant 0 : i32
    %c0_i32_0 = arith.constant 0 : i32
    %c0_i32_1 = arith.constant 0 : i32
    return %c0_i32, %c0_i32_0 : i32, i32
  }
  func.func @transform_10(%arg0: i32) -> (i32, i32) {
    %c0_i32 = arith.constant 0 : i32
    %c0_i32_0 = arith.constant 0 : i32
    %c0_i32_1 = arith.constant 0 : i32
    return %c0_i32, %c0_i32_0 : i32, i32
  }
  func.func @transform_11(%arg0: i32) -> (i32, i32) {
    %c0_i32 = arith.constant 0 : i32
    %c0_i32_0 = arith.constant 0 : i32
    %c0_i32_1 = arith.constant 0 : i32
    return %c0_i32, %c0_i32_0 : i32, i32
  }
  func.func @transform_12(%arg0: i32) -> (i32, i32) {
    %c0_i32 = arith.constant 0 : i32
    %c0_i32_0 = arith.constant 0 : i32
    %c0_i32_1 = arith.constant 0 : i32
    return %c0_i32, %c0_i32_0 : i32, i32
  }
  func.func @transform_13(%arg0: i32) -> (i32, i32) {
    %c0_i32 = arith.constant 0 : i32
    %c0_i32_0 = arith.constant 0 : i32
    %c0_i32_1 = arith.constant 0 : i32
    return %c0_i32, %c0_i32_0 : i32, i32
  }
  func.func @transform_14(%arg0: i32) -> (i32, i32) {
    %c0_i32 = arith.constant 0 : i32
    %c0_i32_0 = arith.constant 0 : i32
    return %arg0, %c0_i32 : i32, i32
  }
}

</mosaic_0001>

<llo_original>
// kernel: timbre_encoder_pallas.1
$region0: #{timbre_encoder_pallas.1}
  #allocation0 [shape = 'u32[]', space=smem, size = 0x4, offset = 0x4, fixed_abs, tag = 'smem constant byte address 0x4 - core index']
  #allocation1 [shape = 'u32[144,128]{1,0:T(1,128)}', space=vmem, size = 0x12000, scoped, tag = 'internal scratch']
  %s0 = inlined_call_operand.vmem [shape: bf16[200,64], index: 0, kind: input, shape index: {}]
  %s1 = inlined_call_operand.vmem [shape: bf16[200,64], index: 1, kind: input, shape index: {}]
  %s2 = inlined_call_operand.vmem [shape: bf16[200,64], index: 2, kind: input, shape index: {}]
  %s3 = inlined_call_operand.vmem [shape: bf16[64,256], index: 3, kind: input, shape index: {}]
  %s4 = inlined_call_operand.vmem [shape: bf16[64,256], index: 4, kind: input, shape index: {}]
  %s5 = inlined_call_operand.hbm [shape: bf16[5,256,256], index: 5, kind: input, shape index: {}]
  %s6 = inlined_call_operand.vmem [shape: f32[6,256], index: 6, kind: input, shape index: {}]
  %s7 = inlined_call_operand.vmem [shape: f32[6,256], index: 7, kind: input, shape index: {}]
  %s8 = inlined_call_operand.vmem [shape: f32[6,256], index: 8, kind: input, shape index: {}]
  %s9 = inlined_call_operand.vmem [shape: bf16[256,256], index: 9, kind: input, shape index: {}]
  %s10 = inlined_call_operand.vmem [shape: bf16[256,192], index: 10, kind: input, shape index: {}]
  %s11 = inlined_call_operand.vmem [shape: f32[1,192], index: 11, kind: input, shape index: {}]
  %s12 = inlined_call_operand.vmem [shape: bf16[256,64], index: 12, kind: input, shape index: {}]
  %s13 = inlined_call_operand.vmem [shape: f32[1,64], index: 13, kind: input, shape index: {}]
  %s14 = inlined_call_operand.vmem [shape: f32[200,192], index: 14, kind: output, shape index: {}]
  %s15 = sld [smem:[#allocation0]]
  $region119: #{timbre_encoder_pallas.1} parent=0
    _
  %s17 = ssub.s32 1, %s15
  %s18 = scalar_select 0, %s17, %s15
  $region1: #{timbre_encoder_pallas.1} parent=0
    #allocation2 [shape = 'u8[655360]{0}', space=vmem, size = 0xa0000, scoped, tag = 'input window, operand 5, single buffered']
    #allocation3 [shape = 's32[2]{0}', space=sflag, size = 0x8, scoped, tag = 'scoped memory for timbre_encoder_pallas.1']
    #allocation4 [shape = 'u8[212992]{0}', space=vmem, size = 0x34000, scoped, tag = 'output window, operand 0']
    %19 = vsyncpa [#allocation3], 0
    loop: start=0, step=1, limit=4
    $region2: #{timbre_encoder_pallas.1} parent=1 // loop_pre_header
      _
    $region3: #{timbre_encoder_pallas.1} parent=1 // loop_header
      %s21 = sphi 0, %s25
      %p22 = scmp.ge.s32.totalorder %s21, 4
      %s31 = sphi 0, %s33
      %s34 = sphi 0, %s31
      %s35 = sphi 0, %s34
      %s51 = sphi 0, %s35
      %s57 = sphi 0, %s59
      %s60 = sphi 0, %s57
      %s61 = sphi 0, %s60
      %s77 = sphi 0, %s61
      %s83 = sphi 0, %s85
      %s86 = sphi 0, %s83
      %s87 = sphi 0, %s86
      %s103 = sphi 0, %s87
      %s107 = sphi 0, %s107
      %s109 = sphi 0, %s107
      %s110 = sphi 0, %s109
      %s124 = sphi 0, %s110
      %s128 = sphi 0, %s128
      %s130 = sphi 0, %s128
      %s131 = sphi 0, %s130
      %s145 = sphi 0, %s131
      %s149 = sphi 0, %s149
      %s151 = sphi 0, %s149
      %s152 = sphi 0, %s151
      %s166 = sphi 0, %s152
      %s170 = sphi 0, %s170
      %s172 = sphi 0, %s170
      %s173 = sphi 0, %s172
      %s187 = sphi 0, %s173
      %s191 = sphi 0, %s191
      %s193 = sphi 0, %s191
      %s194 = sphi 0, %s193
      %s208 = sphi 0, %s194
      %s212 = sphi 0, %s212
      %s214 = sphi 0, %s212
      %s215 = sphi 0, %s214
      %s229 = sphi 0, %s215
      %s233 = sphi 0, %s233
      %s235 = sphi 0, %s233
      %s236 = sphi 0, %s235
      %s250 = sphi 0, %s236
      %s254 = sphi 0, %s254
      %s256 = sphi 0, %s254
      %s257 = sphi 0, %s256
      %s271 = sphi 0, %s257
      %s275 = sphi 0, %s275
      %s277 = sphi 0, %s275
      %s278 = sphi 0, %s277
      %s292 = sphi 0, %s278
      %s296 = sphi 0, %s296
      %s298 = sphi 0, %s296
      %s299 = sphi 0, %s298
      %s313 = sphi 0, %s299
      %s317 = sphi 0, %s317
      %s319 = sphi 0, %s317
      %s320 = sphi 0, %s319
      %s334 = sphi 0, %s320
      %s340 = sphi 0, %s342
      %s343 = sphi 0, %s340
      %s344 = sphi 0, %s343
      %s360 = sphi 0, %s344
    $region4: #{timbre_encoder_pallas.1} parent=1 // loop_header_branch
      %24 = sbr.rel (%p22) target = $region8
    $region5: #{timbre_encoder_pallas.1} parent=1 // loop_body
      %s26 = ssub.s32 %s21, 1
      %s27 = ssub.s32 %s21, 2
      %s28 = sadd.s32 %s21, 1
      %s29 = ssub.s32 %s21, %s28
      %p30 = scmp.eq.s32.totalorder %s29, 0
      %s32 = sadd.s32 %s31, 1
      %s33 = scalar_select %p30, %s31, %s32
      %p36 = pneg %p30
      %p37 = scmp.eq.s32.totalorder %s21, 1
      %p38 = por %p36, %p37
      %p39 = scmp.ne.s32.totalorder %s31, %s34
      %p40 = scmp.eq.s32.totalorder %s21, 0
      %p41 = por %p39, %p40
      %p42 = scmp.ne.s32.totalorder %s31, %s34
      %p43 = scmp.eq.s32.totalorder %s26, 1
      %p44 = por %p42, %p43
      %p45 = scmp.ne.s32.totalorder %s34, %s35
      %p46 = scmp.eq.s32.totalorder %s26, 0
      %p47 = por %p45, %p46
      %p48 = scmp.ne.s32.totalorder %s34, %s35
      %p49 = scmp.eq.s32.totalorder %s27, 1
      %p50 = por %p48, %p49
      %p52 = scmp.ne.s32.totalorder %s35, %s51
      %p53 = scmp.eq.s32.totalorder %s27, 0
      %p54 = por %p52, %p53
      %s55 = ssub.s32 %s21, %s28
      %p56 = scmp.eq.s32.totalorder %s55, 0
      %s58 = sadd.s32 %s57, 1
      %s59 = scalar_select %p56, %s57, %s58
      %p62 = pneg %p56
      %p63 = scmp.eq.s32.totalorder %s21, 1
      %p64 = por %p62, %p63
      %p65 = scmp.ne.s32.totalorder %s57, %s60
      %p66 = scmp.eq.s32.totalorder %s21, 0
      %p67 = por %p65, %p66
      %p68 = scmp.ne.s32.totalorder %s57, %s60
      %p69 = scmp.eq.s32.totalorder %s26, 1
      %p70 = por %p68, %p69
      %p71 = scmp.ne.s32.totalorder %s60, %s61
      %p72 = scmp.eq.s32.totalorder %s26, 0
      %p73 = por %p71, %p72
      %p74 = scmp.ne.s32.totalorder %s60, %s61
      %p75 = scmp.eq.s32.totalorder %s27, 1
      %p76 = por %p74, %p75
      %p78 = scmp.ne.s32.totalorder %s61, %s77
      %p79 = scmp.eq.s32.totalorder %s27, 0
      %p80 = por %p78, %p79
      %s81 = ssub.s32 %s21, %s28
      %p82 = scmp.eq.s32.totalorder %s81, 0
      %s84 = sadd.s32 %s83, 1
      %s85 = scalar_select %p82, %s83, %s84
      %p88 = pneg %p82
      %p89 = scmp.eq.s32.totalorder %s21, 1
      %p90 = por %p88, %p89
      %p91 = scmp.ne.s32.totalorder %s83, %s86
      %p92 = scmp.eq.s32.totalorder %s21, 0
      %p93 = por %p91, %p92
      %p94 = scmp.ne.s32.totalorder %s83, %s86
      %p95 = scmp.eq.s32.totalorder %s26, 1
      %p96 = por %p94, %p95
      %p97 = scmp.ne.s32.totalorder %s86, %s87
      %p98 = scmp.eq.s32.totalorder %s26, 0
      %p99 = por %p97, %p98
      %p100 = scmp.ne.s32.totalorder %s86, %s87
      %p101 = scmp.eq.s32.totalorder %s27, 1
      %p102 = por %p100, %p101
      %p104 = scmp.ne.s32.totalorder %s87, %s103
      %p105 = scmp.eq.s32.totalorder %s27, 0
      %p106 = por %p104, %p105
      %s108 = sadd.s32 %s107, 1
      %p111 = scmp.eq.s32.totalorder %s21, 1
      %p112 = scmp.ne.s32.totalorder %s107, %s109
      %p113 = scmp.eq.s32.totalorder %s21, 0
      %p114 = por %p112, %p113
      %p115 = scmp.ne.s32.totalorder %s107, %s109
      %p116 = scmp.eq.s32.totalorder %s26, 1
      %p117 = por %p115, %p116
      %p118 = scmp.ne.s32.totalorder %s109, %s110
      %p119 = scmp.eq.s32.totalorder %s26, 0
      %p120 = por %p118, %p119
      %p121 = scmp.ne.s32.totalorder %s109, %s110
      %p122 = scmp.eq.s32.totalorder %s27, 1
      %p123 = por %p121, %p122
      %p125 = scmp.ne.s32.totalorder %s110, %s124
      %p126 = scmp.eq.s32.totalorder %s27, 0
      %p127 = por %p125, %p126
      %s129 = sadd.s32 %s128, 1
      %p132 = scmp.eq.s32.totalorder %s21, 1
      %p133 = scmp.ne.s32.totalorder %s128, %s130
      %p134 = scmp.eq.s32.totalorder %s21, 0
      %p135 = por %p133, %p134
      %p136 = scmp.ne.s32.totalorder %s128, %s130
      %p137 = scmp.eq.s32.totalorder %s26, 1
      %p138 = por %p136, %p137
      %p139 = scmp.ne.s32.totalorder %s130, %s131
      %p140 = scmp.eq.s32.totalorder %s26, 0
      %p141 = por %p139, %p140
      %p142 = scmp.ne.s32.totalorder %s130, %s131
      %p143 = scmp.eq.s32.totalorder %s27, 1
      %p144 = por %p142, %p143
      %p146 = scmp.ne.s32.totalorder %s131, %s145
      %p147 = scmp.eq.s32.totalorder %s27, 0
      %p148 = por %p146, %p147
      %s150 = sadd.s32 %s149, 1
      %p153 = scmp.eq.s32.totalorder %s21, 1
      %p154 = scmp.ne.s32.totalorder %s149, %s151
      %p155 = scmp.eq.s32.totalorder %s21, 0
      %p156 = por %p154, %p155
      %p157 = scmp.ne.s32.totalorder %s149, %s151
      %p158 = scmp.eq.s32.totalorder %s26, 1
      %p159 = por %p157, %p158
      %p160 = scmp.ne.s32.totalorder %s151, %s152
      %p161 = scmp.eq.s32.totalorder %s26, 0
      %p162 = por %p160, %p161
      %p163 = scmp.ne.s32.totalorder %s151, %s152
      %p164 = scmp.eq.s32.totalorder %s27, 1
      %p165 = por %p163, %p164
      %p167 = scmp.ne.s32.totalorder %s152, %s166
      %p168 = scmp.eq.s32.totalorder %s27, 0
      %p169 = por %p167, %p168
      %s171 = sadd.s32 %s170, 1
      %p174 = scmp.eq.s32.totalorder %s21, 1
      %p175 = scmp.ne.s32.totalorder %s170, %s172
      %p176 = scmp.eq.s32.totalorder %s21, 0
      %p177 = por %p175, %p176
      %p178 = scmp.ne.s32.totalorder %s170, %s172
      %p179 = scmp.eq.s32.totalorder %s26, 1
      %p180 = por %p178, %p179
      %p181 = scmp.ne.s32.totalorder %s172, %s173
      %p182 = scmp.eq.s32.totalorder %s26, 0
      %p183 = por %p181, %p182
      %p184 = scmp.ne.s32.totalorder %s172, %s173
      %p185 = scmp.eq.s32.totalorder %s27, 1
      %p186 = por %p184, %p185
      %p188 = scmp.ne.s32.totalorder %s173, %s187
      %p189 = scmp.eq.s32.totalorder %s27, 0
      %p190 = por %p188, %p189
      %s192 = sadd.s32 %s191, 1
      %p195 = scmp.eq.s32.totalorder %s21, 1
      %p196 = scmp.ne.s32.totalorder %s191, %s193
      %p197 = scmp.eq.s32.totalorder %s21, 0
      %p198 = por %p196, %p197
      %p199 = scmp.ne.s32.totalorder %s191, %s193
      %p200 = scmp.eq.s32.totalorder %s26, 1
      %p201 = por %p199, %p200
      %p202 = scmp.ne.s32.totalorder %s193, %s194
      %p203 = scmp.eq.s32.totalorder %s26, 0
      %p204 = por %p202, %p203
      %p205 = scmp.ne.s32.totalorder %s193, %s194
      %p206 = scmp.eq.s32.totalorder %s27, 1
      %p207 = por %p205, %p206
      %p209 = scmp.ne.s32.totalorder %s194, %s208
      %p210 = scmp.eq.s32.totalorder %s27, 0
      %p211 = por %p209, %p210
      %s213 = sadd.s32 %s212, 1
      %p216 = scmp.eq.s32.totalorder %s21, 1
      %p217 = scmp.ne.s32.totalorder %s212, %s214
      %p218 = scmp.eq.s32.totalorder %s21, 0
      %p219 = por %p217, %p218
      %p220 = scmp.ne.s32.totalorder %s212, %s214
      %p221 = scmp.eq.s32.totalorder %s26, 1
      %p222 = por %p220, %p221
      %p223 = scmp.ne.s32.totalorder %s214, %s215
      %p224 = scmp.eq.s32.totalorder %s26, 0
      %p225 = por %p223, %p224
      %p226 = scmp.ne.s32.totalorder %s214, %s215
      %p227 = scmp.eq.s32.totalorder %s27, 1
      %p228 = por %p226, %p227
      %p230 = scmp.ne.s32.totalorder %s215, %s229
      %p231 = scmp.eq.s32.totalorder %s27, 0
      %p232 = por %p230, %p231
      %s234 = sadd.s32 %s233, 1
      %p237 = scmp.eq.s32.totalorder %s21, 1
      %p238 = scmp.ne.s32.totalorder %s233, %s235
      %p239 = scmp.eq.s32.totalorder %s21, 0
      %p240 = por %p238, %p239
      %p241 = scmp.ne.s32.totalorder %s233, %s235
      %p242 = scmp.eq.s32.totalorder %s26, 1
      %p243 = por %p241, %p242
      %p244 = scmp.ne.s32.totalorder %s235, %s236
      %p245 = scmp.eq.s32.totalorder %s26, 0
      %p246 = por %p244, %p245
      %p247 = scmp.ne.s32.totalorder %s235, %s236
      %p248 = scmp.eq.s32.totalorder %s27, 1
      %p249 = por %p247, %p248
      %p251 = scmp.ne.s32.totalorder %s236, %s250
      %p252 = scmp.eq.s32.totalorder %s27, 0
      %p253 = por %p251, %p252
      %s255 = sadd.s32 %s254, 1
      %p258 = scmp.eq.s32.totalorder %s21, 1
      %p259 = scmp.ne.s32.totalorder %s254, %s256
      %p260 = scmp.eq.s32.totalorder %s21, 0
      %p261 = por %p259, %p260
      %p262 = scmp.ne.s32.totalorder %s254, %s256
      %p263 = scmp.eq.s32.totalorder %s26, 1
      %p264 = por %p262, %p263
      %p265 = scmp.ne.s32.totalorder %s256, %s257
      %p266 = scmp.eq.s32.totalorder %s26, 0
      %p267 = por %p265, %p266
      %p268 = scmp.ne.s32.totalorder %s256, %s257
      %p269 = scmp.eq.s32.totalorder %s27, 1
      %p270 = por %p268, %p269
      %p272 = scmp.ne.s32.totalorder %s257, %s271
      %p273 = scmp.eq.s32.totalorder %s27, 0
      %p274 = por %p272, %p273
      %s276 = sadd.s32 %s275, 1
      %p279 = scmp.eq.s32.totalorder %s21, 1
      %p280 = scmp.ne.s32.totalorder %s275, %s277
      %p281 = scmp.eq.s32.totalorder %s21, 0
      %p282 = por %p280, %p281
      %p283 = scmp.ne.s32.totalorder %s275, %s277
      %p284 = scmp.eq.s32.totalorder %s26, 1
      %p285 = por %p283, %p284
      %p286 = scmp.ne.s32.totalorder %s277, %s278
      %p287 = scmp.eq.s32.totalorder %s26, 0
      %p288 = por %p286, %p287
      %p289 = scmp.ne.s32.totalorder %s277, %s278
      %p290 = scmp.eq.s32.totalorder %s27, 1
      %p291 = por %p289, %p290
      %p293 = scmp.ne.s32.totalorder %s278, %s292
      %p294 = scmp.eq.s32.totalorder %s27, 0
      %p295 = por %p293, %p294
      %s297 = sadd.s32 %s296, 1
      %p300 = scmp.eq.s32.totalorder %s21, 1
      %p301 = scmp.ne.s32.totalorder %s296, %s298
      %p302 = scmp.eq.s32.totalorder %s21, 0
      %p303 = por %p301, %p302
      %p304 = scmp.ne.s32.totalorder %s296, %s298
      %p305 = scmp.eq.s32.totalorder %s26, 1
      %p306 = por %p304, %p305
      %p307 = scmp.ne.s32.totalorder %s298, %s299
      %p308 = scmp.eq.s32.totalorder %s26, 0
      %p309 = por %p307, %p308
      %p310 = scmp.ne.s32.totalorder %s298, %s299
      %p311 = scmp.eq.s32.totalorder %s27, 1
      %p312 = por %p310, %p311
      %p314 = scmp.ne.s32.totalorder %s299, %s313
      %p315 = scmp.eq.s32.totalorder %s27, 0
      %p316 = por %p314, %p315
      %s318 = sadd.s32 %s317, 1
      %p321 = scmp.eq.s32.totalorder %s21, 1
      %p322 = scmp.ne.s32.totalorder %s317, %s319
      %p323 = scmp.eq.s32.totalorder %s21, 0
      %p324 = por %p322, %p323
      %p325 = scmp.ne.s32.totalorder %s317, %s319
      %p326 = scmp.eq.s32.totalorder %s26, 1
      %p327 = por %p325, %p326
      %p328 = scmp.ne.s32.totalorder %s319, %s320
      %p329 = scmp.eq.s32.totalorder %s26, 0
      %p330 = por %p328, %p329
      %p331 = scmp.ne.s32.totalorder %s319, %s320
      %p332 = scmp.eq.s32.totalorder %s27, 1
      %p333 = por %p331, %p332
      %p335 = scmp.ne.s32.totalorder %s320, %s334
      %p336 = scmp.eq.s32.totalorder %s27, 0
      %p337 = por %p335, %p336
      %s338 = ssub.s32 %s21, %s28
      %p339 = scmp.eq.s32.totalorder %s338, 0
      %s341 = sadd.s32 %s340, 1
      %s342 = scalar_select %p339, %s340, %s341
      %p345 = pneg %p339
      %p346 = scmp.eq.s32.totalorder %s21, 1
      %p347 = por %p345, %p346
      %p348 = scmp.ne.s32.totalorder %s340, %s343
      %p349 = scmp.eq.s32.totalorder %s21, 0
      %p350 = por %p348, %p349
      %p351 = scmp.ne.s32.totalorder %s340, %s343
      %p352 = scmp.eq.s32.totalorder %s26, 1
      %p353 = por %p351, %p352
      %p354 = scmp.ne.s32.totalorder %s343, %s344
      %p355 = scmp.eq.s32.totalorder %s26, 0
      %p356 = por %p354, %p355
      %p357 = scmp.ne.s32.totalorder %s343, %s344
      %p358 = scmp.eq.s32.totalorder %s27, 1
      %p359 = por %p357, %p358
      %p361 = scmp.ne.s32.totalorder %s344, %s360
      %p362 = scmp.eq.s32.totalorder %s27, 0
      %p363 = por %p361, %p362
      %p364 = scmp.le.s32.totalorder 1, %s21
      %p365 = scmp.lt.s32.totalorder %s21, 3
      %p366 = pnand %p364, %p365
      %p367 = pneg %p366
      // Predicated region
      $region9: #{timbre_encoder_pallas.1} parent=5 // pred_check
        _
      $region10: #{timbre_encoder_pallas.1} parent=5 // pred_check_branch
        %369 = sbr.rel (%p366) target = $region12
      $region11: #{timbre_encoder_pallas.1} parent=5 // pred_region
        %s370 = ssub.s32 %s21, 1
        // Predicated region
        $region13: #{timbre_encoder_pallas.1} parent=11 // pred_check
          %p371 = pneg %p120
        $region14: #{timbre_encoder_pallas.1} parent=11 // pred_check_branch
          %373 = sbr.rel (%p371) target = $region16
        $region15: #{timbre_encoder_pallas.1} parent=11 // pred_region
          _
        $region16: #{timbre_encoder_pallas.1} parent=11 // pred_fallthru
          _
        // Predicated region
        $region17: #{timbre_encoder_pallas.1} parent=11 // pred_check
          %p374 = pneg %p141
        $region18: #{timbre_encoder_pallas.1} parent=11 // pred_check_branch
          %376 = sbr.rel (%p374) target = $region20
        $region19: #{timbre_encoder_pallas.1} parent=11 // pred_region
          _
        $region20: #{timbre_encoder_pallas.1} parent=11 // pred_fallthru
          _
        // Predicated region
        $region21: #{timbre_encoder_pallas.1} parent=11 // pred_check
          %p377 = pneg %p162
        $region22: #{timbre_encoder_pallas.1} parent=11 // pred_check_branch
          %379 = sbr.rel (%p377) target = $region24
        $region23: #{timbre_encoder_pallas.1} parent=11 // pred_region
          %s381 = ssub.s32 20480, 20480
          %382 = vsyncadd [#allocation3], %s381
          %s383 = sshll.u32 [#allocation2], 4
          %s384 = int_to_ptr.vmem [resolvable:$true] %s383
          %389 = dma.hbm_to_vmem [thread:$0]  %s5, 20480, %s384, [#allocation3], 128, 128, 8
        $region24: #{timbre_encoder_pallas.1} parent=11 // pred_fallthru
          _
        // Predicated region
        $region25: #{timbre_encoder_pallas.1} parent=11 // pred_check
          %p390 = pneg %p183
        $region26: #{timbre_encoder_pallas.1} parent=11 // pred_check_branch
          %392 = sbr.rel (%p390) target = $region28
        $region27: #{timbre_encoder_pallas.1} parent=11 // pred_region
          _
        $region28: #{timbre_encoder_pallas.1} parent=11 // pred_fallthru
          _
        // Predicated region
        $region29: #{timbre_encoder_pallas.1} parent=11 // pred_check
          %p393 = pneg %p204
        $region30: #{timbre_encoder_pallas.1} parent=11 // pred_check_branch
          %395 = sbr.rel (%p393) target = $region32
        $region31: #{timbre_encoder_pallas.1} parent=11 // pred_region
          _
        $region32: #{timbre_encoder_pallas.1} parent=11 // pred_fallthru
          _
        // Predicated region
        $region33: #{timbre_encoder_pallas.1} parent=11 // pred_check
          %p396 = pneg %p225
        $region34: #{timbre_encoder_pallas.1} parent=11 // pred_check_branch
          %398 = sbr.rel (%p396) target = $region36
        $region35: #{timbre_encoder_pallas.1} parent=11 // pred_region
          _
        $region36: #{timbre_encoder_pallas.1} parent=11 // pred_fallthru
          _
        // Predicated region
        $region37: #{timbre_encoder_pallas.1} parent=11 // pred_check
          %p399 = pneg %p246
        $region38: #{timbre_encoder_pallas.1} parent=11 // pred_check_branch
          %401 = sbr.rel (%p399) target = $region40
        $region39: #{timbre_encoder_pallas.1} parent=11 // pred_region
          _
        $region40: #{timbre_encoder_pallas.1} parent=11 // pred_fallthru
          _
        // Predicated region
        $region41: #{timbre_encoder_pallas.1} parent=11 // pred_check
          %p402 = pneg %p267
        $region42: #{timbre_encoder_pallas.1} parent=11 // pred_check_branch
          %404 = sbr.rel (%p402) target = $region44
        $region43: #{timbre_encoder_pallas.1} parent=11 // pred_region
          _
        $region44: #{timbre_encoder_pallas.1} parent=11 // pred_fallthru
          _
        // Predicated region
        $region45: #{timbre_encoder_pallas.1} parent=11 // pred_check
          %p405 = pneg %p288
        $region46: #{timbre_encoder_pallas.1} parent=11 // pred_check_branch
          %407 = sbr.rel (%p405) target = $region48
        $region47: #{timbre_encoder_pallas.1} parent=11 // pred_region
          _
        $region48: #{timbre_encoder_pallas.1} parent=11 // pred_fallthru
          _
        // Predicated region
        $region49: #{timbre_encoder_pallas.1} parent=11 // pred_check
          %p408 = pneg %p309
        $region50: #{timbre_encoder_pallas.1} parent=11 // pred_check_branch
          %410 = sbr.rel (%p408) target = $region52
        $region51: #{timbre_encoder_pallas.1} parent=11 // pred_region
          _
        $region52: #{timbre_encoder_pallas.1} parent=11 // pred_fallthru
          _
        // Predicated region
        $region53: #{timbre_encoder_pallas.1} parent=11 // pred_check
          %p411 = pneg %p330
        $region54: #{timbre_encoder_pallas.1} parent=11 // pred_check_branch
          %413 = sbr.rel (%p411) target = $region56
        $region55: #{timbre_encoder_pallas.1} parent=11 // pred_region
          _
        $region56: #{timbre_encoder_pallas.1} parent=11 // pred_fallthru
          _
      $region12: #{timbre_encoder_pallas.1} parent=5 // pred_fallthru
        _
      %p414 = scmp.lt.s32.totalorder %s21, 2
      // Predicated region
      $region57: #{timbre_encoder_pallas.1} parent=5 // pred_check
        %p415 = pneg %p414
      $region58: #{timbre_encoder_pallas.1} parent=5 // pred_check_branch
        %417 = sbr.rel (%p415) target = $region60
      $region59: #{timbre_encoder_pallas.1} parent=5 // pred_region
        // Predicated region
        $region61: #{timbre_encoder_pallas.1} parent=59 // pred_check
          %p418 = pneg %p41
        $region62: #{timbre_encoder_pallas.1} parent=59 // pred_check_branch
          %420 = sbr.rel (%p418) target = $region64
        $region63: #{timbre_encoder_pallas.1} parent=59 // pred_region
          %s421 = smul.u32 13, %s21
          %s422 = ssub.s32 25, %s421
          %p423 = scmp.lt.s32.totalorder %s422, 13
          %s424 = scalar_select %p423, %s422, 13
          %s425 = smul.u32 64, %s424
          %p426 = scmp.lt.s32.totalorder %s421, 24
          %s427 = scalar_select %p426, %s421, 24
          %s428 = smul.addr %s427, 4
          %s429 = scalar_lea.vmem %s0, %s428
          %s430 = smul.u32 13, %s21
          %s431 = ssub.s32 25, %s430
          %p432 = scmp.lt.s32.totalorder %s431, 13
          %s433 = scalar_select %p432, %s431, 13
          %s434 = smul.u32 64, %s433
        $region64: #{timbre_encoder_pallas.1} parent=59 // pred_fallthru
          _
        // Predicated region
        $region65: #{timbre_encoder_pallas.1} parent=59 // pred_check
          %p435 = pneg %p67
        $region66: #{timbre_encoder_pallas.1} parent=59 // pred_check_branch
          %437 = sbr.rel (%p435) target = $region68
        $region67: #{timbre_encoder_pallas.1} parent=59 // pred_region
          %s438 = smul.u32 13, %s21
          %s439 = ssub.s32 25, %s438
          %p440 = scmp.lt.s32.totalorder %s439, 13
          %s441 = scalar_select %p440, %s439, 13
          %s442 = smul.u32 64, %s441
          %p443 = scmp.lt.s32.totalorder %s438, 24
          %s444 = scalar_select %p443, %s438, 24
          %s445 = smul.addr %s444, 4
          %s446 = scalar_lea.vmem %s1, %s445
          %s447 = smul.u32 13, %s21
          %s448 = ssub.s32 25, %s447
          %p449 = scmp.lt.s32.totalorder %s448, 13
          %s450 = scalar_select %p449, %s448, 13
          %s451 = smul.u32 64, %s450
        $region68: #{timbre_encoder_pallas.1} parent=59 // pred_fallthru
          _
        // Predicated region
        $region69: #{timbre_encoder_pallas.1} parent=59 // pred_check
          %p452 = pneg %p93
        $region70: #{timbre_encoder_pallas.1} parent=59 // pred_check_branch
          %454 = sbr.rel (%p452) target = $region72
        $region71: #{timbre_encoder_pallas.1} parent=59 // pred_region
          %s455 = smul.u32 13, %s21
          %s456 = ssub.s32 25, %s455
          %p457 = scmp.lt.s32.totalorder %s456, 13
          %s458 = scalar_select %p457, %s456, 13
          %s459 = smul.u32 64, %s458
          %p460 = scmp.lt.s32.totalorder %s455, 24
          %s461 = scalar_select %p460, %s455, 24
          %s462 = smul.addr %s461, 4
          %s463 = scalar_lea.vmem %s2, %s462
          %s464 = smul.u32 13, %s21
          %s465 = ssub.s32 25, %s464
          %p466 = scmp.lt.s32.totalorder %s465, 13
          %s467 = scalar_select %p466, %s465, 13
          %s468 = smul.u32 64, %s467
        $region72: #{timbre_encoder_pallas.1} parent=59 // pred_fallthru
          _
      $region60: #{timbre_encoder_pallas.1} parent=5 // pred_fallthru
        _
      %p469 = scmp.le.s32.totalorder 1, %s21
      %p470 = scmp.lt.s32.totalorder %s21, 3
      %p471 = pnand %p469, %p470
      %p472 = pneg %p471
      // Predicated region
      $region73: #{timbre_encoder_pallas.1} parent=5 // pred_check
        _
      $region74: #{timbre_encoder_pallas.1} parent=5 // pred_check_branch
        %474 = sbr.rel (%p471) target = $region76
      $region75: #{timbre_encoder_pallas.1} parent=5 // pred_region
        %s475 = ssub.s32 %s21, 1
        // Predicated region
        $region77: #{timbre_encoder_pallas.1} parent=75 // pred_check
          %p476 = pneg %p162
        $region78: #{timbre_encoder_pallas.1} parent=75 // pred_check_branch
          %478 = sbr.rel (%p476) target = $region80
        $region79: #{timbre_encoder_pallas.1} parent=75 // pred_region
          %479 = dma.done [#allocation3], 20480
        $region80: #{timbre_encoder_pallas.1} parent=75 // pred_fallthru
          _
        %s480 = smul.u32 13, %s26
        %s481 = ssub.s32 25, %s480
        %p482 = scmp.lt.s32.totalorder %s481, 13
        %s483 = scalar_select %p482, %s481, 13
        %s484 = smul.u32 64, %s483
        %p485 = scmp.lt.s32.totalorder %s480, 24
        %s486 = scalar_select %p485, %s480, 24
        %s487 = smul.addr %s486, 4
        %s488 = scalar_lea.vmem %s0, %s487
        %p489 = pneg %p47
        %p490 = pneg %p44
        %s491 = smul.u32 13, %s26
        %s492 = ssub.s32 25, %s491
        %p493 = scmp.lt.s32.totalorder %s492, 13
        %s494 = scalar_select %p493, %s492, 13
        %s495 = smul.u32 64, %s494
        %p496 = scmp.lt.s32.totalorder %s491, 24
        %s497 = scalar_select %p496, %s491, 24
        %s498 = smul.addr %s497, 4
        %s499 = scalar_lea.vmem %s1, %s498
        %p500 = pneg %p73
        %p501 = pneg %p70
        %s502 = smul.u32 13, %s26
        %s503 = ssub.s32 25, %s502
        %p504 = scmp.lt.s32.totalorder %s503, 13
        %s505 = scalar_select %p504, %s503, 13
        %s506 = smul.u32 64, %s505
        %p507 = scmp.lt.s32.totalorder %s502, 24
        %s508 = scalar_select %p507, %s502, 24
        %s509 = smul.addr %s508, 4
        %s510 = scalar_lea.vmem %s2, %s509
        %p511 = pneg %p99
        %p512 = pneg %p96
        %p513 = pneg %p120
        %p514 = pneg %p117
        %p515 = pneg %p141
        %p516 = pneg %p138
        %p517 = pneg %p162
        %p518 = pneg %p159
        %p519 = pneg %p183
        %p520 = pneg %p180
        %p521 = pneg %p204
        %p522 = pneg %p201
        %p523 = pneg %p225
        %p524 = pneg %p222
        %p525 = pneg %p246
        %p526 = pneg %p243
        %p527 = pneg %p267
        %p528 = pneg %p264
        %p529 = pneg %p288
        %p530 = pneg %p285
        %p531 = pneg %p309
        %p532 = pneg %p306
        %p533 = pneg %p330
        %p534 = pneg %p327
        %p535 = pneg %p356
        %p536 = pneg %p353
        %s537 = sand.u32 %s343, 1
        %s538 = sand.u32 %s343, 1
        %s539 = smul.addr %s538, 208
        %s540 = scalar_lea.vmem [#allocation4], %s539
        %s541 = smul.u32 13, %s26
        %s542 = ssub.s32 25, %s541
        %p543 = scmp.lt.s32.totalorder %s542, 13
        %s544 = scalar_select %p543, %s542, 13
        %s545 = smul.u32 64, %s544
        %p546 = scmp.lt.s32.totalorder %s541, 24
        %s547 = scalar_select %p546, %s541, 24
        %s548 = smul.addr %s547, 4
        %s549 = scalar_lea.vmem %s0, %s548
        %s550 = smul.u32 13, %s26
        %s551 = ssub.s32 25, %s550
        %p552 = scmp.lt.s32.totalorder %s551, 13
        %s553 = scalar_select %p552, %s551, 13
        %s554 = smul.u32 64, %s553
        %s555 = smul.u32 13, %s26
        %s556 = ssub.s32 25, %s555
        %p557 = scmp.lt.s32.totalorder %s556, 13
        %s558 = scalar_select %p557, %s556, 13
        %s559 = smul.u32 64, %s558
        %p560 = scmp.lt.s32.totalorder %s555, 24
        %s561 = scalar_select %p560, %s555, 24
        %s562 = smul.addr %s561, 4
        %s563 = scalar_lea.vmem %s1, %s562
        %s564 = smul.u32 13, %s26
        %s565 = ssub.s32 25, %s564
        %p566 = scmp.lt.s32.totalorder %s565, 13
        %s567 = scalar_select %p566, %s565, 13
        %s568 = smul.u32 64, %s567
        %s569 = smul.u32 13, %s26
        %s570 = ssub.s32 25, %s569
        %p571 = scmp.lt.s32.totalorder %s570, 13
        %s572 = scalar_select %p571, %s570, 13
        %s573 = smul.u32 64, %s572
        %p574 = scmp.lt.s32.totalorder %s569, 24
        %s575 = scalar_select %p574, %s569, 24
        %s576 = smul.addr %s575, 4
        %s577 = scalar_lea.vmem %s2, %s576
        %s578 = smul.u32 13, %s26
        %s579 = ssub.s32 25, %s578
        %p580 = scmp.lt.s32.totalorder %s579, 13
        %s581 = scalar_select %p580, %s579, 13
        %s582 = smul.u32 64, %s581
        %s583 = smul.u32 13, %s26
        %s584 = ssub.s32 25, %s583
        %p585 = scmp.lt.s32.totalorder %s584, 13
        %s586 = scalar_select %p585, %s584, 13
        %s587 = smul.u32 128, %s586
        %s588 = smul.u32 %s587, 2
        %v590 = vld [vmem:[%s549] sm:$0xf]
        %v591 = vld [vmem:[%s549 + $0x4] sm:$0xf]
        %v592 = vld [vmem:[%s549 + $0x8] sm:$0xf]
        %v593 = vld [vmem:[%s549 + $0xc] sm:$0xf]
        %v594 = vld [vmem:[%s549 + $0x10] sm:$0xf]
        %v595 = vld [vmem:[%s549 + $0x14] sm:$0xf]
        %v596 = vld [vmem:[%s549 + $0x18] sm:$0xf]
        %v597 = vld [vmem:[%s549 + $0x1c] sm:$0xf]
        %v598 = vld [vmem:[%s549 + $0x20] sm:$0xf]
        %v599 = vld [vmem:[%s549 + $0x24] sm:$0xf]
        %v600 = vld [vmem:[%s549 + $0x28] sm:$0xf]
        %v601 = vld [vmem:[%s549 + $0x2c] sm:$0xf]
        %v602 = vld [vmem:[%s549 + $0x30] sm:$0xf]
        %v603 = vld [vmem:[%s563] sm:$0xf]
        %v604 = vld [vmem:[%s563 + $0x4] sm:$0xf]
        %v605 = vld [vmem:[%s563 + $0x8] sm:$0xf]
        %v606 = vld [vmem:[%s563 + $0xc] sm:$0xf]
        %v607 = vld [vmem:[%s563 + $0x10] sm:$0xf]
        %v608 = vld [vmem:[%s563 + $0x14] sm:$0xf]
        %v609 = vld [vmem:[%s563 + $0x18] sm:$0xf]
        %v610 = vld [vmem:[%s563 + $0x1c] sm:$0xf]
        %v611 = vld [vmem:[%s563 + $0x20] sm:$0xf]
        %v612 = vld [vmem:[%s563 + $0x24] sm:$0xf]
        %v613 = vld [vmem:[%s563 + $0x28] sm:$0xf]
        %v614 = vld [vmem:[%s563 + $0x2c] sm:$0xf]
        %v615 = vld [vmem:[%s563 + $0x30] sm:$0xf]
        %v616 = vld [vmem:[%s577] sm:$0xf]
        %v617 = vld [vmem:[%s577 + $0x4] sm:$0xf]
        %v618 = vld [vmem:[%s577 + $0x8] sm:$0xf]
        %v619 = vld [vmem:[%s577 + $0xc] sm:$0xf]
        %v620 = vld [vmem:[%s577 + $0x10] sm:$0xf]
        %v621 = vld [vmem:[%s577 + $0x14] sm:$0xf]
        %v622 = vld [vmem:[%s577 + $0x18] sm:$0xf]
        %v623 = vld [vmem:[%s577 + $0x1c] sm:$0xf]
        %v624 = vld [vmem:[%s577 + $0x20] sm:$0xf]
        %v625 = vld [vmem:[%s577 + $0x24] sm:$0xf]
        %v626 = vld [vmem:[%s577 + $0x28] sm:$0xf]
        %v627 = vld [vmem:[%s577 + $0x2c] sm:$0xf]
        %v628 = vld [vmem:[%s577 + $0x30] sm:$0xf]
        %s629 = smul.u32 %s26, 104
        %v630 = vlaneseq
        %v631 = vshrl.u32 %v630, 7
        %v632 = vadd.s32 %v631, 8
        %v633 = vadd.s32 %v631, 16
        %v634 = vadd.s32 %v631, 24
        %v635 = vadd.s32 %v631, 32
        %v636 = vadd.s32 %v631, 40
        %v637 = vadd.s32 %v631, 48
        %v638 = vadd.s32 %v631, 56
        %v639 = vadd.s32 %v631, 64
        %v640 = vadd.s32 %v631, 72
        %v641 = vadd.s32 %v631, 80
        %v642 = vadd.s32 %v631, 88
        %v643 = vadd.s32 %v631, 96
        %v644 = vstv %s629
        %v645 = vadd.s32 %v644, %v631
        %v646 = vadd.s32 %v644, %v632
        %v647 = vadd.s32 %v644, %v633
        %v648 = vadd.s32 %v644, %v634
        %v649 = vadd.s32 %v644, %v635
        %v650 = vadd.s32 %v644, %v636
        %v651 = vadd.s32 %v644, %v637
        %v652 = vadd.s32 %v644, %v638
        %v653 = vadd.s32 %v644, %v639
        %v654 = vadd.s32 %v644, %v640
        %v655 = vadd.s32 %v644, %v641
        %v656 = vadd.s32 %v644, %v642
        %v657 = vadd.s32 %v644, %v643
        %vm658 = vcmp.lt.s32.totalorder %v645, 200
        %vm659 = vcmp.lt.s32.totalorder %v646, 200
        %vm660 = vcmp.lt.s32.totalorder %v647, 200
        %vm661 = vcmp.lt.s32.totalorder %v648, 200
        %vm662 = vcmp.lt.s32.totalorder %v649, 200
        %vm663 = vcmp.lt.s32.totalorder %v650, 200
        %vm664 = vcmp.lt.s32.totalorder %v651, 200
        %vm665 = vcmp.lt.s32.totalorder %v652, 200
        %vm666 = vcmp.lt.s32.totalorder %v653, 200
        %vm667 = vcmp.lt.s32.totalorder %v654, 200
        %vm668 = vcmp.lt.s32.totalorder %v655, 200
        %vm669 = vcmp.lt.s32.totalorder %v656, 200
        %vm670 = vcmp.lt.s32.totalorder %v657, 200
        %vm671 = vmpackc.low %vm658, %vm658
        %vm672 = vmpackc.low %vm659, %vm659
        %vm673 = vmpackc.low %vm660, %vm660
        %vm674 = vmpackc.low %vm661, %vm661
        %vm675 = vmpackc.low %vm662, %vm662
        %vm676 = vmpackc.low %vm663, %vm663
        %vm677 = vmpackc.low %vm664, %vm664
        %vm678 = vmpackc.low %vm665, %vm665
        %vm679 = vmpackc.low %vm666, %vm666
        %vm680 = vmpackc.low %vm667, %vm667
        %vm681 = vmpackc.low %vm668, %vm668
        %vm682 = vmpackc.low %vm669, %vm669
        %vm683 = vmpackc.low %vm670, %vm670
        %v684 = vsel %vm671, %v590, 0
        %v685 = vsel %vm672, %v591, 0
        %v686 = vsel %vm673, %v592, 0
        %v687 = vsel %vm674, %v593, 0
        %v688 = vsel %vm675, %v594, 0
        %v689 = vsel %vm676, %v595, 0
        %v690 = vsel %vm677, %v596, 0
        %v691 = vsel %vm678, %v597, 0
        %v692 = vsel %vm679, %v598, 0
        %v693 = vsel %vm680, %v599, 0
        %v694 = vsel %vm681, %v600, 0
        %v695 = vsel %vm682, %v601, 0
        %v696 = vsel %vm683, %v602, 0
        %v697 = vsel %vm671, %v603, 0
        %v698 = vsel %vm672, %v604, 0
        %v699 = vsel %vm673, %v605, 0
        %v700 = vsel %vm674, %v606, 0
        %v701 = vsel %vm675, %v607, 0
        %v702 = vsel %vm676, %v608, 0
        %v703 = vsel %vm677, %v609, 0
        %v704 = vsel %vm678, %v610, 0
        %v705 = vsel %vm679, %v611, 0
        %v706 = vsel %vm680, %v612, 0
        %v707 = vsel %vm681, %v613, 0
        %v708 = vsel %vm682, %v614, 0
        %v709 = vsel %vm683, %v615, 0
        %v710 = vsel %vm671, %v616, 0
        %v711 = vsel %vm672, %v617, 0
        %v712 = vsel %vm673, %v618, 0
        %v713 = vsel %vm674, %v619, 0
        %v714 = vsel %vm675, %v620, 0
        %v715 = vsel %vm676, %v621, 0
        %v716 = vsel %vm677, %v622, 0
        %v717 = vsel %vm678, %v623, 0
        %v718 = vsel %vm679, %v624, 0
        %v719 = vsel %vm680, %v625, 0
        %v720 = vsel %vm681, %v626, 0
        %v721 = vsel %vm682, %v627, 0
        %v722 = vsel %vm683, %v628, 0
        %v723 = vld [vmem:[%s3] sm:$0xff]
        %v724 = vld [vmem:[%s3 + $0x8] sm:$0xff]
        %v725 = vld [vmem:[%s3 + $0x10] sm:$0xff]
        %v726 = vld [vmem:[%s3 + $0x18] sm:$0xff]
        %v727 = vld [vmem:[%s3 + $0x20] sm:$0xff]
        %v728 = vld [vmem:[%s3 + $0x28] sm:$0xff]
        %v729 = vld [vmem:[%s3 + $0x30] sm:$0xff]
        %v730 = vld [vmem:[%s3 + $0x38] sm:$0xff]
        %v731 = vld [vmem:[%s4] sm:$0xff]
        %v732 = vld [vmem:[%s4 + $0x8] sm:$0xff]
        %v733 = vld [vmem:[%s4 + $0x10] sm:$0xff]
        %v734 = vld [vmem:[%s4 + $0x18] sm:$0xff]
        %v735 = vld [vmem:[%s4 + $0x20] sm:$0xff]
        %v736 = vld [vmem:[%s4 + $0x28] sm:$0xff]
        %v737 = vld [vmem:[%s4 + $0x30] sm:$0xff]
        %v738 = vld [vmem:[%s4 + $0x38] sm:$0xff]
        %v752 = vunpack.c.l.b16 %v697
        %v753 = vunpack.c.l.b16 %v698
        %v754 = vunpack.c.l.b16 %v699
        %v755 = vunpack.c.l.b16 %v700
        %v756 = vunpack.c.l.b16 %v701
        %v757 = vunpack.c.l.b16 %v702
        %v758 = vunpack.c.l.b16 %v703
        %v759 = vunpack.c.l.b16 %v704
        %v760 = vunpack.c.l.b16 %v705
        %v761 = vunpack.c.l.b16 %v706
        %v762 = vunpack.c.l.b16 %v707
        %v763 = vunpack.c.l.b16 %v708
        %v764 = vunpack.c.l.b16 %v709
        %v765 = vpack.c.b16 %v753, %v752
        %v766 = vpack.c.b16 %v755, %v754
        %v767 = vpack.c.b16 %v757, %v756
        %v768 = vpack.c.b16 %v759, %v758
        %v769 = vpack.c.b16 %v761, %v760
        %v770 = vpack.c.b16 %v763, %v762
        %v771 = vpack.c.b16 %v764, %v764
        %v780 = vunpack.c.l.b16 %v731
        %v781 = vunpack.c.h.b16 %v731
        %v782 = vunpack.c.l.b16 %v732
        %v783 = vunpack.c.h.b16 %v732
        %v784 = vunpack.c.l.b16 %v733
        %v785 = vunpack.c.h.b16 %v733
        %v786 = vunpack.c.l.b16 %v734
        %v787 = vunpack.c.h.b16 %v734
        %v788 = vunpack.c.l.b16 %v735
        %v789 = vunpack.c.h.b16 %v735
        %v790 = vunpack.c.l.b16 %v736
        %v791 = vunpack.c.h.b16 %v736
        %v792 = vunpack.c.l.b16 %v737
        %v793 = vunpack.c.h.b16 %v737
        %v794 = vunpack.c.l.b16 %v738
        %v795 = vunpack.c.h.b16 %v738
        %v796 = vpack.c.b16 %v782, %v780
        %v797 = vpack.c.b16 %v783, %v781
        %v798 = vpack.c.b16 %v786, %v784
        %v799 = vpack.c.b16 %v787, %v785
        %v800 = vpack.c.b16 %v790, %v788
        %v801 = vpack.c.b16 %v791, %v789
        %v802 = vpack.c.b16 %v794, %v792
        %v803 = vpack.c.b16 %v795, %v793
        %vm812 = vcmask 523264
        %v814 = vsel %vm812, %v765, 0
        %v817 = vsel %vm812, %v766, 0
        %v820 = vsel %vm812, %v767, 0
        %v823 = vsel %vm812, %v768, 0
        %v826 = vsel %vm812, %v769, 0
        %v829 = vsel %vm812, %v770, 0
        %v832 = vsel %vm812, %v771, 0
        %834 = vmatprep.subr.bf16.mxu0 0
        %835 = vmatpush1.bf16.msra.mxu0 0
        %836 = vmatprep.subr.bf16.mxu0 0
        %837 = vmatpush1.bf16.msra.mxu0 0
        %838 = vmatprep.subr.bf16.mxu0 0
        %839 = vmatpush1.bf16.msra.mxu0 0
        %840 = vmatprep.subr.bf16.mxu0 0
        %841 = vmatpush1.bf16.msra.mxu0 0
        %842 = vmatprep.subr.bf16.mxu0 %v803
        %843 = vmatpush1.bf16.msra.mxu0 %v802
        %844 = vmatprep.subr.bf16.mxu0 %v801
        %845 = vmatpush1.bf16.msra.mxu0 %v800
        %846 = vmatprep.subr.bf16.mxu0 %v799
        %847 = vmatpush1.bf16.msra.mxu0 %v798
        %848 = vmatprep.subr.bf16.mxu0 %v797
        %849 = vmatpush1.bf16.msra.mxu0 %v796
        %850 = vmatprep.subr.bf16.mxu0 0
        %851 = vmatpush2.bf16.msra.mxu0 0
        %852 = vmatprep.subr.bf16.mxu0 0
        %853 = vmatpush2.bf16.msra.mxu0 0
        %854 = vmatprep.subr.bf16.mxu0 0
        %855 = vmatpush2.bf16.msra.mxu0 0
        %856 = vmatprep.subr.bf16.mxu0 0
        %857 = vmatpush2.bf16.msra.mxu0 0
        %858 = vmatprep.subr.bf16.mxu0 0
        %859 = vmatpush2.bf16.msra.mxu0 0
        %860 = vmatprep.subr.bf16.mxu0 0
        %861 = vmatpush2.bf16.msra.mxu0 0
        %862 = vmatprep.subr.bf16.mxu0 0
        %863 = vmatpush2.bf16.msra.mxu0 0
        %864 = vmatprep.subr.bf16.mxu0 0
        %865 = vmatpush2.bf16.msra.mxu0 0
        %866 = vmatprep.mubr.bf16.mxu0 0
        %867 = vmatmul.mubr.bf16.gmra.mxu0 %v814
        %v868 = vpop.f32.mrf.mxu0
        %v869 = vadd.f32 0.0, %v868
        %v870 = vpop.f32.mrf.mxu0
        %v871 = vadd.f32 0.0, %v870
        %v872 = vpop.f32.mrf.mxu0
        %v873 = vadd.f32 0.0, %v872
        %v874 = vpop.f32.mrf.mxu0
        %v875 = vadd.f32 0.0, %v874
        %876 = vmatprep.mubr.bf16.mxu0 0
        %877 = vmatmul.mubr.bf16.gmra.mxu0 %v817
        %v878 = vpop.f32.mrf.mxu0
        %v879 = vadd.f32 0.0, %v878
        %v880 = vpop.f32.mrf.mxu0
        %v881 = vadd.f32 0.0, %v880
        %v882 = vpop.f32.mrf.mxu0
        %v883 = vadd.f32 0.0, %v882
        %v884 = vpop.f32.mrf.mxu0
        %v885 = vadd.f32 0.0, %v884
        %886 = vmatprep.mubr.bf16.mxu0 0
        %887 = vmatmul.mubr.bf16.gmra.mxu0 %v820
        %v888 = vpop.f32.mrf.mxu0
        %v889 = vadd.f32 0.0, %v888
        %v890 = vpop.f32.mrf.mxu0
        %v891 = vadd.f32 0.0, %v890
        %v892 = vpop.f32.mrf.mxu0
        %v893 = vadd.f32 0.0, %v892
        %v894 = vpop.f32.mrf.mxu0
        %v895 = vadd.f32 0.0, %v894
        %896 = vmatprep.mubr.bf16.mxu0 0
        %897 = vmatmul.mubr.bf16.gmra.mxu0 %v823
        %v898 = vpop.f32.mrf.mxu0
        %v899 = vadd.f32 0.0, %v898
        %v900 = vpop.f32.mrf.mxu0
        %v901 = vadd.f32 0.0, %v900
        %v902 = vpop.f32.mrf.mxu0
        %v903 = vadd.f32 0.0, %v902
        %v904 = vpop.f32.mrf.mxu0
        %v905 = vadd.f32 0.0, %v904
        %906 = vmatprep.mubr.bf16.mxu0 0
        %907 = vmatmul.mubr.bf16.gmra.mxu0 %v826
        %v908 = vpop.f32.mrf.mxu0
        %v909 = vadd.f32 0.0, %v908
        %v910 = vpop.f32.mrf.mxu0
        %v911 = vadd.f32 0.0, %v910
        %v912 = vpop.f32.mrf.mxu0
        %v913 = vadd.f32 0.0, %v912
        %v914 = vpop.f32.mrf.mxu0
        %v915 = vadd.f32 0.0, %v914
        %916 = vmatprep.mubr.bf16.mxu0 0
        %917 = vmatmul.mubr.bf16.gmra.mxu0 %v829
        %v918 = vpop.f32.mrf.mxu0
        %v919 = vadd.f32 0.0, %v918
        %v920 = vpop.f32.mrf.mxu0
        %v921 = vadd.f32 0.0, %v920
        %v922 = vpop.f32.mrf.mxu0
        %v923 = vadd.f32 0.0, %v922
        %v924 = vpop.f32.mrf.mxu0
        %v925 = vadd.f32 0.0, %v924
        %926 = vmatprep.mubr.bf16.mxu0 0
        %927 = vmatmul.mubr.bf16.gmra.mxu0 %v832
        %v928 = vpop.f32.mrf.mxu0
        %v929 = vadd.f32 0.0, %v928
        %v930 = vpop.f32.mrf.mxu0
        %v931 = vadd.f32 0.0, %v930
        %v932 = vpop.f32.mrf.mxu0
        %v933 = vpop.f32.mrf.mxu0
        %934 = vdwg.mxu0
        %v948 = vunpack.c.l.b16 %v684
        %v949 = vunpack.c.l.b16 %v685
        %v950 = vunpack.c.l.b16 %v686
        %v951 = vunpack.c.l.b16 %v687
        %v952 = vunpack.c.l.b16 %v688
        %v953 = vunpack.c.l.b16 %v689
        %v954 = vunpack.c.l.b16 %v690
        %v955 = vunpack.c.l.b16 %v691
        %v956 = vunpack.c.l.b16 %v692
        %v957 = vunpack.c.l.b16 %v693
        %v958 = vunpack.c.l.b16 %v694
        %v959 = vunpack.c.l.b16 %v695
        %v960 = vunpack.c.l.b16 %v696
        %v961 = vpack.c.b16 %v949, %v948
        %v962 = vpack.c.b16 %v951, %v950
        %v963 = vpack.c.b16 %v953, %v952
        %v964 = vpack.c.b16 %v955, %v954
        %v965 = vpack.c.b16 %v957, %v956
        %v966 = vpack.c.b16 %v959, %v958
        %v967 = vpack.c.b16 %v960, %v960
        %v976 = vunpack.c.l.b16 %v723
        %v977 = vunpack.c.h.b16 %v723
        %v978 = vunpack.c.l.b16 %v724
        %v979 = vunpack.c.h.b16 %v724
        %v980 = vunpack.c.l.b16 %v725
        %v981 = vunpack.c.h.b16 %v725
        %v982 = vunpack.c.l.b16 %v726
        %v983 = vunpack.c.h.b16 %v726
        %v984 = vunpack.c.l.b16 %v727
        %v985 = vunpack.c.h.b16 %v727
        %v986 = vunpack.c.l.b16 %v728
        %v987 = vunpack.c.h.b16 %v728
        %v988 = vunpack.c.l.b16 %v729
        %v989 = vunpack.c.h.b16 %v729
        %v990 = vunpack.c.l.b16 %v730
        %v991 = vunpack.c.h.b16 %v730
        %v992 = vpack.c.b16 %v978, %v976
        %v993 = vpack.c.b16 %v979, %v977
        %v994 = vpack.c.b16 %v982, %v980
        %v995 = vpack.c.b16 %v983, %v981
        %v996 = vpack.c.b16 %v986, %v984
        %v997 = vpack.c.b16 %v987, %v985
        %v998 = vpack.c.b16 %v990, %v988
        %v999 = vpack.c.b16 %v991, %v989
        %v1009 = vsel %vm812, %v961, 0
        %v1012 = vsel %vm812, %v962, 0
        %v1015 = vsel %vm812, %v963, 0
        %v1018 = vsel %vm812, %v964, 0
        %v1021 = vsel %vm812, %v965, 0
        %v1024 = vsel %vm812, %v966, 0
        %v1027 = vsel %vm812, %v967, 0
        %1029 = vmatprep.subr.bf16.mxu0 0
        %1030 = vmatpush1.bf16.msra.mxu0 0
        %1031 = vmatprep.subr.bf16.mxu0 0
        %1032 = vmatpush1.bf16.msra.mxu0 0
        %1033 = vmatprep.subr.bf16.mxu0 0
        %1034 = vmatpush1.bf16.msra.mxu0 0
        %1035 = vmatprep.subr.bf16.mxu0 0
        %1036 = vmatpush1.bf16.msra.mxu0 0
        %1037 = vmatprep.subr.bf16.mxu0 %v999
        %1038 = vmatpush1.bf16.msra.mxu0 %v998
        %1039 = vmatprep.subr.bf16.mxu0 %v997
        %1040 = vmatpush1.bf16.msra.mxu0 %v996
        %1041 = vmatprep.subr.bf16.mxu0 %v995
        %1042 = vmatpush1.bf16.msra.mxu0 %v994
        %1043 = vmatprep.subr.bf16.mxu0 %v993
        %1044 = vmatpush1.bf16.msra.mxu0 %v992
        %1045 = vmatprep.subr.bf16.mxu0 0
        %1046 = vmatpush2.bf16.msra.mxu0 0
        %1047 = vmatprep.subr.bf16.mxu0 0
        %1048 = vmatpush2.bf16.msra.mxu0 0
        %1049 = vmatprep.subr.bf16.mxu0 0
        %1050 = vmatpush2.bf16.msra.mxu0 0
        %1051 = vmatprep.subr.bf16.mxu0 0
        %1052 = vmatpush2.bf16.msra.mxu0 0
        %1053 = vmatprep.subr.bf16.mxu0 0
        %1054 = vmatpush2.bf16.msra.mxu0 0
        %1055 = vmatprep.subr.bf16.mxu0 0
        %1056 = vmatpush2.bf16.msra.mxu0 0
        %1057 = vmatprep.subr.bf16.mxu0 0
        %1058 = vmatpush2.bf16.msra.mxu0 0
        %1059 = vmatprep.subr.bf16.mxu0 0
        %1060 = vmatpush2.bf16.msra.mxu0 0
        %1061 = vmatprep.mubr.bf16.mxu0 0
        %1062 = vmatmul.mubr.bf16.gmra.mxu0 %v1009
        %v1063 = vpop.f32.mrf.mxu0
        %v1064 = vadd.f32 %v869, %v1063
        %v1065 = vpop.f32.mrf.mxu0
        %v1066 = vadd.f32 %v871, %v1065
        %v1067 = vpop.f32.mrf.mxu0
        %v1068 = vadd.f32 %v873, %v1067
        %v1069 = vpop.f32.mrf.mxu0
        %v1070 = vadd.f32 %v875, %v1069
        %1071 = vmatprep.mubr.bf16.mxu0 0
        %1072 = vmatmul.mubr.bf16.gmra.mxu0 %v1012
        %v1073 = vpop.f32.mrf.mxu0
        %v1074 = vadd.f32 %v879, %v1073
        %v1075 = vpop.f32.mrf.mxu0
        %v1076 = vadd.f32 %v881, %v1075
        %v1077 = vpop.f32.mrf.mxu0
        %v1078 = vadd.f32 %v883, %v1077
        %v1079 = vpop.f32.mrf.mxu0
        %v1080 = vadd.f32 %v885, %v1079
        %1081 = vmatprep.mubr.bf16.mxu0 0
        %1082 = vmatmul.mubr.bf16.gmra.mxu0 %v1015
        %v1083 = vpop.f32.mrf.mxu0
        %v1084 = vadd.f32 %v889, %v1083
        %v1085 = vpop.f32.mrf.mxu0
        %v1086 = vadd.f32 %v891, %v1085
        %v1087 = vpop.f32.mrf.mxu0
        %v1088 = vadd.f32 %v893, %v1087
        %v1089 = vpop.f32.mrf.mxu0
        %v1090 = vadd.f32 %v895, %v1089
        %1091 = vmatprep.mubr.bf16.mxu0 0
        %1092 = vmatmul.mubr.bf16.gmra.mxu0 %v1018
        %v1093 = vpop.f32.mrf.mxu0
        %v1094 = vadd.f32 %v899, %v1093
        %v1095 = vpop.f32.mrf.mxu0
        %v1096 = vadd.f32 %v901, %v1095
        %v1097 = vpop.f32.mrf.mxu0
        %v1098 = vadd.f32 %v903, %v1097
        %v1099 = vpop.f32.mrf.mxu0
        %v1100 = vadd.f32 %v905, %v1099
        %1101 = vmatprep.mubr.bf16.mxu0 0
        %1102 = vmatmul.mubr.bf16.gmra.mxu0 %v1021
        %v1103 = vpop.f32.mrf.mxu0
        %v1104 = vadd.f32 %v909, %v1103
        %v1105 = vpop.f32.mrf.mxu0
        %v1106 = vadd.f32 %v911, %v1105
        %v1107 = vpop.f32.mrf.mxu0
        %v1108 = vadd.f32 %v913, %v1107
        %v1109 = vpop.f32.mrf.mxu0
        %v1110 = vadd.f32 %v915, %v1109
        %1111 = vmatprep.mubr.bf16.mxu0 0
        %1112 = vmatmul.mubr.bf16.gmra.mxu0 %v1024
        %v1113 = vpop.f32.mrf.mxu0
        %v1114 = vadd.f32 %v919, %v1113
        %v1115 = vpop.f32.mrf.mxu0
        %v1116 = vadd.f32 %v921, %v1115
        %v1117 = vpop.f32.mrf.mxu0
        %v1118 = vadd.f32 %v923, %v1117
        %v1119 = vpop.f32.mrf.mxu0
        %v1120 = vadd.f32 %v925, %v1119
        %1121 = vmatprep.mubr.bf16.mxu0 0
        %1122 = vmatmul.mubr.bf16.gmra.mxu0 %v1027
        %v1123 = vpop.f32.mrf.mxu0
        %v1124 = vadd.f32 %v929, %v1123
        %v1125 = vpop.f32.mrf.mxu0
        %v1126 = vadd.f32 %v931, %v1125
        %v1127 = vpop.f32.mrf.mxu0
        %v1128 = vpop.f32.mrf.mxu0
        %1129 = vdwg.mxu0
        %v1130 = vld [vmem:[%s6] ss:$8 sm:$0x3]
        %v1132 = vlaneseq
        %v1133 = vshrl.u32 %v1132, 7
        %v1134 = vsub.s32 0, %v1133
        %v1135 = vrot.slane %v1130, %v1134
        %v1136 = vlaneseq
        %v1137 = vshrl.u32 %v1136, 7
        %v1138 = vsub.s32 1, %v1137
        %v1139 = vrot.slane %v1130, %v1138
        %v1142 = vadd.f32 %v1064, %v1135
        %v1143 = vadd.f32 %v1066, %v1139
        %v1144 = vadd.f32 %v1068, %v1135
        %v1145 = vadd.f32 %v1070, %v1139
        %v1146 = vadd.f32 %v1074, %v1135
        %v1147 = vadd.f32 %v1076, %v1139
        %v1148 = vadd.f32 %v1078, %v1135
        %v1149 = vadd.f32 %v1080, %v1139
        %v1150 = vadd.f32 %v1084, %v1135
        %v1151 = vadd.f32 %v1086, %v1139
        %v1152 = vadd.f32 %v1088, %v1135
        %v1153 = vadd.f32 %v1090, %v1139
        %v1154 = vadd.f32 %v1094, %v1135
        %v1155 = vadd.f32 %v1096, %v1139
        %v1156 = vadd.f32 %v1098, %v1135
        %v1157 = vadd.f32 %v1100, %v1139
        %v1158 = vadd.f32 %v1104, %v1135
        %v1159 = vadd.f32 %v1106, %v1139
        %v1160 = vadd.f32 %v1108, %v1135
        %v1161 = vadd.f32 %v1110, %v1139
        %v1162 = vadd.f32 %v1114, %v1135
        %v1163 = vadd.f32 %v1116, %v1139
        %v1164 = vadd.f32 %v1118, %v1135
        %v1165 = vadd.f32 %v1120, %v1139
        %v1166 = vadd.f32 %v1124, %v1135
        %v1167 = vadd.f32 %v1126, %v1139
        %v1168 = vld [vmem:[%s7] ss:$8 sm:$0x3]
        %v1169 = vld [vmem:[%s8] ss:$8 sm:$0x3]
        %v1170 = vadd.f32 %v1142, %v1143
        %1171 = vadd.xlane.f32.xlu0 %v1170
        %v1172 = vpop.xlane.xlu0 %1171
        %v1173 = vadd.f32 %v1144, %v1145
        %1174 = vadd.xlane.f32.xlu0 %v1173
        %v1175 = vpop.xlane.xlu0 %1174
        %v1176 = vadd.f32 %v1146, %v1147
        %1177 = vadd.xlane.f32.xlu0 %v1176
        %v1178 = vpop.xlane.xlu0 %1177
        %v1179 = vadd.f32 %v1148, %v1149
        %1180 = vadd.xlane.f32.xlu0 %v1179
        %v1181 = vpop.xlane.xlu0 %1180
        %v1182 = vadd.f32 %v1150, %v1151
        %1183 = vadd.xlane.f32.xlu0 %v1182
        %v1184 = vpop.xlane.xlu0 %1183
        %v1185 = vadd.f32 %v1152, %v1153
        %1186 = vadd.xlane.f32.xlu0 %v1185
        %v1187 = vpop.xlane.xlu0 %1186
        %v1188 = vadd.f32 %v1154, %v1155
        %1189 = vadd.xlane.f32.xlu0 %v1188
        %v1190 = vpop.xlane.xlu0 %1189
        %v1191 = vadd.f32 %v1156, %v1157
        %1192 = vadd.xlane.f32.xlu0 %v1191
        %v1193 = vpop.xlane.xlu0 %1192
        %v1194 = vadd.f32 %v1158, %v1159
        %1195 = vadd.xlane.f32.xlu0 %v1194
        %v1196 = vpop.xlane.xlu0 %1195
        %v1197 = vadd.f32 %v1160, %v1161
        %1198 = vadd.xlane.f32.xlu0 %v1197
        %v1199 = vpop.xlane.xlu0 %1198
        %v1200 = vadd.f32 %v1162, %v1163
        %1201 = vadd.xlane.f32.xlu0 %v1200
        %v1202 = vpop.xlane.xlu0 %1201
        %v1203 = vadd.f32 %v1164, %v1165
        %1204 = vadd.xlane.f32.xlu0 %v1203
        %v1205 = vpop.xlane.xlu0 %1204
        %v1206 = vadd.f32 %v1166, %v1167
        %1207 = vadd.xlane.f32.xlu0 %v1206
        %v1208 = vpop.xlane.xlu0 %1207
        %v1209 = vrcp.pop 256.0
        %v1210 = vmul.f32 %v1172, %v1209
        %v1211 = vmul.f32 %v1175, %v1209
        %v1212 = vmul.f32 %v1178, %v1209
        %v1213 = vmul.f32 %v1181, %v1209
        %v1214 = vmul.f32 %v1184, %v1209
        %v1215 = vmul.f32 %v1187, %v1209
        %v1216 = vmul.f32 %v1190, %v1209
        %v1217 = vmul.f32 %v1193, %v1209
        %v1218 = vmul.f32 %v1196, %v1209
        %v1219 = vmul.f32 %v1199, %v1209
        %v1220 = vmul.f32 %v1202, %v1209
        %v1221 = vmul.f32 %v1205, %v1209
        %v1222 = vmul.f32 %v1208, %v1209
        %v1223 = vmul.f32 %v1142, %v1142
        %v1224 = vmul.f32 %v1143, %v1143
        %v1225 = vmul.f32 %v1144, %v1144
        %v1226 = vmul.f32 %v1145, %v1145
        %v1227 = vmul.f32 %v1146, %v1146
        %v1228 = vmul.f32 %v1147, %v1147
        %v1229 = vmul.f32 %v1148, %v1148
        %v1230 = vmul.f32 %v1149, %v1149
        %v1231 = vmul.f32 %v1150, %v1150
        %v1232 = vmul.f32 %v1151, %v1151
        %v1233 = vmul.f32 %v1152, %v1152
        %v1234 = vmul.f32 %v1153, %v1153
        %v1235 = vmul.f32 %v1154, %v1154
        %v1236 = vmul.f32 %v1155, %v1155
        %v1237 = vmul.f32 %v1156, %v1156
        %v1238 = vmul.f32 %v1157, %v1157
        %v1239 = vmul.f32 %v1158, %v1158
        %v1240 = vmul.f32 %v1159, %v1159
        %v1241 = vmul.f32 %v1160, %v1160
        %v1242 = vmul.f32 %v1161, %v1161
        %v1243 = vmul.f32 %v1162, %v1162
        %v1244 = vmul.f32 %v1163, %v1163
        %v1245 = vmul.f32 %v1164, %v1164
        %v1246 = vmul.f32 %v1165, %v1165
        %v1247 = vmul.f32 %v1166, %v1166
        %v1248 = vmul.f32 %v1167, %v1167
        %v1249 = vadd.f32 %v1223, %v1224
        %1250 = vadd.xlane.f32.xlu0 %v1249
        %v1251 = vpop.xlane.xlu0 %1250
        %v1252 = vadd.f32 %v1225, %v1226
        %1253 = vadd.xlane.f32.xlu0 %v1252
        %v1254 = vpop.xlane.xlu0 %1253
        %v1255 = vadd.f32 %v1227, %v1228
        %1256 = vadd.xlane.f32.xlu0 %v1255
        %v1257 = vpop.xlane.xlu0 %1256
        %v1258 = vadd.f32 %v1229, %v1230
        %1259 = vadd.xlane.f32.xlu0 %v1258
        %v1260 = vpop.xlane.xlu0 %1259
        %v1261 = vadd.f32 %v1231, %v1232
        %1262 = vadd.xlane.f32.xlu0 %v1261
        %v1263 = vpop.xlane.xlu0 %1262
        %v1264 = vadd.f32 %v1233, %v1234
        %1265 = vadd.xlane.f32.xlu0 %v1264
        %v1266 = vpop.xlane.xlu0 %1265
        %v1267 = vadd.f32 %v1235, %v1236
        %1268 = vadd.xlane.f32.xlu0 %v1267
        %v1269 = vpop.xlane.xlu0 %1268
        %v1270 = vadd.f32 %v1237, %v1238
        %1271 = vadd.xlane.f32.xlu0 %v1270
        %v1272 = vpop.xlane.xlu0 %1271
        %v1273 = vadd.f32 %v1239, %v1240
        %1274 = vadd.xlane.f32.xlu0 %v1273
        %v1275 = vpop.xlane.xlu0 %1274
        %v1276 = vadd.f32 %v1241, %v1242
        %1277 = vadd.xlane.f32.xlu0 %v1276
        %v1278 = vpop.xlane.xlu0 %1277
        %v1279 = vadd.f32 %v1243, %v1244
        %1280 = vadd.xlane.f32.xlu0 %v1279
        %v1281 = vpop.xlane.xlu0 %1280
        %v1282 = vadd.f32 %v1245, %v1246
        %1283 = vadd.xlane.f32.xlu0 %v1282
        %v1284 = vpop.xlane.xlu0 %1283
        %v1285 = vadd.f32 %v1247, %v1248
        %1286 = vadd.xlane.f32.xlu0 %v1285
        %v1287 = vpop.xlane.xlu0 %1286
        %v1288 = vmul.f32 %v1251, %v1209
        %v1289 = vmul.f32 %v1254, %v1209
        %v1290 = vmul.f32 %v1257, %v1209
        %v1291 = vmul.f32 %v1260, %v1209
        %v1292 = vmul.f32 %v1263, %v1209
        %v1293 = vmul.f32 %v1266, %v1209
        %v1294 = vmul.f32 %v1269, %v1209
        %v1295 = vmul.f32 %v1272, %v1209
        %v1296 = vmul.f32 %v1275, %v1209
        %v1297 = vmul.f32 %v1278, %v1209
        %v1298 = vmul.f32 %v1281, %v1209
        %v1299 = vmul.f32 %v1284, %v1209
        %v1300 = vmul.f32 %v1287, %v1209
        %v1301 = vmul.f32 %v1210, %v1210
        %v1302 = vmul.f32 %v1211, %v1211
        %v1303 = vmul.f32 %v1212, %v1212
        %v1304 = vmul.f32 %v1213, %v1213
        %v1305 = vmul.f32 %v1214, %v1214
        %v1306 = vmul.f32 %v1215, %v1215
        %v1307 = vmul.f32 %v1216, %v1216
        %v1308 = vmul.f32 %v1217, %v1217
        %v1309 = vmul.f32 %v1218, %v1218
        %v1310 = vmul.f32 %v1219, %v1219
        %v1311 = vmul.f32 %v1220, %v1220
        %v1312 = vmul.f32 %v1221, %v1221
        %v1313 = vmul.f32 %v1222, %v1222
        %v1314 = vsub.f32 %v1288, %v1301
        %v1315 = vsub.f32 %v1289, %v1302
        %v1316 = vsub.f32 %v1290, %v1303
        %v1317 = vsub.f32 %v1291, %v1304
        %v1318 = vsub.f32 %v1292, %v1305
        %v1319 = vsub.f32 %v1293, %v1306
        %v1320 = vsub.f32 %v1294, %v1307
        %v1321 = vsub.f32 %v1295, %v1308
        %v1322 = vsub.f32 %v1296, %v1309
        %v1323 = vsub.f32 %v1297, %v1310
        %v1324 = vsub.f32 %v1298, %v1311
        %v1325 = vsub.f32 %v1299, %v1312
        %v1326 = vsub.f32 %v1300, %v1313
        %v1327 = vmax.f32 %v1314, 0.0
        %v1328 = vmax.f32 %v1315, 0.0
        %v1329 = vmax.f32 %v1316, 0.0
        %v1330 = vmax.f32 %v1317, 0.0
        %v1331 = vmax.f32 %v1318, 0.0
        %v1332 = vmax.f32 %v1319, 0.0
        %v1333 = vmax.f32 %v1320, 0.0
        %v1334 = vmax.f32 %v1321, 0.0
        %v1335 = vmax.f32 %v1322, 0.0
        %v1336 = vmax.f32 %v1323, 0.0
        %v1337 = vmax.f32 %v1324, 0.0
        %v1338 = vmax.f32 %v1325, 0.0
        %v1339 = vmax.f32 %v1326, 0.0
        %v1340 = vsub.f32 %v1142, %v1210
        %v1341 = vsub.f32 %v1143, %v1210
        %v1342 = vsub.f32 %v1144, %v1211
        %v1343 = vsub.f32 %v1145, %v1211
        %v1344 = vsub.f32 %v1146, %v1212
        %v1345 = vsub.f32 %v1147, %v1212
        %v1346 = vsub.f32 %v1148, %v1213
        %v1347 = vsub.f32 %v1149, %v1213
        %v1348 = vsub.f32 %v1150, %v1214
        %v1349 = vsub.f32 %v1151, %v1214
        %v1350 = vsub.f32 %v1152, %v1215
        %v1351 = vsub.f32 %v1153, %v1215
        %v1352 = vsub.f32 %v1154, %v1216
        %v1353 = vsub.f32 %v1155, %v1216
        %v1354 = vsub.f32 %v1156, %v1217
        %v1355 = vsub.f32 %v1157, %v1217
        %v1356 = vsub.f32 %v1158, %v1218
        %v1357 = vsub.f32 %v1159, %v1218
        %v1358 = vsub.f32 %v1160, %v1219
        %v1359 = vsub.f32 %v1161, %v1219
        %v1360 = vsub.f32 %v1162, %v1220
        %v1361 = vsub.f32 %v1163, %v1220
        %v1362 = vsub.f32 %v1164, %v1221
        %v1363 = vsub.f32 %v1165, %v1221
        %v1364 = vsub.f32 %v1166, %v1222
        %v1365 = vsub.f32 %v1167, %v1222
        %v1366 = vadd.f32 %v1327, 1e-05
        %v1367 = vadd.f32 %v1328, 1e-05
        %v1368 = vadd.f32 %v1329, 1e-05
        %v1369 = vadd.f32 %v1330, 1e-05
        %v1370 = vadd.f32 %v1331, 1e-05
        %v1371 = vadd.f32 %v1332, 1e-05
        %v1372 = vadd.f32 %v1333, 1e-05
        %v1373 = vadd.f32 %v1334, 1e-05
        %v1374 = vadd.f32 %v1335, 1e-05
        %v1375 = vadd.f32 %v1336, 1e-05
        %v1376 = vadd.f32 %v1337, 1e-05
        %v1377 = vadd.f32 %v1338, 1e-05
        %v1378 = vadd.f32 %v1339, 1e-05
        %v1379 = vrsqrt.pop %v1366
        %v1380 = vrsqrt.pop %v1367
        %v1381 = vrsqrt.pop %v1368
        %v1382 = vrsqrt.pop %v1369
        %v1383 = vrsqrt.pop %v1370
        %v1384 = vrsqrt.pop %v1371
        %v1385 = vrsqrt.pop %v1372
        %v1386 = vrsqrt.pop %v1373
        %v1387 = vrsqrt.pop %v1374
        %v1388 = vrsqrt.pop %v1375
        %v1389 = vrsqrt.pop %v1376
        %v1390 = vrsqrt.pop %v1377
        %v1391 = vrsqrt.pop %v1378
        %v1392 = vmul.f32 %v1340, %v1379
        %v1393 = vmul.f32 %v1341, %v1379
        %v1394 = vmul.f32 %v1342, %v1380
        %v1395 = vmul.f32 %v1343, %v1380
        %v1396 = vmul.f32 %v1344, %v1381
        %v1397 = vmul.f32 %v1345, %v1381
        %v1398 = vmul.f32 %v1346, %v1382
        %v1399 = vmul.f32 %v1347, %v1382
        %v1400 = vmul.f32 %v1348, %v1383
        %v1401 = vmul.f32 %v1349, %v1383
        %v1402 = vmul.f32 %v1350, %v1384
        %v1403 = vmul.f32 %v1351, %v1384
        %v1404 = vmul.f32 %v1352, %v1385
        %v1405 = vmul.f32 %v1353, %v1385
        %v1406 = vmul.f32 %v1354, %v1386
        %v1407 = vmul.f32 %v1355, %v1386
        %v1408 = vmul.f32 %v1356, %v1387
        %v1409 = vmul.f32 %v1357, %v1387
        %v1410 = vmul.f32 %v1358, %v1388
        %v1411 = vmul.f32 %v1359, %v1388
        %v1412 = vmul.f32 %v1360, %v1389
        %v1413 = vmul.f32 %v1361, %v1389
        %v1414 = vmul.f32 %v1362, %v1390
        %v1415 = vmul.f32 %v1363, %v1390
        %v1416 = vmul.f32 %v1364, %v1391
        %v1417 = vmul.f32 %v1365, %v1391
        %v1419 = vlaneseq
        %v1420 = vshrl.u32 %v1419, 7
        %v1421 = vsub.s32 0, %v1420
        %v1422 = vrot.slane %v1168, %v1421
        %v1423 = vlaneseq
        %v1424 = vshrl.u32 %v1423, 7
        %v1425 = vsub.s32 1, %v1424
        %v1426 = vrot.slane %v1168, %v1425
        %v1429 = vmul.f32 %v1392, %v1422
        %v1430 = vmul.f32 %v1393, %v1426
        %v1431 = vmul.f32 %v1394, %v1422
        %v1432 = vmul.f32 %v1395, %v1426
        %v1433 = vmul.f32 %v1396, %v1422
        %v1434 = vmul.f32 %v1397, %v1426
        %v1435 = vmul.f32 %v1398, %v1422
        %v1436 = vmul.f32 %v1399, %v1426
        %v1437 = vmul.f32 %v1400, %v1422
        %v1438 = vmul.f32 %v1401, %v1426
        %v1439 = vmul.f32 %v1402, %v1422
        %v1440 = vmul.f32 %v1403, %v1426
        %v1441 = vmul.f32 %v1404, %v1422
        %v1442 = vmul.f32 %v1405, %v1426
        %v1443 = vmul.f32 %v1406, %v1422
        %v1444 = vmul.f32 %v1407, %v1426
        %v1445 = vmul.f32 %v1408, %v1422
        %v1446 = vmul.f32 %v1409, %v1426
        %v1447 = vmul.f32 %v1410, %v1422
        %v1448 = vmul.f32 %v1411, %v1426
        %v1449 = vmul.f32 %v1412, %v1422
        %v1450 = vmul.f32 %v1413, %v1426
        %v1451 = vmul.f32 %v1414, %v1422
        %v1452 = vmul.f32 %v1415, %v1426
        %v1453 = vmul.f32 %v1416, %v1422
        %v1454 = vmul.f32 %v1417, %v1426
        %v1456 = vlaneseq
        %v1457 = vshrl.u32 %v1456, 7
        %v1458 = vsub.s32 0, %v1457
        %v1459 = vrot.slane %v1169, %v1458
        %v1460 = vlaneseq
        %v1461 = vshrl.u32 %v1460, 7
        %v1462 = vsub.s32 1, %v1461
        %v1463 = vrot.slane %v1169, %v1462
        %v1466 = vadd.f32 %v1429, %v1459
        %v1467 = vadd.f32 %v1430, %v1463
        %v1468 = vadd.f32 %v1431, %v1459
        %v1469 = vadd.f32 %v1432, %v1463
        %v1470 = vadd.f32 %v1433, %v1459
        %v1471 = vadd.f32 %v1434, %v1463
        %v1472 = vadd.f32 %v1435, %v1459
        %v1473 = vadd.f32 %v1436, %v1463
        %v1474 = vadd.f32 %v1437, %v1459
        %v1475 = vadd.f32 %v1438, %v1463
        %v1476 = vadd.f32 %v1439, %v1459
        %v1477 = vadd.f32 %v1440, %v1463
        %v1478 = vadd.f32 %v1441, %v1459
        %v1479 = vadd.f32 %v1442, %v1463
        %v1480 = vadd.f32 %v1443, %v1459
        %v1481 = vadd.f32 %v1444, %v1463
        %v1482 = vadd.f32 %v1445, %v1459
        %v1483 = vadd.f32 %v1446, %v1463
        %v1484 = vadd.f32 %v1447, %v1459
        %v1485 = vadd.f32 %v1448, %v1463
        %v1486 = vadd.f32 %v1449, %v1459
        %v1487 = vadd.f32 %v1450, %v1463
        %v1488 = vadd.f32 %v1451, %v1459
        %v1489 = vadd.f32 %v1452, %v1463
        %v1490 = vadd.f32 %v1453, %v1459
        %v1491 = vadd.f32 %v1454, %v1463
        %v1492 = vmax.f32 %v1466, 0.0
        %v1493 = vmax.f32 %v1467, 0.0
        %v1494 = vmax.f32 %v1468, 0.0
        %v1495 = vmax.f32 %v1469, 0.0
        %v1496 = vmax.f32 %v1470, 0.0
        %v1497 = vmax.f32 %v1471, 0.0
        %v1498 = vmax.f32 %v1472, 0.0
        %v1499 = vmax.f32 %v1473, 0.0
        %v1500 = vmax.f32 %v1474, 0.0
        %v1501 = vmax.f32 %v1475, 0.0
        %v1502 = vmax.f32 %v1476, 0.0
        %v1503 = vmax.f32 %v1477, 0.0
        %v1504 = vmax.f32 %v1478, 0.0
        %v1505 = vmax.f32 %v1479, 0.0
        %v1506 = vmax.f32 %v1480, 0.0
        %v1507 = vmax.f32 %v1481, 0.0
        %v1508 = vmax.f32 %v1482, 0.0
        %v1509 = vmax.f32 %v1483, 0.0
        %v1510 = vmax.f32 %v1484, 0.0
        %v1511 = vmax.f32 %v1485, 0.0
        %v1512 = vmax.f32 %v1486, 0.0
        %v1513 = vmax.f32 %v1487, 0.0
        %v1514 = vmax.f32 %v1488, 0.0
        %v1515 = vmax.f32 %v1489, 0.0
        %v1516 = vmax.f32 %v1490, 0.0
        %v1517 = vmax.f32 %v1491, 0.0
        %v1518 = vpack.c.bf16 %v1494, %v1492
        %v1519 = vpack.c.bf16 %v1495, %v1493
        %v1520 = vpack.c.bf16 %v1498, %v1496
        %v1521 = vpack.c.bf16 %v1499, %v1497
        %v1522 = vpack.c.bf16 %v1502, %v1500
        %v1523 = vpack.c.bf16 %v1503, %v1501
        %v1524 = vpack.c.bf16 %v1506, %v1504
        %v1525 = vpack.c.bf16 %v1507, %v1505
        %v1526 = vpack.c.bf16 %v1510, %v1508
        %v1527 = vpack.c.bf16 %v1511, %v1509
        %v1528 = vpack.c.bf16 %v1514, %v1512
        %v1529 = vpack.c.bf16 %v1515, %v1513
        %v1530 = vpack.c.bf16 %v1516, %v1516
        %v1531 = vpack.c.bf16 %v1517, %v1517
        %v1532 = vld [vmem:[#allocation2] sm:$0xff]
        %v1533 = vld [vmem:[#allocation2 + $0x8] sm:$0xff]
        %v1534 = vld [vmem:[#allocation2 + $0x10] sm:$0xff]
        %v1535 = vld [vmem:[#allocation2 + $0x18] sm:$0xff]
        %v1536 = vld [vmem:[#allocation2 + $0x20] sm:$0xff]
        %v1537 = vld [vmem:[#allocation2 + $0x28] sm:$0xff]
        %v1538 = vld [vmem:[#allocation2 + $0x30] sm:$0xff]
        %v1539 = vld [vmem:[#allocation2 + $0x38] sm:$0xff]
        %v1540 = vld [vmem:[#allocation2 + $0x40] sm:$0xff]
        %v1541 = vld [vmem:[#allocation2 + $0x48] sm:$0xff]
        %v1542 = vld [vmem:[#allocation2 + $0x50] sm:$0xff]
        %v1543 = vld [vmem:[#allocation2 + $0x58] sm:$0xff]
        %v1544 = vld [vmem:[#allocation2 + $0x60] sm:$0xff]
        %v1545 = vld [vmem:[#allocation2 + $0x68] sm:$0xff]
        %v1546 = vld [vmem:[#allocation2 + $0x70] sm:$0xff]
        %v1547 = vld [vmem:[#allocation2 + $0x78] sm:$0xff]
        %v1548 = vld [vmem:[#allocation2 + $0x80] sm:$0xff]
        %v1549 = vld [vmem:[#allocation2 + $0x88] sm:$0xff]
        %v1550 = vld [vmem:[#allocation2 + $0x90] sm:$0xff]
        %v1551 = vld [vmem:[#allocation2 + $0x98] sm:$0xff]
        %v1552 = vld [vmem:[#allocation2 + $0xa0] sm:$0xff]
        %v1553 = vld [vmem:[#allocation2 + $0xa8] sm:$0xff]
        %v1554 = vld [vmem:[#allocation2 + $0xb0] sm:$0xff]
        %v1555 = vld [vmem:[#allocation2 + $0xb8] sm:$0xff]
        %v1556 = vld [vmem:[#allocation2 + $0xc0] sm:$0xff]
        %v1557 = vld [vmem:[#allocation2 + $0xc8] sm:$0xff]
        %v1558 = vld [vmem:[#allocation2 + $0xd0] sm:$0xff]
        %v1559 = vld [vmem:[#allocation2 + $0xd8] sm:$0xff]
        %v1560 = vld [vmem:[#allocation2 + $0xe0] sm:$0xff]
        %v1561 = vld [vmem:[#allocation2 + $0xe8] sm:$0xff]
        %v1562 = vld [vmem:[#allocation2 + $0xf0] sm:$0xff]
        %v1563 = vld [vmem:[#allocation2 + $0xf8] sm:$0xff]
        %s1564 = scalar_lea.vmem %s6, 1
        %v1565 = vld [vmem:[%s1564] ss:$8 sm:$0x3]
        %v1567 = vlaneseq
        %v1568 = vshrl.u32 %v1567, 7
        %v1569 = vsub.s32 0, %v1568
        %v1570 = vrot.slane %v1565, %v1569
        %v1571 = vlaneseq
        %v1572 = vshrl.u32 %v1571, 7
        %v1573 = vsub.s32 1, %v1572
        %v1574 = vrot.slane %v1565, %v1573
        %v1609 = vunpack.c.l.b16 %v1532
        %v1610 = vunpack.c.h.b16 %v1532
        %v1611 = vunpack.c.l.b16 %v1533
        %v1612 = vunpack.c.h.b16 %v1533
        %v1613 = vunpack.c.l.b16 %v1534
        %v1614 = vunpack.c.h.b16 %v1534
        %v1615 = vunpack.c.l.b16 %v1535
        %v1616 = vunpack.c.h.b16 %v1535
        %v1617 = vunpack.c.l.b16 %v1536
        %v1618 = vunpack.c.h.b16 %v1536
        %v1619 = vunpack.c.l.b16 %v1537
        %v1620 = vunpack.c.h.b16 %v1537
        %v1621 = vunpack.c.l.b16 %v1538
        %v1622 = vunpack.c.h.b16 %v1538
        %v1623 = vunpack.c.l.b16 %v1539
        %v1624 = vunpack.c.h.b16 %v1539
        %v1625 = vunpack.c.l.b16 %v1540
        %v1626 = vunpack.c.h.b16 %v1540
        %v1627 = vunpack.c.l.b16 %v1541
        %v1628 = vunpack.c.h.b16 %v1541
        %v1629 = vunpack.c.l.b16 %v1542
        %v1630 = vunpack.c.h.b16 %v1542
        %v1631 = vunpack.c.l.b16 %v1543
        %v1632 = vunpack.c.h.b16 %v1543
        %v1633 = vunpack.c.l.b16 %v1544
        %v1634 = vunpack.c.h.b16 %v1544
        %v1635 = vunpack.c.l.b16 %v1545
        %v1636 = vunpack.c.h.b16 %v1545
        %v1637 = vunpack.c.l.b16 %v1546
        %v1638 = vunpack.c.h.b16 %v1546
        %v1639 = vunpack.c.l.b16 %v1547
        %v1640 = vunpack.c.h.b16 %v1547
        %v1641 = vunpack.c.l.b16 %v1548
        %v1642 = vunpack.c.h.b16 %v1548
        %v1643 = vunpack.c.l.b16 %v1549
        %v1644 = vunpack.c.h.b16 %v1549
        %v1645 = vunpack.c.l.b16 %v1550
        %v1646 = vunpack.c.h.b16 %v1550
        %v1647 = vunpack.c.l.b16 %v1551
        %v1648 = vunpack.c.h.b16 %v1551
        %v1649 = vunpack.c.l.b16 %v1552
        %v1650 = vunpack.c.h.b16 %v1552
        %v1651 = vunpack.c.l.b16 %v1553
        %v1652 = vunpack.c.h.b16 %v1553
        %v1653 = vunpack.c.l.b16 %v1554
        %v1654 = vunpack.c.h.b16 %v1554
        %v1655 = vunpack.c.l.b16 %v1555
        %v1656 = vunpack.c.h.b16 %v1555
        %v1657 = vunpack.c.l.b16 %v1556
        %v1658 = vunpack.c.h.b16 %v1556
        %v1659 = vunpack.c.l.b16 %v1557
        %v1660 = vunpack.c.h.b16 %v1557
        %v1661 = vunpack.c.l.b16 %v1558
        %v1662 = vunpack.c.h.b16 %v1558
        %v1663 = vunpack.c.l.b16 %v1559
        %v1664 = vunpack.c.h.b16 %v1559
        %v1665 = vunpack.c.l.b16 %v1560
        %v1666 = vunpack.c.h.b16 %v1560
        %v1667 = vunpack.c.l.b16 %v1561
        %v1668 = vunpack.c.h.b16 %v1561
        %v1669 = vunpack.c.l.b16 %v1562
        %v1670 = vunpack.c.h.b16 %v1562
        %v1671 = vunpack.c.l.b16 %v1563
        %v1672 = vunpack.c.h.b16 %v1563
        %v1673 = vpack.c.b16 %v1611, %v1609
        %v1674 = vpack.c.b16 %v1612, %v1610
        %v1675 = vpack.c.b16 %v1615, %v1613
        %v1676 = vpack.c.b16 %v1616, %v1614
        %v1677 = vpack.c.b16 %v1619, %v1617
        %v1678 = vpack.c.b16 %v1620, %v1618
        %v1679 = vpack.c.b16 %v1623, %v1621
        %v1680 = vpack.c.b16 %v1624, %v1622
        %v1681 = vpack.c.b16 %v1627, %v1625
        %v1682 = vpack.c.b16 %v1628, %v1626
        %v1683 = vpack.c.b16 %v1631, %v1629
        %v1684 = vpack.c.b16 %v1632, %v1630
        %v1685 = vpack.c.b16 %v1635, %v1633
        %v1686 = vpack.c.b16 %v1636, %v1634
        %v1687 = vpack.c.b16 %v1639, %v1637
        %v1688 = vpack.c.b16 %v1640, %v1638
        %v1689 = vpack.c.b16 %v1643, %v1641
        %v1690 = vpack.c.b16 %v1644, %v1642
        %v1691 = vpack.c.b16 %v1647, %v1645
        %v1692 = vpack.c.b16 %v1648, %v1646
        %v1693 = vpack.c.b16 %v1651, %v1649
        %v1694 = vpack.c.b16 %v1652, %v1650
        %v1695 = vpack.c.b16 %v1655, %v1653
        %v1696 = vpack.c.b16 %v1656, %v1654
        %v1697 = vpack.c.b16 %v1659, %v1657
        %v1698 = vpack.c.b16 %v1660, %v1658
        %v1699 = vpack.c.b16 %v1663, %v1661
        %v1700 = vpack.c.b16 %v1664, %v1662
        %v1701 = vpack.c.b16 %v1667, %v1665
        %v1702 = vpack.c.b16 %v1668, %v1666
        %v1703 = vpack.c.b16 %v1671, %v1669
        %v1704 = vpack.c.b16 %v1672, %v1670
        %1737 = vmatprep.subr.bf16.mxu0 %v1688
        %1738 = vmatpush1.bf16.msra.mxu0 %v1687
        %1739 = vmatprep.subr.bf16.mxu0 %v1686
        %1740 = vmatpush1.bf16.msra.mxu0 %v1685
        %1741 = vmatprep.subr.bf16.mxu0 %v1684
        %1742 = vmatpush1.bf16.msra.mxu0 %v1683
        %1743 = vmatprep.subr.bf16.mxu0 %v1682
        %1744 = vmatpush1.bf16.msra.mxu0 %v1681
        %1745 = vmatprep.subr.bf16.mxu0 %v1680
        %1746 = vmatpush1.bf16.msra.mxu0 %v1679
        %1747 = vmatprep.subr.bf16.mxu0 %v1678
        %1748 = vmatpush1.bf16.msra.mxu0 %v1677
        %1749 = vmatprep.subr.bf16.mxu0 %v1676
        %1750 = vmatpush1.bf16.msra.mxu0 %v1675
        %1751 = vmatprep.subr.bf16.mxu0 %v1674
        %1752 = vmatpush1.bf16.msra.mxu0 %v1673
        %1753 = vmatprep.subr.bf16.mxu0 %v1704
        %1754 = vmatpush2.bf16.msra.mxu0 %v1703
        %1755 = vmatprep.subr.bf16.mxu0 %v1702
        %1756 = vmatpush2.bf16.msra.mxu0 %v1701
        %1757 = vmatprep.subr.bf16.mxu0 %v1700
        %1758 = vmatpush2.bf16.msra.mxu0 %v1699
        %1759 = vmatprep.subr.bf16.mxu0 %v1698
        %1760 = vmatpush2.bf16.msra.mxu0 %v1697
        %1761 = vmatprep.subr.bf16.mxu0 %v1696
        %1762 = vmatpush2.bf16.msra.mxu0 %v1695
        %1763 = vmatprep.subr.bf16.mxu0 %v1694
        %1764 = vmatpush2.bf16.msra.mxu0 %v1693
        %1765 = vmatprep.subr.bf16.mxu0 %v1692
        %1766 = vmatpush2.bf16.msra.mxu0 %v1691
        %1767 = vmatprep.subr.bf16.mxu0 %v1690
        %1768 = vmatpush2.bf16.msra.mxu0 %v1689
        %1769 = vmatprep.mubr.bf16.mxu0 %v1519
        %1770 = vmatmul.mubr.bf16.gmra.mxu0 %v1518
        %v1771 = vpop.f32.mrf.mxu0
        %v1772 = vadd.f32 %v1570, %v1771
        %v1773 = vpop.f32.mrf.mxu0
        %v1774 = vadd.f32 %v1574, %v1773
        %v1775 = vpop.f32.mrf.mxu0
        %v1776 = vadd.f32 %v1570, %v1775
        %v1777 = vpop.f32.mrf.mxu0
        %v1778 = vadd.f32 %v1574, %v1777
        %1779 = vmatprep.mubr.bf16.mxu0 %v1521
        %1780 = vmatmul.mubr.bf16.gmra.mxu0 %v1520
        %v1781 = vpop.f32.mrf.mxu0
        %v1782 = vadd.f32 %v1570, %v1781
        %v1783 = vpop.f32.mrf.mxu0
        %v1784 = vadd.f32 %v1574, %v1783
        %v1785 = vpop.f32.mrf.mxu0
        %v1786 = vadd.f32 %v1570, %v1785
        %v1787 = vpop.f32.mrf.mxu0
        %v1788 = vadd.f32 %v1574, %v1787
        %1789 = vmatprep.mubr.bf16.mxu0 %v1523
        %1790 = vmatmul.mubr.bf16.gmra.mxu0 %v1522
        %v1791 = vpop.f32.mrf.mxu0
        %v1792 = vadd.f32 %v1570, %v1791
        %v1793 = vpop.f32.mrf.mxu0
        %v1794 = vadd.f32 %v1574, %v1793
        %v1795 = vpop.f32.mrf.mxu0
        %v1796 = vadd.f32 %v1570, %v1795
        %v1797 = vpop.f32.mrf.mxu0
        %v1798 = vadd.f32 %v1574, %v1797
        %1799 = vmatprep.mubr.bf16.mxu0 %v1525
        %1800 = vmatmul.mubr.bf16.gmra.mxu0 %v1524
        %v1801 = vpop.f32.mrf.mxu0
        %v1802 = vadd.f32 %v1570, %v1801
        %v1803 = vpop.f32.mrf.mxu0
        %v1804 = vadd.f32 %v1574, %v1803
        %v1805 = vpop.f32.mrf.mxu0
        %v1806 = vadd.f32 %v1570, %v1805
        %v1807 = vpop.f32.mrf.mxu0
        %v1808 = vadd.f32 %v1574, %v1807
        %1809 = vmatprep.mubr.bf16.mxu0 %v1527
        %1810 = vmatmul.mubr.bf16.gmra.mxu0 %v1526
        %v1811 = vpop.f32.mrf.mxu0
        %v1812 = vadd.f32 %v1570, %v1811
        %v1813 = vpop.f32.mrf.mxu0
        %v1814 = vadd.f32 %v1574, %v1813
        %v1815 = vpop.f32.mrf.mxu0
        %v1816 = vadd.f32 %v1570, %v1815
        %v1817 = vpop.f32.mrf.mxu0
        %v1818 = vadd.f32 %v1574, %v1817
        %1819 = vmatprep.mubr.bf16.mxu0 %v1529
        %1820 = vmatmul.mubr.bf16.gmra.mxu0 %v1528
        %v1821 = vpop.f32.mrf.mxu0
        %v1822 = vadd.f32 %v1570, %v1821
        %v1823 = vpop.f32.mrf.mxu0
        %v1824 = vadd.f32 %v1574, %v1823
        %v1825 = vpop.f32.mrf.mxu0
        %v1826 = vadd.f32 %v1570, %v1825
        %v1827 = vpop.f32.mrf.mxu0
        %v1828 = vadd.f32 %v1574, %v1827
        %1829 = vmatprep.mubr.bf16.mxu0 %v1531
        %1830 = vmatmul.mubr.bf16.gmra.mxu0 %v1530
        %v1831 = vpop.f32.mrf.mxu0
        %v1832 = vadd.f32 %v1570, %v1831
        %v1833 = vpop.f32.mrf.mxu0
        %v1834 = vadd.f32 %v1574, %v1833
        %v1835 = vpop.f32.mrf.mxu0
        %v1836 = vpop.f32.mrf.mxu0
        %1837 = vdwg.mxu0
        %s1838 = scalar_lea.vmem %s7, 1
        %v1839 = vld [vmem:[%s1838] ss:$8 sm:$0x3]
        %s1840 = scalar_lea.vmem %s8, 1
        %v1841 = vld [vmem:[%s1840] ss:$8 sm:$0x3]
        %v1842 = vadd.f32 %v1772, %v1774
        %1843 = vadd.xlane.f32.xlu0 %v1842
        %v1844 = vpop.xlane.xlu0 %1843
        %v1845 = vadd.f32 %v1776, %v1778
        %1846 = vadd.xlane.f32.xlu0 %v1845
        %v1847 = vpop.xlane.xlu0 %1846
        %v1848 = vadd.f32 %v1782, %v1784
        %1849 = vadd.xlane.f32.xlu0 %v1848
        %v1850 = vpop.xlane.xlu0 %1849
        %v1851 = vadd.f32 %v1786, %v1788
        %1852 = vadd.xlane.f32.xlu0 %v1851
        %v1853 = vpop.xlane.xlu0 %1852
        %v1854 = vadd.f32 %v1792, %v1794
        %1855 = vadd.xlane.f32.xlu0 %v1854
        %v1856 = vpop.xlane.xlu0 %1855
        %v1857 = vadd.f32 %v1796, %v1798
        %1858 = vadd.xlane.f32.xlu0 %v1857
        %v1859 = vpop.xlane.xlu0 %1858
        %v1860 = vadd.f32 %v1802, %v1804
        %1861 = vadd.xlane.f32.xlu0 %v1860
        %v1862 = vpop.xlane.xlu0 %1861
        %v1863 = vadd.f32 %v1806, %v1808
        %1864 = vadd.xlane.f32.xlu0 %v1863
        %v1865 = vpop.xlane.xlu0 %1864
        %v1866 = vadd.f32 %v1812, %v1814
        %1867 = vadd.xlane.f32.xlu0 %v1866
        %v1868 = vpop.xlane.xlu0 %1867
        %v1869 = vadd.f32 %v1816, %v1818
        %1870 = vadd.xlane.f32.xlu0 %v1869
        %v1871 = vpop.xlane.xlu0 %1870
        %v1872 = vadd.f32 %v1822, %v1824
        %1873 = vadd.xlane.f32.xlu0 %v1872
        %v1874 = vpop.xlane.xlu0 %1873
        %v1875 = vadd.f32 %v1826, %v1828
        %1876 = vadd.xlane.f32.xlu0 %v1875
        %v1877 = vpop.xlane.xlu0 %1876
        %v1878 = vadd.f32 %v1832, %v1834
        %1879 = vadd.xlane.f32.xlu0 %v1878
        %v1880 = vpop.xlane.xlu0 %1879
        %v1881 = vmul.f32 %v1844, %v1209
        %v1882 = vmul.f32 %v1847, %v1209
        %v1883 = vmul.f32 %v1850, %v1209
        %v1884 = vmul.f32 %v1853, %v1209
        %v1885 = vmul.f32 %v1856, %v1209
        %v1886 = vmul.f32 %v1859, %v1209
        %v1887 = vmul.f32 %v1862, %v1209
        %v1888 = vmul.f32 %v1865, %v1209
        %v1889 = vmul.f32 %v1868, %v1209
        %v1890 = vmul.f32 %v1871, %v1209
        %v1891 = vmul.f32 %v1874, %v1209
        %v1892 = vmul.f32 %v1877, %v1209
        %v1893 = vmul.f32 %v1880, %v1209
        %v1894 = vmul.f32 %v1772, %v1772
        %v1895 = vmul.f32 %v1774, %v1774
        %v1896 = vmul.f32 %v1776, %v1776
        %v1897 = vmul.f32 %v1778, %v1778
        %v1898 = vmul.f32 %v1782, %v1782
        %v1899 = vmul.f32 %v1784, %v1784
        %v1900 = vmul.f32 %v1786, %v1786
        %v1901 = vmul.f32 %v1788, %v1788
        %v1902 = vmul.f32 %v1792, %v1792
        %v1903 = vmul.f32 %v1794, %v1794
        %v1904 = vmul.f32 %v1796, %v1796
        %v1905 = vmul.f32 %v1798, %v1798
        %v1906 = vmul.f32 %v1802, %v1802
        %v1907 = vmul.f32 %v1804, %v1804
        %v1908 = vmul.f32 %v1806, %v1806
        %v1909 = vmul.f32 %v1808, %v1808
        %v1910 = vmul.f32 %v1812, %v1812
        %v1911 = vmul.f32 %v1814, %v1814
        %v1912 = vmul.f32 %v1816, %v1816
        %v1913 = vmul.f32 %v1818, %v1818
        %v1914 = vmul.f32 %v1822, %v1822
        %v1915 = vmul.f32 %v1824, %v1824
        %v1916 = vmul.f32 %v1826, %v1826
        %v1917 = vmul.f32 %v1828, %v1828
        %v1918 = vmul.f32 %v1832, %v1832
        %v1919 = vmul.f32 %v1834, %v1834
        %v1920 = vadd.f32 %v1894, %v1895
        %1921 = vadd.xlane.f32.xlu0 %v1920
        %v1922 = vpop.xlane.xlu0 %1921
        %v1923 = vadd.f32 %v1896, %v1897
        %1924 = vadd.xlane.f32.xlu0 %v1923
        %v1925 = vpop.xlane.xlu0 %1924
        %v1926 = vadd.f32 %v1898, %v1899
        %1927 = vadd.xlane.f32.xlu0 %v1926
        %v1928 = vpop.xlane.xlu0 %1927
        %v1929 = vadd.f32 %v1900, %v1901
        %1930 = vadd.xlane.f32.xlu0 %v1929
        %v1931 = vpop.xlane.xlu0 %1930
        %v1932 = vadd.f32 %v1902, %v1903
        %1933 = vadd.xlane.f32.xlu0 %v1932
        %v1934 = vpop.xlane.xlu0 %1933
        %v1935 = vadd.f32 %v1904, %v1905
        %1936 = vadd.xlane.f32.xlu0 %v1935
        %v1937 = vpop.xlane.xlu0 %1936
        %v1938 = vadd.f32 %v1906, %v1907
        %1939 = vadd.xlane.f32.xlu0 %v1938
        %v1940 = vpop.xlane.xlu0 %1939
        %v1941 = vadd.f32 %v1908, %v1909
        %1942 = vadd.xlane.f32.xlu0 %v1941
        %v1943 = vpop.xlane.xlu0 %1942
        %v1944 = vadd.f32 %v1910, %v1911
        %1945 = vadd.xlane.f32.xlu0 %v1944
        %v1946 = vpop.xlane.xlu0 %1945
        %v1947 = vadd.f32 %v1912, %v1913
        %1948 = vadd.xlane.f32.xlu0 %v1947
        %v1949 = vpop.xlane.xlu0 %1948
        %v1950 = vadd.f32 %v1914, %v1915
        %1951 = vadd.xlane.f32.xlu0 %v1950
        %v1952 = vpop.xlane.xlu0 %1951
        %v1953 = vadd.f32 %v1916, %v1917
        %1954 = vadd.xlane.f32.xlu0 %v1953
        %v1955 = vpop.xlane.xlu0 %1954
        %v1956 = vadd.f32 %v1918, %v1919
        %1957 = vadd.xlane.f32.xlu0 %v1956
        %v1958 = vpop.xlane.xlu0 %1957
        %v1959 = vmul.f32 %v1922, %v1209
        %v1960 = vmul.f32 %v1925, %v1209
        %v1961 = vmul.f32 %v1928, %v1209
        %v1962 = vmul.f32 %v1931, %v1209
        %v1963 = vmul.f32 %v1934, %v1209
        %v1964 = vmul.f32 %v1937, %v1209
        %v1965 = vmul.f32 %v1940, %v1209
        %v1966 = vmul.f32 %v1943, %v1209
        %v1967 = vmul.f32 %v1946, %v1209
        %v1968 = vmul.f32 %v1949, %v1209
        %v1969 = vmul.f32 %v1952, %v1209
        %v1970 = vmul.f32 %v1955, %v1209
        %v1971 = vmul.f32 %v1958, %v1209
        %v1972 = vmul.f32 %v1881, %v1881
        %v1973 = vmul.f32 %v1882, %v1882
        %v1974 = vmul.f32 %v1883, %v1883
        %v1975 = vmul.f32 %v1884, %v1884
        %v1976 = vmul.f32 %v1885, %v1885
        %v1977 = vmul.f32 %v1886, %v1886
        %v1978 = vmul.f32 %v1887, %v1887
        %v1979 = vmul.f32 %v1888, %v1888
        %v1980 = vmul.f32 %v1889, %v1889
        %v1981 = vmul.f32 %v1890, %v1890
        %v1982 = vmul.f32 %v1891, %v1891
        %v1983 = vmul.f32 %v1892, %v1892
        %v1984 = vmul.f32 %v1893, %v1893
        %v1985 = vsub.f32 %v1959, %v1972
        %v1986 = vsub.f32 %v1960, %v1973
        %v1987 = vsub.f32 %v1961, %v1974
        %v1988 = vsub.f32 %v1962, %v1975
        %v1989 = vsub.f32 %v1963, %v1976
        %v1990 = vsub.f32 %v1964, %v1977
        %v1991 = vsub.f32 %v1965, %v1978
        %v1992 = vsub.f32 %v1966, %v1979
        %v1993 = vsub.f32 %v1967, %v1980
        %v1994 = vsub.f32 %v1968, %v1981
        %v1995 = vsub.f32 %v1969, %v1982
        %v1996 = vsub.f32 %v1970, %v1983
        %v1997 = vsub.f32 %v1971, %v1984
        %v1998 = vmax.f32 %v1985, 0.0
        %v1999 = vmax.f32 %v1986, 0.0
        %v2000 = vmax.f32 %v1987, 0.0
        %v2001 = vmax.f32 %v1988, 0.0
        %v2002 = vmax.f32 %v1989, 0.0
        %v2003 = vmax.f32 %v1990, 0.0
        %v2004 = vmax.f32 %v1991, 0.0
        %v2005 = vmax.f32 %v1992, 0.0
        %v2006 = vmax.f32 %v1993, 0.0
        %v2007 = vmax.f32 %v1994, 0.0
        %v2008 = vmax.f32 %v1995, 0.0
        %v2009 = vmax.f32 %v1996, 0.0
        %v2010 = vmax.f32 %v1997, 0.0
        %v2011 = vsub.f32 %v1772, %v1881
        %v2012 = vsub.f32 %v1774, %v1881
        %v2013 = vsub.f32 %v1776, %v1882
        %v2014 = vsub.f32 %v1778, %v1882
        %v2015 = vsub.f32 %v1782, %v1883
        %v2016 = vsub.f32 %v1784, %v1883
        %v2017 = vsub.f32 %v1786, %v1884
        %v2018 = vsub.f32 %v1788, %v1884
        %v2019 = vsub.f32 %v1792, %v1885
        %v2020 = vsub.f32 %v1794, %v1885
        %v2021 = vsub.f32 %v1796, %v1886
        %v2022 = vsub.f32 %v1798, %v1886
        %v2023 = vsub.f32 %v1802, %v1887
        %v2024 = vsub.f32 %v1804, %v1887
        %v2025 = vsub.f32 %v1806, %v1888
        %v2026 = vsub.f32 %v1808, %v1888
        %v2027 = vsub.f32 %v1812, %v1889
        %v2028 = vsub.f32 %v1814, %v1889
        %v2029 = vsub.f32 %v1816, %v1890
        %v2030 = vsub.f32 %v1818, %v1890
        %v2031 = vsub.f32 %v1822, %v1891
        %v2032 = vsub.f32 %v1824, %v1891
        %v2033 = vsub.f32 %v1826, %v1892
        %v2034 = vsub.f32 %v1828, %v1892
        %v2035 = vsub.f32 %v1832, %v1893
        %v2036 = vsub.f32 %v1834, %v1893
        %v2037 = vadd.f32 %v1998, 1e-05
        %v2038 = vadd.f32 %v1999, 1e-05
        %v2039 = vadd.f32 %v2000, 1e-05
        %v2040 = vadd.f32 %v2001, 1e-05
        %v2041 = vadd.f32 %v2002, 1e-05
        %v2042 = vadd.f32 %v2003, 1e-05
        %v2043 = vadd.f32 %v2004, 1e-05
        %v2044 = vadd.f32 %v2005, 1e-05
        %v2045 = vadd.f32 %v2006, 1e-05
        %v2046 = vadd.f32 %v2007, 1e-05
        %v2047 = vadd.f32 %v2008, 1e-05
        %v2048 = vadd.f32 %v2009, 1e-05
        %v2049 = vadd.f32 %v2010, 1e-05
        %v2050 = vrsqrt.pop %v2037
        %v2051 = vrsqrt.pop %v2038
        %v2052 = vrsqrt.pop %v2039
        %v2053 = vrsqrt.pop %v2040
        %v2054 = vrsqrt.pop %v2041
        %v2055 = vrsqrt.pop %v2042
        %v2056 = vrsqrt.pop %v2043
        %v2057 = vrsqrt.pop %v2044
        %v2058 = vrsqrt.pop %v2045
        %v2059 = vrsqrt.pop %v2046
        %v2060 = vrsqrt.pop %v2047
        %v2061 = vrsqrt.pop %v2048
        %v2062 = vrsqrt.pop %v2049
        %v2063 = vmul.f32 %v2011, %v2050
        %v2064 = vmul.f32 %v2012, %v2050
        %v2065 = vmul.f32 %v2013, %v2051
        %v2066 = vmul.f32 %v2014, %v2051
        %v2067 = vmul.f32 %v2015, %v2052
        %v2068 = vmul.f32 %v2016, %v2052
        %v2069 = vmul.f32 %v2017, %v2053
        %v2070 = vmul.f32 %v2018, %v2053
        %v2071 = vmul.f32 %v2019, %v2054
        %v2072 = vmul.f32 %v2020, %v2054
        %v2073 = vmul.f32 %v2021, %v2055
        %v2074 = vmul.f32 %v2022, %v2055
        %v2075 = vmul.f32 %v2023, %v2056
        %v2076 = vmul.f32 %v2024, %v2056
        %v2077 = vmul.f32 %v2025, %v2057
        %v2078 = vmul.f32 %v2026, %v2057
        %v2079 = vmul.f32 %v2027, %v2058
        %v2080 = vmul.f32 %v2028, %v2058
        %v2081 = vmul.f32 %v2029, %v2059
        %v2082 = vmul.f32 %v2030, %v2059
        %v2083 = vmul.f32 %v2031, %v2060
        %v2084 = vmul.f32 %v2032, %v2060
        %v2085 = vmul.f32 %v2033, %v2061
        %v2086 = vmul.f32 %v2034, %v2061
        %v2087 = vmul.f32 %v2035, %v2062
        %v2088 = vmul.f32 %v2036, %v2062
        %v2090 = vlaneseq
        %v2091 = vshrl.u32 %v2090, 7
        %v2092 = vsub.s32 0, %v2091
        %v2093 = vrot.slane %v1839, %v2092
        %v2094 = vlaneseq
        %v2095 = vshrl.u32 %v2094, 7
        %v2096 = vsub.s32 1, %v2095
        %v2097 = vrot.slane %v1839, %v2096
        %v2100 = vmul.f32 %v2063, %v2093
        %v2101 = vmul.f32 %v2064, %v2097
        %v2102 = vmul.f32 %v2065, %v2093
        %v2103 = vmul.f32 %v2066, %v2097
        %v2104 = vmul.f32 %v2067, %v2093
        %v2105 = vmul.f32 %v2068, %v2097
        %v2106 = vmul.f32 %v2069, %v2093
        %v2107 = vmul.f32 %v2070, %v2097
        %v2108 = vmul.f32 %v2071, %v2093
        %v2109 = vmul.f32 %v2072, %v2097
        %v2110 = vmul.f32 %v2073, %v2093
        %v2111 = vmul.f32 %v2074, %v2097
        %v2112 = vmul.f32 %v2075, %v2093
        %v2113 = vmul.f32 %v2076, %v2097
        %v2114 = vmul.f32 %v2077, %v2093
        %v2115 = vmul.f32 %v2078, %v2097
        %v2116 = vmul.f32 %v2079, %v2093
        %v2117 = vmul.f32 %v2080, %v2097
        %v2118 = vmul.f32 %v2081, %v2093
        %v2119 = vmul.f32 %v2082, %v2097
        %v2120 = vmul.f32 %v2083, %v2093
        %v2121 = vmul.f32 %v2084, %v2097
        %v2122 = vmul.f32 %v2085, %v2093
        %v2123 = vmul.f32 %v2086, %v2097
        %v2124 = vmul.f32 %v2087, %v2093
        %v2125 = vmul.f32 %v2088, %v2097
        %v2127 = vlaneseq
        %v2128 = vshrl.u32 %v2127, 7
        %v2129 = vsub.s32 0, %v2128
        %v2130 = vrot.slane %v1841, %v2129
        %v2131 = vlaneseq
        %v2132 = vshrl.u32 %v2131, 7
        %v2133 = vsub.s32 1, %v2132
        %v2134 = vrot.slane %v1841, %v2133
        %v2137 = vadd.f32 %v2100, %v2130
        %v2138 = vadd.f32 %v2101, %v2134
        %v2139 = vadd.f32 %v2102, %v2130
        %v2140 = vadd.f32 %v2103, %v2134
        %v2141 = vadd.f32 %v2104, %v2130
        %v2142 = vadd.f32 %v2105, %v2134
        %v2143 = vadd.f32 %v2106, %v2130
        %v2144 = vadd.f32 %v2107, %v2134
        %v2145 = vadd.f32 %v2108, %v2130
        %v2146 = vadd.f32 %v2109, %v2134
        %v2147 = vadd.f32 %v2110, %v2130
        %v2148 = vadd.f32 %v2111, %v2134
        %v2149 = vadd.f32 %v2112, %v2130
        %v2150 = vadd.f32 %v2113, %v2134
        %v2151 = vadd.f32 %v2114, %v2130
        %v2152 = vadd.f32 %v2115, %v2134
        %v2153 = vadd.f32 %v2116, %v2130
        %v2154 = vadd.f32 %v2117, %v2134
        %v2155 = vadd.f32 %v2118, %v2130
        %v2156 = vadd.f32 %v2119, %v2134
        %v2157 = vadd.f32 %v2120, %v2130
        %v2158 = vadd.f32 %v2121, %v2134
        %v2159 = vadd.f32 %v2122, %v2130
        %v2160 = vadd.f32 %v2123, %v2134
        %v2161 = vadd.f32 %v2124, %v2130
        %v2162 = vadd.f32 %v2125, %v2134
        %v2163 = vmax.f32 %v2137, 0.0
        %v2164 = vmax.f32 %v2138, 0.0
        %v2165 = vmax.f32 %v2139, 0.0
        %v2166 = vmax.f32 %v2140, 0.0
        %v2167 = vmax.f32 %v2141, 0.0
        %v2168 = vmax.f32 %v2142, 0.0
        %v2169 = vmax.f32 %v2143, 0.0
        %v2170 = vmax.f32 %v2144, 0.0
        %v2171 = vmax.f32 %v2145, 0.0
        %v2172 = vmax.f32 %v2146, 0.0
        %v2173 = vmax.f32 %v2147, 0.0
        %v2174 = vmax.f32 %v2148, 0.0
        %v2175 = vmax.f32 %v2149, 0.0
        %v2176 = vmax.f32 %v2150, 0.0
        %v2177 = vmax.f32 %v2151, 0.0
        %v2178 = vmax.f32 %v2152, 0.0
        %v2179 = vmax.f32 %v2153, 0.0
        %v2180 = vmax.f32 %v2154, 0.0
        %v2181 = vmax.f32 %v2155, 0.0
        %v2182 = vmax.f32 %v2156, 0.0
        %v2183 = vmax.f32 %v2157, 0.0
        %v2184 = vmax.f32 %v2158, 0.0
        %v2185 = vmax.f32 %v2159, 0.0
        %v2186 = vmax.f32 %v2160, 0.0
        %v2187 = vmax.f32 %v2161, 0.0
        %v2188 = vmax.f32 %v2162, 0.0
        %v2189 = vpack.c.bf16 %v2165, %v2163
        %v2190 = vpack.c.bf16 %v2166, %v2164
        %v2191 = vpack.c.bf16 %v2169, %v2167
        %v2192 = vpack.c.bf16 %v2170, %v2168
        %v2193 = vpack.c.bf16 %v2173, %v2171
        %v2194 = vpack.c.bf16 %v2174, %v2172
        %v2195 = vpack.c.bf16 %v2177, %v2175
        %v2196 = vpack.c.bf16 %v2178, %v2176
        %v2197 = vpack.c.bf16 %v2181, %v2179
        %v2198 = vpack.c.bf16 %v2182, %v2180
        %v2199 = vpack.c.bf16 %v2185, %v2183
        %v2200 = vpack.c.bf16 %v2186, %v2184
        %v2201 = vpack.c.bf16 %v2187, %v2187
        %v2202 = vpack.c.bf16 %v2188, %v2188
        %s2203 = scalar_lea.vmem [#allocation2], 256
        %v2204 = vld [vmem:[%s2203] sm:$0xff]
        %v2205 = vld [vmem:[%s2203 + $0x8] sm:$0xff]
        %v2206 = vld [vmem:[%s2203 + $0x10] sm:$0xff]
        %v2207 = vld [vmem:[%s2203 + $0x18] sm:$0xff]
        %v2208 = vld [vmem:[%s2203 + $0x20] sm:$0xff]
        %v2209 = vld [vmem:[%s2203 + $0x28] sm:$0xff]
        %v2210 = vld [vmem:[%s2203 + $0x30] sm:$0xff]
        %v2211 = vld [vmem:[%s2203 + $0x38] sm:$0xff]
        %v2212 = vld [vmem:[%s2203 + $0x40] sm:$0xff]
        %v2213 = vld [vmem:[%s2203 + $0x48] sm:$0xff]
        %v2214 = vld [vmem:[%s2203 + $0x50] sm:$0xff]
        %v2215 = vld [vmem:[%s2203 + $0x58] sm:$0xff]
        %v2216 = vld [vmem:[%s2203 + $0x60] sm:$0xff]
        %v2217 = vld [vmem:[%s2203 + $0x68] sm:$0xff]
        %v2218 = vld [vmem:[%s2203 + $0x70] sm:$0xff]
        %v2219 = vld [vmem:[%s2203 + $0x78] sm:$0xff]
        %v2220 = vld [vmem:[%s2203 + $0x80] sm:$0xff]
        %v2221 = vld [vmem:[%s2203 + $0x88] sm:$0xff]
        %v2222 = vld [vmem:[%s2203 + $0x90] sm:$0xff]
        %v2223 = vld [vmem:[%s2203 + $0x98] sm:$0xff]
        %v2224 = vld [vmem:[%s2203 + $0xa0] sm:$0xff]
        %v2225 = vld [vmem:[%s2203 + $0xa8] sm:$0xff]
        %v2226 = vld [vmem:[%s2203 + $0xb0] sm:$0xff]
        %v2227 = vld [vmem:[%s2203 + $0xb8] sm:$0xff]
        %v2228 = vld [vmem:[%s2203 + $0xc0] sm:$0xff]
        %v2229 = vld [vmem:[%s2203 + $0xc8] sm:$0xff]
        %v2230 = vld [vmem:[%s2203 + $0xd0] sm:$0xff]
        %v2231 = vld [vmem:[%s2203 + $0xd8] sm:$0xff]
        %v2232 = vld [vmem:[%s2203 + $0xe0] sm:$0xff]
        %v2233 = vld [vmem:[%s2203 + $0xe8] sm:$0xff]
        %v2234 = vld [vmem:[%s2203 + $0xf0] sm:$0xff]
        %v2235 = vld [vmem:[%s2203 + $0xf8] sm:$0xff]
        %s2236 = scalar_lea.vmem %s6, 2
        %v2237 = vld [vmem:[%s2236] ss:$8 sm:$0x3]
        %v2239 = vlaneseq
        %v2240 = vshrl.u32 %v2239, 7
        %v2241 = vsub.s32 0, %v2240
        %v2242 = vrot.slane %v2237, %v2241
        %v2243 = vlaneseq
        %v2244 = vshrl.u32 %v2243, 7
        %v2245 = vsub.s32 1, %v2244
        %v2246 = vrot.slane %v2237, %v2245
        %v2281 = vunpack.c.l.b16 %v2204
        %v2282 = vunpack.c.h.b16 %v2204
        %v2283 = vunpack.c.l.b16 %v2205
        %v2284 = vunpack.c.h.b16 %v2205
        %v2285 = vunpack.c.l.b16 %v2206
        %v2286 = vunpack.c.h.b16 %v2206
        %v2287 = vunpack.c.l.b16 %v2207
        %v2288 = vunpack.c.h.b16 %v2207
        %v2289 = vunpack.c.l.b16 %v2208
        %v2290 = vunpack.c.h.b16 %v2208
        %v2291 = vunpack.c.l.b16 %v2209
        %v2292 = vunpack.c.h.b16 %v2209
        %v2293 = vunpack.c.l.b16 %v2210
        %v2294 = vunpack.c.h.b16 %v2210
        %v2295 = vunpack.c.l.b16 %v2211
        %v2296 = vunpack.c.h.b16 %v2211
        %v2297 = vunpack.c.l.b16 %v2212
        %v2298 = vunpack.c.h.b16 %v2212
        %v2299 = vunpack.c.l.b16 %v2213
        %v2300 = vunpack.c.h.b16 %v2213
        %v2301 = vunpack.c.l.b16 %v2214
        %v2302 = vunpack.c.h.b16 %v2214
        %v2303 = vunpack.c.l.b16 %v2215
        %v2304 = vunpack.c.h.b16 %v2215
        %v2305 = vunpack.c.l.b16 %v2216
        %v2306 = vunpack.c.h.b16 %v2216
        %v2307 = vunpack.c.l.b16 %v2217
        %v2308 = vunpack.c.h.b16 %v2217
        %v2309 = vunpack.c.l.b16 %v2218
        %v2310 = vunpack.c.h.b16 %v2218
        %v2311 = vunpack.c.l.b16 %v2219
        %v2312 = vunpack.c.h.b16 %v2219
        %v2313 = vunpack.c.l.b16 %v2220
        %v2314 = vunpack.c.h.b16 %v2220
        %v2315 = vunpack.c.l.b16 %v2221
        %v2316 = vunpack.c.h.b16 %v2221
        %v2317 = vunpack.c.l.b16 %v2222
        %v2318 = vunpack.c.h.b16 %v2222
        %v2319 = vunpack.c.l.b16 %v2223
        %v2320 = vunpack.c.h.b16 %v2223
        %v2321 = vunpack.c.l.b16 %v2224
        %v2322 = vunpack.c.h.b16 %v2224
        %v2323 = vunpack.c.l.b16 %v2225
        %v2324 = vunpack.c.h.b16 %v2225
        %v2325 = vunpack.c.l.b16 %v2226
        %v2326 = vunpack.c.h.b16 %v2226
        %v2327 = vunpack.c.l.b16 %v2227
        %v2328 = vunpack.c.h.b16 %v2227
        %v2329 = vunpack.c.l.b16 %v2228
        %v2330 = vunpack.c.h.b16 %v2228
        %v2331 = vunpack.c.l.b16 %v2229
        %v2332 = vunpack.c.h.b16 %v2229
        %v2333 = vunpack.c.l.b16 %v2230
        %v2334 = vunpack.c.h.b16 %v2230
        %v2335 = vunpack.c.l.b16 %v2231
        %v2336 = vunpack.c.h.b16 %v2231
        %v2337 = vunpack.c.l.b16 %v2232
        %v2338 = vunpack.c.h.b16 %v2232
        %v2339 = vunpack.c.l.b16 %v2233
        %v2340 = vunpack.c.h.b16 %v2233
        %v2341 = vunpack.c.l.b16 %v2234
        %v2342 = vunpack.c.h.b16 %v2234
        %v2343 = vunpack.c.l.b16 %v2235
        %v2344 = vunpack.c.h.b16 %v2235
        %v2345 = vpack.c.b16 %v2283, %v2281
        %v2346 = vpack.c.b16 %v2284, %v2282
        %v2347 = vpack.c.b16 %v2287, %v2285
        %v2348 = vpack.c.b16 %v2288, %v2286
        %v2349 = vpack.c.b16 %v2291, %v2289
        %v2350 = vpack.c.b16 %v2292, %v2290
        %v2351 = vpack.c.b16 %v2295, %v2293
        %v2352 = vpack.c.b16 %v2296, %v2294
        %v2353 = vpack.c.b16 %v2299, %v2297
        %v2354 = vpack.c.b16 %v2300, %v2298
        %v2355 = vpack.c.b16 %v2303, %v2301
        %v2356 = vpack.c.b16 %v2304, %v2302
        %v2357 = vpack.c.b16 %v2307, %v2305
        %v2358 = vpack.c.b16 %v2308, %v2306
        %v2359 = vpack.c.b16 %v2311, %v2309
        %v2360 = vpack.c.b16 %v2312, %v2310
        %v2361 = vpack.c.b16 %v2315, %v2313
        %v2362 = vpack.c.b16 %v2316, %v2314
        %v2363 = vpack.c.b16 %v2319, %v2317
        %v2364 = vpack.c.b16 %v2320, %v2318
        %v2365 = vpack.c.b16 %v2323, %v2321
        %v2366 = vpack.c.b16 %v2324, %v2322
        %v2367 = vpack.c.b16 %v2327, %v2325
        %v2368 = vpack.c.b16 %v2328, %v2326
        %v2369 = vpack.c.b16 %v2331, %v2329
        %v2370 = vpack.c.b16 %v2332, %v2330
        %v2371 = vpack.c.b16 %v2335, %v2333
        %v2372 = vpack.c.b16 %v2336, %v2334
        %v2373 = vpack.c.b16 %v2339, %v2337
        %v2374 = vpack.c.b16 %v2340, %v2338
        %v2375 = vpack.c.b16 %v2343, %v2341
        %v2376 = vpack.c.b16 %v2344, %v2342
        %2409 = vmatprep.subr.bf16.mxu0 %v2360
        %2410 = vmatpush1.bf16.msra.mxu0 %v2359
        %2411 = vmatprep.subr.bf16.mxu0 %v2358
        %2412 = vmatpush1.bf16.msra.mxu0 %v2357
        %2413 = vmatprep.subr.bf16.mxu0 %v2356
        %2414 = vmatpush1.bf16.msra.mxu0 %v2355
        %2415 = vmatprep.subr.bf16.mxu0 %v2354
        %2416 = vmatpush1.bf16.msra.mxu0 %v2353
        %2417 = vmatprep.subr.bf16.mxu0 %v2352
        %2418 = vmatpush1.bf16.msra.mxu0 %v2351
        %2419 = vmatprep.subr.bf16.mxu0 %v2350
        %2420 = vmatpush1.bf16.msra.mxu0 %v2349
        %2421 = vmatprep.subr.bf16.mxu0 %v2348
        %2422 = vmatpush1.bf16.msra.mxu0 %v2347
        %2423 = vmatprep.subr.bf16.mxu0 %v2346
        %2424 = vmatpush1.bf16.msra.mxu0 %v2345
        %2425 = vmatprep.subr.bf16.mxu0 %v2376
        %2426 = vmatpush2.bf16.msra.mxu0 %v2375
        %2427 = vmatprep.subr.bf16.mxu0 %v2374
        %2428 = vmatpush2.bf16.msra.mxu0 %v2373
        %2429 = vmatprep.subr.bf16.mxu0 %v2372
        %2430 = vmatpush2.bf16.msra.mxu0 %v2371
        %2431 = vmatprep.subr.bf16.mxu0 %v2370
        %2432 = vmatpush2.bf16.msra.mxu0 %v2369
        %2433 = vmatprep.subr.bf16.mxu0 %v2368
        %2434 = vmatpush2.bf16.msra.mxu0 %v2367
        %2435 = vmatprep.subr.bf16.mxu0 %v2366
        %2436 = vmatpush2.bf16.msra.mxu0 %v2365
        %2437 = vmatprep.subr.bf16.mxu0 %v2364
        %2438 = vmatpush2.bf16.msra.mxu0 %v2363
        %2439 = vmatprep.subr.bf16.mxu0 %v2362
        %2440 = vmatpush2.bf16.msra.mxu0 %v2361
        %2441 = vmatprep.mubr.bf16.mxu0 %v2190
        %2442 = vmatmul.mubr.bf16.gmra.mxu0 %v2189
        %v2443 = vpop.f32.mrf.mxu0
        %v2444 = vadd.f32 %v2242, %v2443
        %v2445 = vpop.f32.mrf.mxu0
        %v2446 = vadd.f32 %v2246, %v2445
        %v2447 = vpop.f32.mrf.mxu0
        %v2448 = vadd.f32 %v2242, %v2447
        %v2449 = vpop.f32.mrf.mxu0
        %v2450 = vadd.f32 %v2246, %v2449
        %2451 = vmatprep.mubr.bf16.mxu0 %v2192
        %2452 = vmatmul.mubr.bf16.gmra.mxu0 %v2191
        %v2453 = vpop.f32.mrf.mxu0
        %v2454 = vadd.f32 %v2242, %v2453
        %v2455 = vpop.f32.mrf.mxu0
        %v2456 = vadd.f32 %v2246, %v2455
        %v2457 = vpop.f32.mrf.mxu0
        %v2458 = vadd.f32 %v2242, %v2457
        %v2459 = vpop.f32.mrf.mxu0
        %v2460 = vadd.f32 %v2246, %v2459
        %2461 = vmatprep.mubr.bf16.mxu0 %v2194
        %2462 = vmatmul.mubr.bf16.gmra.mxu0 %v2193
        %v2463 = vpop.f32.mrf.mxu0
        %v2464 = vadd.f32 %v2242, %v2463
        %v2465 = vpop.f32.mrf.mxu0
        %v2466 = vadd.f32 %v2246, %v2465
        %v2467 = vpop.f32.mrf.mxu0
        %v2468 = vadd.f32 %v2242, %v2467
        %v2469 = vpop.f32.mrf.mxu0
        %v2470 = vadd.f32 %v2246, %v2469
        %2471 = vmatprep.mubr.bf16.mxu0 %v2196
        %2472 = vmatmul.mubr.bf16.gmra.mxu0 %v2195
        %v2473 = vpop.f32.mrf.mxu0
        %v2474 = vadd.f32 %v2242, %v2473
        %v2475 = vpop.f32.mrf.mxu0
        %v2476 = vadd.f32 %v2246, %v2475
        %v2477 = vpop.f32.mrf.mxu0
        %v2478 = vadd.f32 %v2242, %v2477
        %v2479 = vpop.f32.mrf.mxu0
        %v2480 = vadd.f32 %v2246, %v2479
        %2481 = vmatprep.mubr.bf16.mxu0 %v2198
        %2482 = vmatmul.mubr.bf16.gmra.mxu0 %v2197
        %v2483 = vpop.f32.mrf.mxu0
        %v2484 = vadd.f32 %v2242, %v2483
        %v2485 = vpop.f32.mrf.mxu0
        %v2486 = vadd.f32 %v2246, %v2485
        %v2487 = vpop.f32.mrf.mxu0
        %v2488 = vadd.f32 %v2242, %v2487
        %v2489 = vpop.f32.mrf.mxu0
        %v2490 = vadd.f32 %v2246, %v2489
        %2491 = vmatprep.mubr.bf16.mxu0 %v2200
        %2492 = vmatmul.mubr.bf16.gmra.mxu0 %v2199
        %v2493 = vpop.f32.mrf.mxu0
        %v2494 = vadd.f32 %v2242, %v2493
        %v2495 = vpop.f32.mrf.mxu0
        %v2496 = vadd.f32 %v2246, %v2495
        %v2497 = vpop.f32.mrf.mxu0
        %v2498 = vadd.f32 %v2242, %v2497
        %v2499 = vpop.f32.mrf.mxu0
        %v2500 = vadd.f32 %v2246, %v2499
        %2501 = vmatprep.mubr.bf16.mxu0 %v2202
        %2502 = vmatmul.mubr.bf16.gmra.mxu0 %v2201
        %v2503 = vpop.f32.mrf.mxu0
        %v2504 = vadd.f32 %v2242, %v2503
        %v2505 = vpop.f32.mrf.mxu0
        %v2506 = vadd.f32 %v2246, %v2505
        %v2507 = vpop.f32.mrf.mxu0
        %v2508 = vpop.f32.mrf.mxu0
        %2509 = vdwg.mxu0
        %s2510 = scalar_lea.vmem %s7, 2
        %v2511 = vld [vmem:[%s2510] ss:$8 sm:$0x3]
        %s2512 = scalar_lea.vmem %s8, 2
        %v2513 = vld [vmem:[%s2512] ss:$8 sm:$0x3]
        %v2514 = vadd.f32 %v2444, %v2446
        %2515 = vadd.xlane.f32.xlu0 %v2514
        %v2516 = vpop.xlane.xlu0 %2515
        %v2517 = vadd.f32 %v2448, %v2450
        %2518 = vadd.xlane.f32.xlu0 %v2517
        %v2519 = vpop.xlane.xlu0 %2518
        %v2520 = vadd.f32 %v2454, %v2456
        %2521 = vadd.xlane.f32.xlu0 %v2520
        %v2522 = vpop.xlane.xlu0 %2521
        %v2523 = vadd.f32 %v2458, %v2460
        %2524 = vadd.xlane.f32.xlu0 %v2523
        %v2525 = vpop.xlane.xlu0 %2524
        %v2526 = vadd.f32 %v2464, %v2466
        %2527 = vadd.xlane.f32.xlu0 %v2526
        %v2528 = vpop.xlane.xlu0 %2527
        %v2529 = vadd.f32 %v2468, %v2470
        %2530 = vadd.xlane.f32.xlu0 %v2529
        %v2531 = vpop.xlane.xlu0 %2530
        %v2532 = vadd.f32 %v2474, %v2476
        %2533 = vadd.xlane.f32.xlu0 %v2532
        %v2534 = vpop.xlane.xlu0 %2533
        %v2535 = vadd.f32 %v2478, %v2480
        %2536 = vadd.xlane.f32.xlu0 %v2535
        %v2537 = vpop.xlane.xlu0 %2536
        %v2538 = vadd.f32 %v2484, %v2486
        %2539 = vadd.xlane.f32.xlu0 %v2538
        %v2540 = vpop.xlane.xlu0 %2539
        %v2541 = vadd.f32 %v2488, %v2490
        %2542 = vadd.xlane.f32.xlu0 %v2541
        %v2543 = vpop.xlane.xlu0 %2542
        %v2544 = vadd.f32 %v2494, %v2496
        %2545 = vadd.xlane.f32.xlu0 %v2544
        %v2546 = vpop.xlane.xlu0 %2545
        %v2547 = vadd.f32 %v2498, %v2500
        %2548 = vadd.xlane.f32.xlu0 %v2547
        %v2549 = vpop.xlane.xlu0 %2548
        %v2550 = vadd.f32 %v2504, %v2506
        %2551 = vadd.xlane.f32.xlu0 %v2550
        %v2552 = vpop.xlane.xlu0 %2551
        %v2553 = vmul.f32 %v2516, %v1209
        %v2554 = vmul.f32 %v2519, %v1209
        %v2555 = vmul.f32 %v2522, %v1209
        %v2556 = vmul.f32 %v2525, %v1209
        %v2557 = vmul.f32 %v2528, %v1209
        %v2558 = vmul.f32 %v2531, %v1209
        %v2559 = vmul.f32 %v2534, %v1209
        %v2560 = vmul.f32 %v2537, %v1209
        %v2561 = vmul.f32 %v2540, %v1209
        %v2562 = vmul.f32 %v2543, %v1209
        %v2563 = vmul.f32 %v2546, %v1209
        %v2564 = vmul.f32 %v2549, %v1209
        %v2565 = vmul.f32 %v2552, %v1209
        %v2566 = vmul.f32 %v2444, %v2444
        %v2567 = vmul.f32 %v2446, %v2446
        %v2568 = vmul.f32 %v2448, %v2448
        %v2569 = vmul.f32 %v2450, %v2450
        %v2570 = vmul.f32 %v2454, %v2454
        %v2571 = vmul.f32 %v2456, %v2456
        %v2572 = vmul.f32 %v2458, %v2458
        %v2573 = vmul.f32 %v2460, %v2460
        %v2574 = vmul.f32 %v2464, %v2464
        %v2575 = vmul.f32 %v2466, %v2466
        %v2576 = vmul.f32 %v2468, %v2468
        %v2577 = vmul.f32 %v2470, %v2470
        %v2578 = vmul.f32 %v2474, %v2474
        %v2579 = vmul.f32 %v2476, %v2476
        %v2580 = vmul.f32 %v2478, %v2478
        %v2581 = vmul.f32 %v2480, %v2480
        %v2582 = vmul.f32 %v2484, %v2484
        %v2583 = vmul.f32 %v2486, %v2486
        %v2584 = vmul.f32 %v2488, %v2488
        %v2585 = vmul.f32 %v2490, %v2490
        %v2586 = vmul.f32 %v2494, %v2494
        %v2587 = vmul.f32 %v2496, %v2496
        %v2588 = vmul.f32 %v2498, %v2498
        %v2589 = vmul.f32 %v2500, %v2500
        %v2590 = vmul.f32 %v2504, %v2504
        %v2591 = vmul.f32 %v2506, %v2506
        %v2592 = vadd.f32 %v2566, %v2567
        %2593 = vadd.xlane.f32.xlu0 %v2592
        %v2594 = vpop.xlane.xlu0 %2593
        %v2595 = vadd.f32 %v2568, %v2569
        %2596 = vadd.xlane.f32.xlu0 %v2595
        %v2597 = vpop.xlane.xlu0 %2596
        %v2598 = vadd.f32 %v2570, %v2571
        %2599 = vadd.xlane.f32.xlu0 %v2598
        %v2600 = vpop.xlane.xlu0 %2599
        %v2601 = vadd.f32 %v2572, %v2573
        %2602 = vadd.xlane.f32.xlu0 %v2601
        %v2603 = vpop.xlane.xlu0 %2602
        %v2604 = vadd.f32 %v2574, %v2575
        %2605 = vadd.xlane.f32.xlu0 %v2604
        %v2606 = vpop.xlane.xlu0 %2605
        %v2607 = vadd.f32 %v2576, %v2577
        %2608 = vadd.xlane.f32.xlu0 %v2607
        %v2609 = vpop.xlane.xlu0 %2608
        %v2610 = vadd.f32 %v2578, %v2579
        %2611 = vadd.xlane.f32.xlu0 %v2610
        %v2612 = vpop.xlane.xlu0 %2611
        %v2613 = vadd.f32 %v2580, %v2581
        %2614 = vadd.xlane.f32.xlu0 %v2613
        %v2615 = vpop.xlane.xlu0 %2614
        %v2616 = vadd.f32 %v2582, %v2583
        %2617 = vadd.xlane.f32.xlu0 %v2616
        %v2618 = vpop.xlane.xlu0 %2617
        %v2619 = vadd.f32 %v2584, %v2585
        %2620 = vadd.xlane.f32.xlu0 %v2619
        %v2621 = vpop.xlane.xlu0 %2620
        %v2622 = vadd.f32 %v2586, %v2587
        %2623 = vadd.xlane.f32.xlu0 %v2622
        %v2624 = vpop.xlane.xlu0 %2623
        %v2625 = vadd.f32 %v2588, %v2589
        %2626 = vadd.xlane.f32.xlu0 %v2625
        %v2627 = vpop.xlane.xlu0 %2626
        %v2628 = vadd.f32 %v2590, %v2591
        %2629 = vadd.xlane.f32.xlu0 %v2628
        %v2630 = vpop.xlane.xlu0 %2629
        %v2631 = vmul.f32 %v2594, %v1209
        %v2632 = vmul.f32 %v2597, %v1209
        %v2633 = vmul.f32 %v2600, %v1209
        %v2634 = vmul.f32 %v2603, %v1209
        %v2635 = vmul.f32 %v2606, %v1209
        %v2636 = vmul.f32 %v2609, %v1209
        %v2637 = vmul.f32 %v2612, %v1209
        %v2638 = vmul.f32 %v2615, %v1209
        %v2639 = vmul.f32 %v2618, %v1209
        %v2640 = vmul.f32 %v2621, %v1209
        %v2641 = vmul.f32 %v2624, %v1209
        %v2642 = vmul.f32 %v2627, %v1209
        %v2643 = vmul.f32 %v2630, %v1209
        %v2644 = vmul.f32 %v2553, %v2553
        %v2645 = vmul.f32 %v2554, %v2554
        %v2646 = vmul.f32 %v2555, %v2555
        %v2647 = vmul.f32 %v2556, %v2556
        %v2648 = vmul.f32 %v2557, %v2557
        %v2649 = vmul.f32 %v2558, %v2558
        %v2650 = vmul.f32 %v2559, %v2559
        %v2651 = vmul.f32 %v2560, %v2560
        %v2652 = vmul.f32 %v2561, %v2561
        %v2653 = vmul.f32 %v2562, %v2562
        %v2654 = vmul.f32 %v2563, %v2563
        %v2655 = vmul.f32 %v2564, %v2564
        %v2656 = vmul.f32 %v2565, %v2565
        %v2657 = vsub.f32 %v2631, %v2644
        %v2658 = vsub.f32 %v2632, %v2645
        %v2659 = vsub.f32 %v2633, %v2646
        %v2660 = vsub.f32 %v2634, %v2647
        %v2661 = vsub.f32 %v2635, %v2648
        %v2662 = vsub.f32 %v2636, %v2649
        %v2663 = vsub.f32 %v2637, %v2650
        %v2664 = vsub.f32 %v2638, %v2651
        %v2665 = vsub.f32 %v2639, %v2652
        %v2666 = vsub.f32 %v2640, %v2653
        %v2667 = vsub.f32 %v2641, %v2654
        %v2668 = vsub.f32 %v2642, %v2655
        %v2669 = vsub.f32 %v2643, %v2656
        %v2670 = vmax.f32 %v2657, 0.0
        %v2671 = vmax.f32 %v2658, 0.0
        %v2672 = vmax.f32 %v2659, 0.0
        %v2673 = vmax.f32 %v2660, 0.0
        %v2674 = vmax.f32 %v2661, 0.0
        %v2675 = vmax.f32 %v2662, 0.0
        %v2676 = vmax.f32 %v2663, 0.0
        %v2677 = vmax.f32 %v2664, 0.0
        %v2678 = vmax.f32 %v2665, 0.0
        %v2679 = vmax.f32 %v2666, 0.0
        %v2680 = vmax.f32 %v2667, 0.0
        %v2681 = vmax.f32 %v2668, 0.0
        %v2682 = vmax.f32 %v2669, 0.0
        %v2683 = vsub.f32 %v2444, %v2553
        %v2684 = vsub.f32 %v2446, %v2553
        %v2685 = vsub.f32 %v2448, %v2554
        %v2686 = vsub.f32 %v2450, %v2554
        %v2687 = vsub.f32 %v2454, %v2555
        %v2688 = vsub.f32 %v2456, %v2555
        %v2689 = vsub.f32 %v2458, %v2556
        %v2690 = vsub.f32 %v2460, %v2556
        %v2691 = vsub.f32 %v2464, %v2557
        %v2692 = vsub.f32 %v2466, %v2557
        %v2693 = vsub.f32 %v2468, %v2558
        %v2694 = vsub.f32 %v2470, %v2558
        %v2695 = vsub.f32 %v2474, %v2559
        %v2696 = vsub.f32 %v2476, %v2559
        %v2697 = vsub.f32 %v2478, %v2560
        %v2698 = vsub.f32 %v2480, %v2560
        %v2699 = vsub.f32 %v2484, %v2561
        %v2700 = vsub.f32 %v2486, %v2561
        %v2701 = vsub.f32 %v2488, %v2562
        %v2702 = vsub.f32 %v2490, %v2562
        %v2703 = vsub.f32 %v2494, %v2563
        %v2704 = vsub.f32 %v2496, %v2563
        %v2705 = vsub.f32 %v2498, %v2564
        %v2706 = vsub.f32 %v2500, %v2564
        %v2707 = vsub.f32 %v2504, %v2565
        %v2708 = vsub.f32 %v2506, %v2565
        %v2709 = vadd.f32 %v2670, 1e-05
        %v2710 = vadd.f32 %v2671, 1e-05
        %v2711 = vadd.f32 %v2672, 1e-05
        %v2712 = vadd.f32 %v2673, 1e-05
        %v2713 = vadd.f32 %v2674, 1e-05
        %v2714 = vadd.f32 %v2675, 1e-05
        %v2715 = vadd.f32 %v2676, 1e-05
        %v2716 = vadd.f32 %v2677, 1e-05
        %v2717 = vadd.f32 %v2678, 1e-05
        %v2718 = vadd.f32 %v2679, 1e-05
        %v2719 = vadd.f32 %v2680, 1e-05
        %v2720 = vadd.f32 %v2681, 1e-05
        %v2721 = vadd.f32 %v2682, 1e-05
        %v2722 = vrsqrt.pop %v2709
        %v2723 = vrsqrt.pop %v2710
        %v2724 = vrsqrt.pop %v2711
        %v2725 = vrsqrt.pop %v2712
        %v2726 = vrsqrt.pop %v2713
        %v2727 = vrsqrt.pop %v2714
        %v2728 = vrsqrt.pop %v2715
        %v2729 = vrsqrt.pop %v2716
        %v2730 = vrsqrt.pop %v2717
        %v2731 = vrsqrt.pop %v2718
        %v2732 = vrsqrt.pop %v2719
        %v2733 = vrsqrt.pop %v2720
        %v2734 = vrsqrt.pop %v2721
        %v2735 = vmul.f32 %v2683, %v2722
        %v2736 = vmul.f32 %v2684, %v2722
        %v2737 = vmul.f32 %v2685, %v2723
        %v2738 = vmul.f32 %v2686, %v2723
        %v2739 = vmul.f32 %v2687, %v2724
        %v2740 = vmul.f32 %v2688, %v2724
        %v2741 = vmul.f32 %v2689, %v2725
        %v2742 = vmul.f32 %v2690, %v2725
        %v2743 = vmul.f32 %v2691, %v2726
        %v2744 = vmul.f32 %v2692, %v2726
        %v2745 = vmul.f32 %v2693, %v2727
        %v2746 = vmul.f32 %v2694, %v2727
        %v2747 = vmul.f32 %v2695, %v2728
        %v2748 = vmul.f32 %v2696, %v2728
        %v2749 = vmul.f32 %v2697, %v2729
        %v2750 = vmul.f32 %v2698, %v2729
        %v2751 = vmul.f32 %v2699, %v2730
        %v2752 = vmul.f32 %v2700, %v2730
        %v2753 = vmul.f32 %v2701, %v2731
        %v2754 = vmul.f32 %v2702, %v2731
        %v2755 = vmul.f32 %v2703, %v2732
        %v2756 = vmul.f32 %v2704, %v2732
        %v2757 = vmul.f32 %v2705, %v2733
        %v2758 = vmul.f32 %v2706, %v2733
        %v2759 = vmul.f32 %v2707, %v2734
        %v2760 = vmul.f32 %v2708, %v2734
        %v2762 = vlaneseq
        %v2763 = vshrl.u32 %v2762, 7
        %v2764 = vsub.s32 0, %v2763
        %v2765 = vrot.slane %v2511, %v2764
        %v2766 = vlaneseq
        %v2767 = vshrl.u32 %v2766, 7
        %v2768 = vsub.s32 1, %v2767
        %v2769 = vrot.slane %v2511, %v2768
        %v2772 = vmul.f32 %v2735, %v2765
        %v2773 = vmul.f32 %v2736, %v2769
        %v2774 = vmul.f32 %v2737, %v2765
        %v2775 = vmul.f32 %v2738, %v2769
        %v2776 = vmul.f32 %v2739, %v2765
        %v2777 = vmul.f32 %v2740, %v2769
        %v2778 = vmul.f32 %v2741, %v2765
        %v2779 = vmul.f32 %v2742, %v2769
        %v2780 = vmul.f32 %v2743, %v2765
        %v2781 = vmul.f32 %v2744, %v2769
        %v2782 = vmul.f32 %v2745, %v2765
        %v2783 = vmul.f32 %v2746, %v2769
        %v2784 = vmul.f32 %v2747, %v2765
        %v2785 = vmul.f32 %v2748, %v2769
        %v2786 = vmul.f32 %v2749, %v2765
        %v2787 = vmul.f32 %v2750, %v2769
        %v2788 = vmul.f32 %v2751, %v2765
        %v2789 = vmul.f32 %v2752, %v2769
        %v2790 = vmul.f32 %v2753, %v2765
        %v2791 = vmul.f32 %v2754, %v2769
        %v2792 = vmul.f32 %v2755, %v2765
        %v2793 = vmul.f32 %v2756, %v2769
        %v2794 = vmul.f32 %v2757, %v2765
        %v2795 = vmul.f32 %v2758, %v2769
        %v2796 = vmul.f32 %v2759, %v2765
        %v2797 = vmul.f32 %v2760, %v2769
        %v2799 = vlaneseq
        %v2800 = vshrl.u32 %v2799, 7
        %v2801 = vsub.s32 0, %v2800
        %v2802 = vrot.slane %v2513, %v2801
        %v2803 = vlaneseq
        %v2804 = vshrl.u32 %v2803, 7
        %v2805 = vsub.s32 1, %v2804
        %v2806 = vrot.slane %v2513, %v2805
        %v2809 = vadd.f32 %v2772, %v2802
        %v2810 = vadd.f32 %v2773, %v2806
        %v2811 = vadd.f32 %v2774, %v2802
        %v2812 = vadd.f32 %v2775, %v2806
        %v2813 = vadd.f32 %v2776, %v2802
        %v2814 = vadd.f32 %v2777, %v2806
        %v2815 = vadd.f32 %v2778, %v2802
        %v2816 = vadd.f32 %v2779, %v2806
        %v2817 = vadd.f32 %v2780, %v2802
        %v2818 = vadd.f32 %v2781, %v2806
        %v2819 = vadd.f32 %v2782, %v2802
        %v2820 = vadd.f32 %v2783, %v2806
        %v2821 = vadd.f32 %v2784, %v2802
        %v2822 = vadd.f32 %v2785, %v2806
        %v2823 = vadd.f32 %v2786, %v2802
        %v2824 = vadd.f32 %v2787, %v2806
        %v2825 = vadd.f32 %v2788, %v2802
        %v2826 = vadd.f32 %v2789, %v2806
        %v2827 = vadd.f32 %v2790, %v2802
        %v2828 = vadd.f32 %v2791, %v2806
        %v2829 = vadd.f32 %v2792, %v2802
        %v2830 = vadd.f32 %v2793, %v2806
        %v2831 = vadd.f32 %v2794, %v2802
        %v2832 = vadd.f32 %v2795, %v2806
        %v2833 = vadd.f32 %v2796, %v2802
        %v2834 = vadd.f32 %v2797, %v2806
        %v2835 = vmax.f32 %v2809, 0.0
        %v2836 = vmax.f32 %v2810, 0.0
        %v2837 = vmax.f32 %v2811, 0.0
        %v2838 = vmax.f32 %v2812, 0.0
        %v2839 = vmax.f32 %v2813, 0.0
        %v2840 = vmax.f32 %v2814, 0.0
        %v2841 = vmax.f32 %v2815, 0.0
        %v2842 = vmax.f32 %v2816, 0.0
        %v2843 = vmax.f32 %v2817, 0.0
        %v2844 = vmax.f32 %v2818, 0.0
        %v2845 = vmax.f32 %v2819, 0.0
        %v2846 = vmax.f32 %v2820, 0.0
        %v2847 = vmax.f32 %v2821, 0.0
        %v2848 = vmax.f32 %v2822, 0.0
        %v2849 = vmax.f32 %v2823, 0.0
        %v2850 = vmax.f32 %v2824, 0.0
        %v2851 = vmax.f32 %v2825, 0.0
        %v2852 = vmax.f32 %v2826, 0.0
        %v2853 = vmax.f32 %v2827, 0.0
        %v2854 = vmax.f32 %v2828, 0.0
        %v2855 = vmax.f32 %v2829, 0.0
        %v2856 = vmax.f32 %v2830, 0.0
        %v2857 = vmax.f32 %v2831, 0.0
        %v2858 = vmax.f32 %v2832, 0.0
        %v2859 = vmax.f32 %v2833, 0.0
        %v2860 = vmax.f32 %v2834, 0.0
        %v2861 = vpack.c.bf16 %v2837, %v2835
        %v2862 = vpack.c.bf16 %v2838, %v2836
        %v2863 = vpack.c.bf16 %v2841, %v2839
        %v2864 = vpack.c.bf16 %v2842, %v2840
        %v2865 = vpack.c.bf16 %v2845, %v2843
        %v2866 = vpack.c.bf16 %v2846, %v2844
        %v2867 = vpack.c.bf16 %v2849, %v2847
        %v2868 = vpack.c.bf16 %v2850, %v2848
        %v2869 = vpack.c.bf16 %v2853, %v2851
        %v2870 = vpack.c.bf16 %v2854, %v2852
        %v2871 = vpack.c.bf16 %v2857, %v2855
        %v2872 = vpack.c.bf16 %v2858, %v2856
        %v2873 = vpack.c.bf16 %v2859, %v2859
        %v2874 = vpack.c.bf16 %v2860, %v2860
        %s2875 = scalar_lea.vmem [#allocation2], 512
        %v2876 = vld [vmem:[%s2875] sm:$0xff]
        %v2877 = vld [vmem:[%s2875 + $0x8] sm:$0xff]
        %v2878 = vld [vmem:[%s2875 + $0x10] sm:$0xff]
        %v2879 = vld [vmem:[%s2875 + $0x18] sm:$0xff]
        %v2880 = vld [vmem:[%s2875 + $0x20] sm:$0xff]
        %v2881 = vld [vmem:[%s2875 + $0x28] sm:$0xff]
        %v2882 = vld [vmem:[%s2875 + $0x30] sm:$0xff]
        %v2883 = vld [vmem:[%s2875 + $0x38] sm:$0xff]
        %v2884 = vld [vmem:[%s2875 + $0x40] sm:$0xff]
        %v2885 = vld [vmem:[%s2875 + $0x48] sm:$0xff]
        %v2886 = vld [vmem:[%s2875 + $0x50] sm:$0xff]
        %v2887 = vld [vmem:[%s2875 + $0x58] sm:$0xff]
        %v2888 = vld [vmem:[%s2875 + $0x60] sm:$0xff]
        %v2889 = vld [vmem:[%s2875 + $0x68] sm:$0xff]
        %v2890 = vld [vmem:[%s2875 + $0x70] sm:$0xff]
        %v2891 = vld [vmem:[%s2875 + $0x78] sm:$0xff]
        %v2892 = vld [vmem:[%s2875 + $0x80] sm:$0xff]
        %v2893 = vld [vmem:[%s2875 + $0x88] sm:$0xff]
        %v2894 = vld [vmem:[%s2875 + $0x90] sm:$0xff]
        %v2895 = vld [vmem:[%s2875 + $0x98] sm:$0xff]
        %v2896 = vld [vmem:[%s2875 + $0xa0] sm:$0xff]
        %v2897 = vld [vmem:[%s2875 + $0xa8] sm:$0xff]
        %v2898 = vld [vmem:[%s2875 + $0xb0] sm:$0xff]
        %v2899 = vld [vmem:[%s2875 + $0xb8] sm:$0xff]
        %v2900 = vld [vmem:[%s2875 + $0xc0] sm:$0xff]
        %v2901 = vld [vmem:[%s2875 + $0xc8] sm:$0xff]
        %v2902 = vld [vmem:[%s2875 + $0xd0] sm:$0xff]
        %v2903 = vld [vmem:[%s2875 + $0xd8] sm:$0xff]
        %v2904 = vld [vmem:[%s2875 + $0xe0] sm:$0xff]
        %v2905 = vld [vmem:[%s2875 + $0xe8] sm:$0xff]
        %v2906 = vld [vmem:[%s2875 + $0xf0] sm:$0xff]
        %v2907 = vld [vmem:[%s2875 + $0xf8] sm:$0xff]
        %s2908 = scalar_lea.vmem %s6, 3
        %v2909 = vld [vmem:[%s2908] ss:$8 sm:$0x3]
        %v2911 = vlaneseq
        %v2912 = vshrl.u32 %v2911, 7
        %v2913 = vsub.s32 0, %v2912
        %v2914 = vrot.slane %v2909, %v2913
        %v2915 = vlaneseq
        %v2916 = vshrl.u32 %v2915, 7
        %v2917 = vsub.s32 1, %v2916
        %v2918 = vrot.slane %v2909, %v2917
        %v2953 = vunpack.c.l.b16 %v2876
        %v2954 = vunpack.c.h.b16 %v2876
        %v2955 = vunpack.c.l.b16 %v2877
        %v2956 = vunpack.c.h.b16 %v2877
        %v2957 = vunpack.c.l.b16 %v2878
        %v2958 = vunpack.c.h.b16 %v2878
        %v2959 = vunpack.c.l.b16 %v2879
        %v2960 = vunpack.c.h.b16 %v2879
        %v2961 = vunpack.c.l.b16 %v2880
        %v2962 = vunpack.c.h.b16 %v2880
        %v2963 = vunpack.c.l.b16 %v2881
        %v2964 = vunpack.c.h.b16 %v2881
        %v2965 = vunpack.c.l.b16 %v2882
        %v2966 = vunpack.c.h.b16 %v2882
        %v2967 = vunpack.c.l.b16 %v2883
        %v2968 = vunpack.c.h.b16 %v2883
        %v2969 = vunpack.c.l.b16 %v2884
        %v2970 = vunpack.c.h.b16 %v2884
        %v2971 = vunpack.c.l.b16 %v2885
        %v2972 = vunpack.c.h.b16 %v2885
        %v2973 = vunpack.c.l.b16 %v2886
        %v2974 = vunpack.c.h.b16 %v2886
        %v2975 = vunpack.c.l.b16 %v2887
        %v2976 = vunpack.c.h.b16 %v2887
        %v2977 = vunpack.c.l.b16 %v2888
        %v2978 = vunpack.c.h.b16 %v2888
        %v2979 = vunpack.c.l.b16 %v2889
        %v2980 = vunpack.c.h.b16 %v2889
        %v2981 = vunpack.c.l.b16 %v2890
        %v2982 = vunpack.c.h.b16 %v2890
        %v2983 = vunpack.c.l.b16 %v2891
        %v2984 = vunpack.c.h.b16 %v2891
        %v2985 = vunpack.c.l.b16 %v2892
        %v2986 = vunpack.c.h.b16 %v2892
        %v2987 = vunpack.c.l.b16 %v2893
        %v2988 = vunpack.c.h.b16 %v2893
        %v2989 = vunpack.c.l.b16 %v2894
        %v2990 = vunpack.c.h.b16 %v2894
        %v2991 = vunpack.c.l.b16 %v2895
        %v2992 = vunpack.c.h.b16 %v2895
        %v2993 = vunpack.c.l.b16 %v2896
        %v2994 = vunpack.c.h.b16 %v2896
        %v2995 = vunpack.c.l.b16 %v2897
        %v2996 = vunpack.c.h.b16 %v2897
        %v2997 = vunpack.c.l.b16 %v2898
        %v2998 = vunpack.c.h.b16 %v2898
        %v2999 = vunpack.c.l.b16 %v2899
        %v3000 = vunpack.c.h.b16 %v2899
        %v3001 = vunpack.c.l.b16 %v2900
        %v3002 = vunpack.c.h.b16 %v2900
        %v3003 = vunpack.c.l.b16 %v2901
        %v3004 = vunpack.c.h.b16 %v2901
        %v3005 = vunpack.c.l.b16 %v2902
        %v3006 = vunpack.c.h.b16 %v2902
        %v3007 = vunpack.c.l.b16 %v2903
        %v3008 = vunpack.c.h.b16 %v2903
        %v3009 = vunpack.c.l.b16 %v2904
        %v3010 = vunpack.c.h.b16 %v2904
        %v3011 = vunpack.c.l.b16 %v2905
        %v3012 = vunpack.c.h.b16 %v2905
        %v3013 = vunpack.c.l.b16 %v2906
        %v3014 = vunpack.c.h.b16 %v2906
        %v3015 = vunpack.c.l.b16 %v2907
        %v3016 = vunpack.c.h.b16 %v2907
        %v3017 = vpack.c.b16 %v2955, %v2953
        %v3018 = vpack.c.b16 %v2956, %v2954
        %v3019 = vpack.c.b16 %v2959, %v2957
        %v3020 = vpack.c.b16 %v2960, %v2958
        %v3021 = vpack.c.b16 %v2963, %v2961
        %v3022 = vpack.c.b16 %v2964, %v2962
        %v3023 = vpack.c.b16 %v2967, %v2965
        %v3024 = vpack.c.b16 %v2968, %v2966
        %v3025 = vpack.c.b16 %v2971, %v2969
        %v3026 = vpack.c.b16 %v2972, %v2970
        %v3027 = vpack.c.b16 %v2975, %v2973
        %v3028 = vpack.c.b16 %v2976, %v2974
        %v3029 = vpack.c.b16 %v2979, %v2977
        %v3030 = vpack.c.b16 %v2980, %v2978
        %v3031 = vpack.c.b16 %v2983, %v2981
        %v3032 = vpack.c.b16 %v2984, %v2982
        %v3033 = vpack.c.b16 %v2987, %v2985
        %v3034 = vpack.c.b16 %v2988, %v2986
        %v3035 = vpack.c.b16 %v2991, %v2989
        %v3036 = vpack.c.b16 %v2992, %v2990
        %v3037 = vpack.c.b16 %v2995, %v2993
        %v3038 = vpack.c.b16 %v2996, %v2994
        %v3039 = vpack.c.b16 %v2999, %v2997
        %v3040 = vpack.c.b16 %v3000, %v2998
        %v3041 = vpack.c.b16 %v3003, %v3001
        %v3042 = vpack.c.b16 %v3004, %v3002
        %v3043 = vpack.c.b16 %v3007, %v3005
        %v3044 = vpack.c.b16 %v3008, %v3006
        %v3045 = vpack.c.b16 %v3011, %v3009
        %v3046 = vpack.c.b16 %v3012, %v3010
        %v3047 = vpack.c.b16 %v3015, %v3013
        %v3048 = vpack.c.b16 %v3016, %v3014
        %3081 = vmatprep.subr.bf16.mxu0 %v3032
        %3082 = vmatpush1.bf16.msra.mxu0 %v3031
        %3083 = vmatprep.subr.bf16.mxu0 %v3030
        %3084 = vmatpush1.bf16.msra.mxu0 %v3029
        %3085 = vmatprep.subr.bf16.mxu0 %v3028
        %3086 = vmatpush1.bf16.msra.mxu0 %v3027
        %3087 = vmatprep.subr.bf16.mxu0 %v3026
        %3088 = vmatpush1.bf16.msra.mxu0 %v3025
        %3089 = vmatprep.subr.bf16.mxu0 %v3024
        %3090 = vmatpush1.bf16.msra.mxu0 %v3023
        %3091 = vmatprep.subr.bf16.mxu0 %v3022
        %3092 = vmatpush1.bf16.msra.mxu0 %v3021
        %3093 = vmatprep.subr.bf16.mxu0 %v3020
        %3094 = vmatpush1.bf16.msra.mxu0 %v3019
        %3095 = vmatprep.subr.bf16.mxu0 %v3018
        %3096 = vmatpush1.bf16.msra.mxu0 %v3017
        %3097 = vmatprep.subr.bf16.mxu0 %v3048
        %3098 = vmatpush2.bf16.msra.mxu0 %v3047
        %3099 = vmatprep.subr.bf16.mxu0 %v3046
        %3100 = vmatpush2.bf16.msra.mxu0 %v3045
        %3101 = vmatprep.subr.bf16.mxu0 %v3044
        %3102 = vmatpush2.bf16.msra.mxu0 %v3043
        %3103 = vmatprep.subr.bf16.mxu0 %v3042
        %3104 = vmatpush2.bf16.msra.mxu0 %v3041
        %3105 = vmatprep.subr.bf16.mxu0 %v3040
        %3106 = vmatpush2.bf16.msra.mxu0 %v3039
        %3107 = vmatprep.subr.bf16.mxu0 %v3038
        %3108 = vmatpush2.bf16.msra.mxu0 %v3037
        %3109 = vmatprep.subr.bf16.mxu0 %v3036
        %3110 = vmatpush2.bf16.msra.mxu0 %v3035
        %3111 = vmatprep.subr.bf16.mxu0 %v3034
        %3112 = vmatpush2.bf16.msra.mxu0 %v3033
        %3113 = vmatprep.mubr.bf16.mxu0 %v2862
        %3114 = vmatmul.mubr.bf16.gmra.mxu0 %v2861
        %v3115 = vpop.f32.mrf.mxu0
        %v3116 = vadd.f32 %v2914, %v3115
        %v3117 = vpop.f32.mrf.mxu0
        %v3118 = vadd.f32 %v2918, %v3117
        %v3119 = vpop.f32.mrf.mxu0
        %v3120 = vadd.f32 %v2914, %v3119
        %v3121 = vpop.f32.mrf.mxu0
        %v3122 = vadd.f32 %v2918, %v3121
        %3123 = vmatprep.mubr.bf16.mxu0 %v2864
        %3124 = vmatmul.mubr.bf16.gmra.mxu0 %v2863
        %v3125 = vpop.f32.mrf.mxu0
        %v3126 = vadd.f32 %v2914, %v3125
        %v3127 = vpop.f32.mrf.mxu0
        %v3128 = vadd.f32 %v2918, %v3127
        %v3129 = vpop.f32.mrf.mxu0
        %v3130 = vadd.f32 %v2914, %v3129
        %v3131 = vpop.f32.mrf.mxu0
        %v3132 = vadd.f32 %v2918, %v3131
        %3133 = vmatprep.mubr.bf16.mxu0 %v2866
        %3134 = vmatmul.mubr.bf16.gmra.mxu0 %v2865
        %v3135 = vpop.f32.mrf.mxu0
        %v3136 = vadd.f32 %v2914, %v3135
        %v3137 = vpop.f32.mrf.mxu0
        %v3138 = vadd.f32 %v2918, %v3137
        %v3139 = vpop.f32.mrf.mxu0
        %v3140 = vadd.f32 %v2914, %v3139
        %v3141 = vpop.f32.mrf.mxu0
        %v3142 = vadd.f32 %v2918, %v3141
        %3143 = vmatprep.mubr.bf16.mxu0 %v2868
        %3144 = vmatmul.mubr.bf16.gmra.mxu0 %v2867
        %v3145 = vpop.f32.mrf.mxu0
        %v3146 = vadd.f32 %v2914, %v3145
        %v3147 = vpop.f32.mrf.mxu0
        %v3148 = vadd.f32 %v2918, %v3147
        %v3149 = vpop.f32.mrf.mxu0
        %v3150 = vadd.f32 %v2914, %v3149
        %v3151 = vpop.f32.mrf.mxu0
        %v3152 = vadd.f32 %v2918, %v3151
        %3153 = vmatprep.mubr.bf16.mxu0 %v2870
        %3154 = vmatmul.mubr.bf16.gmra.mxu0 %v2869
        %v3155 = vpop.f32.mrf.mxu0
        %v3156 = vadd.f32 %v2914, %v3155
        %v3157 = vpop.f32.mrf.mxu0
        %v3158 = vadd.f32 %v2918, %v3157
        %v3159 = vpop.f32.mrf.mxu0
        %v3160 = vadd.f32 %v2914, %v3159
        %v3161 = vpop.f32.mrf.mxu0
        %v3162 = vadd.f32 %v2918, %v3161
        %3163 = vmatprep.mubr.bf16.mxu0 %v2872
        %3164 = vmatmul.mubr.bf16.gmra.mxu0 %v2871
        %v3165 = vpop.f32.mrf.mxu0
        %v3166 = vadd.f32 %v2914, %v3165
        %v3167 = vpop.f32.mrf.mxu0
        %v3168 = vadd.f32 %v2918, %v3167
        %v3169 = vpop.f32.mrf.mxu0
        %v3170 = vadd.f32 %v2914, %v3169
        %v3171 = vpop.f32.mrf.mxu0
        %v3172 = vadd.f32 %v2918, %v3171
        %3173 = vmatprep.mubr.bf16.mxu0 %v2874
        %3174 = vmatmul.mubr.bf16.gmra.mxu0 %v2873
        %v3175 = vpop.f32.mrf.mxu0
        %v3176 = vadd.f32 %v2914, %v3175
        %v3177 = vpop.f32.mrf.mxu0
        %v3178 = vadd.f32 %v2918, %v3177
        %v3179 = vpop.f32.mrf.mxu0
        %v3180 = vpop.f32.mrf.mxu0
        %3181 = vdwg.mxu0
        %s3182 = scalar_lea.vmem %s7, 3
        %v3183 = vld [vmem:[%s3182] ss:$8 sm:$0x3]
        %s3184 = scalar_lea.vmem %s8, 3
        %v3185 = vld [vmem:[%s3184] ss:$8 sm:$0x3]
        %v3186 = vadd.f32 %v3116, %v3118
        %3187 = vadd.xlane.f32.xlu0 %v3186
        %v3188 = vpop.xlane.xlu0 %3187
        %v3189 = vadd.f32 %v3120, %v3122
        %3190 = vadd.xlane.f32.xlu0 %v3189
        %v3191 = vpop.xlane.xlu0 %3190
        %v3192 = vadd.f32 %v3126, %v3128
        %3193 = vadd.xlane.f32.xlu0 %v3192
        %v3194 = vpop.xlane.xlu0 %3193
        %v3195 = vadd.f32 %v3130, %v3132
        %3196 = vadd.xlane.f32.xlu0 %v3195
        %v3197 = vpop.xlane.xlu0 %3196
        %v3198 = vadd.f32 %v3136, %v3138
        %3199 = vadd.xlane.f32.xlu0 %v3198
        %v3200 = vpop.xlane.xlu0 %3199
        %v3201 = vadd.f32 %v3140, %v3142
        %3202 = vadd.xlane.f32.xlu0 %v3201
        %v3203 = vpop.xlane.xlu0 %3202
        %v3204 = vadd.f32 %v3146, %v3148
        %3205 = vadd.xlane.f32.xlu0 %v3204
        %v3206 = vpop.xlane.xlu0 %3205
        %v3207 = vadd.f32 %v3150, %v3152
        %3208 = vadd.xlane.f32.xlu0 %v3207
        %v3209 = vpop.xlane.xlu0 %3208
        %v3210 = vadd.f32 %v3156, %v3158
        %3211 = vadd.xlane.f32.xlu0 %v3210
        %v3212 = vpop.xlane.xlu0 %3211
        %v3213 = vadd.f32 %v3160, %v3162
        %3214 = vadd.xlane.f32.xlu0 %v3213
        %v3215 = vpop.xlane.xlu0 %3214
        %v3216 = vadd.f32 %v3166, %v3168
        %3217 = vadd.xlane.f32.xlu0 %v3216
        %v3218 = vpop.xlane.xlu0 %3217
        %v3219 = vadd.f32 %v3170, %v3172
        %3220 = vadd.xlane.f32.xlu0 %v3219
        %v3221 = vpop.xlane.xlu0 %3220
        %v3222 = vadd.f32 %v3176, %v3178
        %3223 = vadd.xlane.f32.xlu0 %v3222
        %v3224 = vpop.xlane.xlu0 %3223
        %v3225 = vmul.f32 %v3188, %v1209
        %v3226 = vmul.f32 %v3191, %v1209
        %v3227 = vmul.f32 %v3194, %v1209
        %v3228 = vmul.f32 %v3197, %v1209
        %v3229 = vmul.f32 %v3200, %v1209
        %v3230 = vmul.f32 %v3203, %v1209
        %v3231 = vmul.f32 %v3206, %v1209
        %v3232 = vmul.f32 %v3209, %v1209
        %v3233 = vmul.f32 %v3212, %v1209
        %v3234 = vmul.f32 %v3215, %v1209
        %v3235 = vmul.f32 %v3218, %v1209
        %v3236 = vmul.f32 %v3221, %v1209
        %v3237 = vmul.f32 %v3224, %v1209
        %v3238 = vmul.f32 %v3116, %v3116
        %v3239 = vmul.f32 %v3118, %v3118
        %v3240 = vmul.f32 %v3120, %v3120
        %v3241 = vmul.f32 %v3122, %v3122
        %v3242 = vmul.f32 %v3126, %v3126
        %v3243 = vmul.f32 %v3128, %v3128
        %v3244 = vmul.f32 %v3130, %v3130
        %v3245 = vmul.f32 %v3132, %v3132
        %v3246 = vmul.f32 %v3136, %v3136
        %v3247 = vmul.f32 %v3138, %v3138
        %v3248 = vmul.f32 %v3140, %v3140
        %v3249 = vmul.f32 %v3142, %v3142
        %v3250 = vmul.f32 %v3146, %v3146
        %v3251 = vmul.f32 %v3148, %v3148
        %v3252 = vmul.f32 %v3150, %v3150
        %v3253 = vmul.f32 %v3152, %v3152
        %v3254 = vmul.f32 %v3156, %v3156
        %v3255 = vmul.f32 %v3158, %v3158
        %v3256 = vmul.f32 %v3160, %v3160
        %v3257 = vmul.f32 %v3162, %v3162
        %v3258 = vmul.f32 %v3166, %v3166
        %v3259 = vmul.f32 %v3168, %v3168
        %v3260 = vmul.f32 %v3170, %v3170
        %v3261 = vmul.f32 %v3172, %v3172
        %v3262 = vmul.f32 %v3176, %v3176
        %v3263 = vmul.f32 %v3178, %v3178
        %v3264 = vadd.f32 %v3238, %v3239
        %3265 = vadd.xlane.f32.xlu0 %v3264
        %v3266 = vpop.xlane.xlu0 %3265
        %v3267 = vadd.f32 %v3240, %v3241
        %3268 = vadd.xlane.f32.xlu0 %v3267
        %v3269 = vpop.xlane.xlu0 %3268
        %v3270 = vadd.f32 %v3242, %v3243
        %3271 = vadd.xlane.f32.xlu0 %v3270
        %v3272 = vpop.xlane.xlu0 %3271
        %v3273 = vadd.f32 %v3244, %v3245
        %3274 = vadd.xlane.f32.xlu0 %v3273
        %v3275 = vpop.xlane.xlu0 %3274
        %v3276 = vadd.f32 %v3246, %v3247
        %3277 = vadd.xlane.f32.xlu0 %v3276
        %v3278 = vpop.xlane.xlu0 %3277
        %v3279 = vadd.f32 %v3248, %v3249
        %3280 = vadd.xlane.f32.xlu0 %v3279
        %v3281 = vpop.xlane.xlu0 %3280
        %v3282 = vadd.f32 %v3250, %v3251
        %3283 = vadd.xlane.f32.xlu0 %v3282
        %v3284 = vpop.xlane.xlu0 %3283
        %v3285 = vadd.f32 %v3252, %v3253
        %3286 = vadd.xlane.f32.xlu0 %v3285
        %v3287 = vpop.xlane.xlu0 %3286
        %v3288 = vadd.f32 %v3254, %v3255
        %3289 = vadd.xlane.f32.xlu0 %v3288
        %v3290 = vpop.xlane.xlu0 %3289
        %v3291 = vadd.f32 %v3256, %v3257
        %3292 = vadd.xlane.f32.xlu0 %v3291
        %v3293 = vpop.xlane.xlu0 %3292
        %v3294 = vadd.f32 %v3258, %v3259
        %3295 = vadd.xlane.f32.xlu0 %v3294
        %v3296 = vpop.xlane.xlu0 %3295
        %v3297 = vadd.f32 %v3260, %v3261
        %3298 = vadd.xlane.f32.xlu0 %v3297
        %v3299 = vpop.xlane.xlu0 %3298
        %v3300 = vadd.f32 %v3262, %v3263
        %3301 = vadd.xlane.f32.xlu0 %v3300
        %v3302 = vpop.xlane.xlu0 %3301
        %v3303 = vmul.f32 %v3266, %v1209
        %v3304 = vmul.f32 %v3269, %v1209
        %v3305 = vmul.f32 %v3272, %v1209
        %v3306 = vmul.f32 %v3275, %v1209
        %v3307 = vmul.f32 %v3278, %v1209
        %v3308 = vmul.f32 %v3281, %v1209
        %v3309 = vmul.f32 %v3284, %v1209
        %v3310 = vmul.f32 %v3287, %v1209
        %v3311 = vmul.f32 %v3290, %v1209
        %v3312 = vmul.f32 %v3293, %v1209
        %v3313 = vmul.f32 %v3296, %v1209
        %v3314 = vmul.f32 %v3299, %v1209
        %v3315 = vmul.f32 %v3302, %v1209
        %v3316 = vmul.f32 %v3225, %v3225
        %v3317 = vmul.f32 %v3226, %v3226
        %v3318 = vmul.f32 %v3227, %v3227
        %v3319 = vmul.f32 %v3228, %v3228
        %v3320 = vmul.f32 %v3229, %v3229
        %v3321 = vmul.f32 %v3230, %v3230
        %v3322 = vmul.f32 %v3231, %v3231
        %v3323 = vmul.f32 %v3232, %v3232
        %v3324 = vmul.f32 %v3233, %v3233
        %v3325 = vmul.f32 %v3234, %v3234
        %v3326 = vmul.f32 %v3235, %v3235
        %v3327 = vmul.f32 %v3236, %v3236
        %v3328 = vmul.f32 %v3237, %v3237
        %v3329 = vsub.f32 %v3303, %v3316
        %v3330 = vsub.f32 %v3304, %v3317
        %v3331 = vsub.f32 %v3305, %v3318
        %v3332 = vsub.f32 %v3306, %v3319
        %v3333 = vsub.f32 %v3307, %v3320
        %v3334 = vsub.f32 %v3308, %v3321
        %v3335 = vsub.f32 %v3309, %v3322
        %v3336 = vsub.f32 %v3310, %v3323
        %v3337 = vsub.f32 %v3311, %v3324
        %v3338 = vsub.f32 %v3312, %v3325
        %v3339 = vsub.f32 %v3313, %v3326
        %v3340 = vsub.f32 %v3314, %v3327
        %v3341 = vsub.f32 %v3315, %v3328
        %v3342 = vmax.f32 %v3329, 0.0
        %v3343 = vmax.f32 %v3330, 0.0
        %v3344 = vmax.f32 %v3331, 0.0
        %v3345 = vmax.f32 %v3332, 0.0
        %v3346 = vmax.f32 %v3333, 0.0
        %v3347 = vmax.f32 %v3334, 0.0
        %v3348 = vmax.f32 %v3335, 0.0
        %v3349 = vmax.f32 %v3336, 0.0
        %v3350 = vmax.f32 %v3337, 0.0
        %v3351 = vmax.f32 %v3338, 0.0
        %v3352 = vmax.f32 %v3339, 0.0
        %v3353 = vmax.f32 %v3340, 0.0
        %v3354 = vmax.f32 %v3341, 0.0
        %v3355 = vsub.f32 %v3116, %v3225
        %v3356 = vsub.f32 %v3118, %v3225
        %v3357 = vsub.f32 %v3120, %v3226
        %v3358 = vsub.f32 %v3122, %v3226
        %v3359 = vsub.f32 %v3126, %v3227
        %v3360 = vsub.f32 %v3128, %v3227
        %v3361 = vsub.f32 %v3130, %v3228
        %v3362 = vsub.f32 %v3132, %v3228
        %v3363 = vsub.f32 %v3136, %v3229
        %v3364 = vsub.f32 %v3138, %v3229
        %v3365 = vsub.f32 %v3140, %v3230
        %v3366 = vsub.f32 %v3142, %v3230
        %v3367 = vsub.f32 %v3146, %v3231
        %v3368 = vsub.f32 %v3148, %v3231
        %v3369 = vsub.f32 %v3150, %v3232
        %v3370 = vsub.f32 %v3152, %v3232
        %v3371 = vsub.f32 %v3156, %v3233
        %v3372 = vsub.f32 %v3158, %v3233
        %v3373 = vsub.f32 %v3160, %v3234
        %v3374 = vsub.f32 %v3162, %v3234
        %v3375 = vsub.f32 %v3166, %v3235
        %v3376 = vsub.f32 %v3168, %v3235
        %v3377 = vsub.f32 %v3170, %v3236
        %v3378 = vsub.f32 %v3172, %v3236
        %v3379 = vsub.f32 %v3176, %v3237
        %v3380 = vsub.f32 %v3178, %v3237
        %v3381 = vadd.f32 %v3342, 1e-05
        %v3382 = vadd.f32 %v3343, 1e-05
        %v3383 = vadd.f32 %v3344, 1e-05
        %v3384 = vadd.f32 %v3345, 1e-05
        %v3385 = vadd.f32 %v3346, 1e-05
        %v3386 = vadd.f32 %v3347, 1e-05
        %v3387 = vadd.f32 %v3348, 1e-05
        %v3388 = vadd.f32 %v3349, 1e-05
        %v3389 = vadd.f32 %v3350, 1e-05
        %v3390 = vadd.f32 %v3351, 1e-05
        %v3391 = vadd.f32 %v3352, 1e-05
        %v3392 = vadd.f32 %v3353, 1e-05
        %v3393 = vadd.f32 %v3354, 1e-05
        %v3394 = vrsqrt.pop %v3381
        %v3395 = vrsqrt.pop %v3382
        %v3396 = vrsqrt.pop %v3383
        %v3397 = vrsqrt.pop %v3384
        %v3398 = vrsqrt.pop %v3385
        %v3399 = vrsqrt.pop %v3386
        %v3400 = vrsqrt.pop %v3387
        %v3401 = vrsqrt.pop %v3388
        %v3402 = vrsqrt.pop %v3389
        %v3403 = vrsqrt.pop %v3390
        %v3404 = vrsqrt.pop %v3391
        %v3405 = vrsqrt.pop %v3392
        %v3406 = vrsqrt.pop %v3393
        %v3407 = vmul.f32 %v3355, %v3394
        %v3408 = vmul.f32 %v3356, %v3394
        %v3409 = vmul.f32 %v3357, %v3395
        %v3410 = vmul.f32 %v3358, %v3395
        %v3411 = vmul.f32 %v3359, %v3396
        %v3412 = vmul.f32 %v3360, %v3396
        %v3413 = vmul.f32 %v3361, %v3397
        %v3414 = vmul.f32 %v3362, %v3397
        %v3415 = vmul.f32 %v3363, %v3398
        %v3416 = vmul.f32 %v3364, %v3398
        %v3417 = vmul.f32 %v3365, %v3399
        %v3418 = vmul.f32 %v3366, %v3399
        %v3419 = vmul.f32 %v3367, %v3400
        %v3420 = vmul.f32 %v3368, %v3400
        %v3421 = vmul.f32 %v3369, %v3401
        %v3422 = vmul.f32 %v3370, %v3401
        %v3423 = vmul.f32 %v3371, %v3402
        %v3424 = vmul.f32 %v3372, %v3402
        %v3425 = vmul.f32 %v3373, %v3403
        %v3426 = vmul.f32 %v3374, %v3403
        %v3427 = vmul.f32 %v3375, %v3404
        %v3428 = vmul.f32 %v3376, %v3404
        %v3429 = vmul.f32 %v3377, %v3405
        %v3430 = vmul.f32 %v3378, %v3405
        %v3431 = vmul.f32 %v3379, %v3406
        %v3432 = vmul.f32 %v3380, %v3406
        %v3434 = vlaneseq
        %v3435 = vshrl.u32 %v3434, 7
        %v3436 = vsub.s32 0, %v3435
        %v3437 = vrot.slane %v3183, %v3436
        %v3438 = vlaneseq
        %v3439 = vshrl.u32 %v3438, 7
        %v3440 = vsub.s32 1, %v3439
        %v3441 = vrot.slane %v3183, %v3440
        %v3444 = vmul.f32 %v3407, %v3437
        %v3445 = vmul.f32 %v3408, %v3441
        %v3446 = vmul.f32 %v3409, %v3437
        %v3447 = vmul.f32 %v3410, %v3441
        %v3448 = vmul.f32 %v3411, %v3437
        %v3449 = vmul.f32 %v3412, %v3441
        %v3450 = vmul.f32 %v3413, %v3437
        %v3451 = vmul.f32 %v3414, %v3441
        %v3452 = vmul.f32 %v3415, %v3437
        %v3453 = vmul.f32 %v3416, %v3441
        %v3454 = vmul.f32 %v3417, %v3437
        %v3455 = vmul.f32 %v3418, %v3441
        %v3456 = vmul.f32 %v3419, %v3437
        %v3457 = vmul.f32 %v3420, %v3441
        %v3458 = vmul.f32 %v3421, %v3437
        %v3459 = vmul.f32 %v3422, %v3441
        %v3460 = vmul.f32 %v3423, %v3437
        %v3461 = vmul.f32 %v3424, %v3441
        %v3462 = vmul.f32 %v3425, %v3437
        %v3463 = vmul.f32 %v3426, %v3441
        %v3464 = vmul.f32 %v3427, %v3437
        %v3465 = vmul.f32 %v3428, %v3441
        %v3466 = vmul.f32 %v3429, %v3437
        %v3467 = vmul.f32 %v3430, %v3441
        %v3468 = vmul.f32 %v3431, %v3437
        %v3469 = vmul.f32 %v3432, %v3441
        %v3471 = vlaneseq
        %v3472 = vshrl.u32 %v3471, 7
        %v3473 = vsub.s32 0, %v3472
        %v3474 = vrot.slane %v3185, %v3473
        %v3475 = vlaneseq
        %v3476 = vshrl.u32 %v3475, 7
        %v3477 = vsub.s32 1, %v3476
        %v3478 = vrot.slane %v3185, %v3477
        %v3481 = vadd.f32 %v3444, %v3474
        %v3482 = vadd.f32 %v3445, %v3478
        %v3483 = vadd.f32 %v3446, %v3474
        %v3484 = vadd.f32 %v3447, %v3478
        %v3485 = vadd.f32 %v3448, %v3474
        %v3486 = vadd.f32 %v3449, %v3478
        %v3487 = vadd.f32 %v3450, %v3474
        %v3488 = vadd.f32 %v3451, %v3478
        %v3489 = vadd.f32 %v3452, %v3474
        %v3490 = vadd.f32 %v3453, %v3478
        %v3491 = vadd.f32 %v3454, %v3474
        %v3492 = vadd.f32 %v3455, %v3478
        %v3493 = vadd.f32 %v3456, %v3474
        %v3494 = vadd.f32 %v3457, %v3478
        %v3495 = vadd.f32 %v3458, %v3474
        %v3496 = vadd.f32 %v3459, %v3478
        %v3497 = vadd.f32 %v3460, %v3474
        %v3498 = vadd.f32 %v3461, %v3478
        %v3499 = vadd.f32 %v3462, %v3474
        %v3500 = vadd.f32 %v3463, %v3478
        %v3501 = vadd.f32 %v3464, %v3474
        %v3502 = vadd.f32 %v3465, %v3478
        %v3503 = vadd.f32 %v3466, %v3474
        %v3504 = vadd.f32 %v3467, %v3478
        %v3505 = vadd.f32 %v3468, %v3474
        %v3506 = vadd.f32 %v3469, %v3478
        %v3507 = vmax.f32 %v3481, 0.0
        %v3508 = vmax.f32 %v3482, 0.0
        %v3509 = vmax.f32 %v3483, 0.0
        %v3510 = vmax.f32 %v3484, 0.0
        %v3511 = vmax.f32 %v3485, 0.0
        %v3512 = vmax.f32 %v3486, 0.0
        %v3513 = vmax.f32 %v3487, 0.0
        %v3514 = vmax.f32 %v3488, 0.0
        %v3515 = vmax.f32 %v3489, 0.0
        %v3516 = vmax.f32 %v3490, 0.0
        %v3517 = vmax.f32 %v3491, 0.0
        %v3518 = vmax.f32 %v3492, 0.0
        %v3519 = vmax.f32 %v3493, 0.0
        %v3520 = vmax.f32 %v3494, 0.0
        %v3521 = vmax.f32 %v3495, 0.0
        %v3522 = vmax.f32 %v3496, 0.0
        %v3523 = vmax.f32 %v3497, 0.0
        %v3524 = vmax.f32 %v3498, 0.0
        %v3525 = vmax.f32 %v3499, 0.0
        %v3526 = vmax.f32 %v3500, 0.0
        %v3527 = vmax.f32 %v3501, 0.0
        %v3528 = vmax.f32 %v3502, 0.0
        %v3529 = vmax.f32 %v3503, 0.0
        %v3530 = vmax.f32 %v3504, 0.0
        %v3531 = vmax.f32 %v3505, 0.0
        %v3532 = vmax.f32 %v3506, 0.0
        %v3533 = vpack.c.bf16 %v3509, %v3507
        %v3534 = vpack.c.bf16 %v3510, %v3508
        %v3535 = vpack.c.bf16 %v3513, %v3511
        %v3536 = vpack.c.bf16 %v3514, %v3512
        %v3537 = vpack.c.bf16 %v3517, %v3515
        %v3538 = vpack.c.bf16 %v3518, %v3516
        %v3539 = vpack.c.bf16 %v3521, %v3519
        %v3540 = vpack.c.bf16 %v3522, %v3520
        %v3541 = vpack.c.bf16 %v3525, %v3523
        %v3542 = vpack.c.bf16 %v3526, %v3524
        %v3543 = vpack.c.bf16 %v3529, %v3527
        %v3544 = vpack.c.bf16 %v3530, %v3528
        %v3545 = vpack.c.bf16 %v3531, %v3531
        %v3546 = vpack.c.bf16 %v3532, %v3532
        %s3547 = scalar_lea.vmem [#allocation2], 768
        %v3548 = vld [vmem:[%s3547] sm:$0xff]
        %v3549 = vld [vmem:[%s3547 + $0x8] sm:$0xff]
        %v3550 = vld [vmem:[%s3547 + $0x10] sm:$0xff]
        %v3551 = vld [vmem:[%s3547 + $0x18] sm:$0xff]
        %v3552 = vld [vmem:[%s3547 + $0x20] sm:$0xff]
        %v3553 = vld [vmem:[%s3547 + $0x28] sm:$0xff]
        %v3554 = vld [vmem:[%s3547 + $0x30] sm:$0xff]
        %v3555 = vld [vmem:[%s3547 + $0x38] sm:$0xff]
        %v3556 = vld [vmem:[%s3547 + $0x40] sm:$0xff]
        %v3557 = vld [vmem:[%s3547 + $0x48] sm:$0xff]
        %v3558 = vld [vmem:[%s3547 + $0x50] sm:$0xff]
        %v3559 = vld [vmem:[%s3547 + $0x58] sm:$0xff]
        %v3560 = vld [vmem:[%s3547 + $0x60] sm:$0xff]
        %v3561 = vld [vmem:[%s3547 + $0x68] sm:$0xff]
        %v3562 = vld [vmem:[%s3547 + $0x70] sm:$0xff]
        %v3563 = vld [vmem:[%s3547 + $0x78] sm:$0xff]
        %v3564 = vld [vmem:[%s3547 + $0x80] sm:$0xff]
        %v3565 = vld [vmem:[%s3547 + $0x88] sm:$0xff]
        %v3566 = vld [vmem:[%s3547 + $0x90] sm:$0xff]
        %v3567 = vld [vmem:[%s3547 + $0x98] sm:$0xff]
        %v3568 = vld [vmem:[%s3547 + $0xa0] sm:$0xff]
        %v3569 = vld [vmem:[%s3547 + $0xa8] sm:$0xff]
        %v3570 = vld [vmem:[%s3547 + $0xb0] sm:$0xff]
        %v3571 = vld [vmem:[%s3547 + $0xb8] sm:$0xff]
        %v3572 = vld [vmem:[%s3547 + $0xc0] sm:$0xff]
        %v3573 = vld [vmem:[%s3547 + $0xc8] sm:$0xff]
        %v3574 = vld [vmem:[%s3547 + $0xd0] sm:$0xff]
        %v3575 = vld [vmem:[%s3547 + $0xd8] sm:$0xff]
        %v3576 = vld [vmem:[%s3547 + $0xe0] sm:$0xff]
        %v3577 = vld [vmem:[%s3547 + $0xe8] sm:$0xff]
        %v3578 = vld [vmem:[%s3547 + $0xf0] sm:$0xff]
        %v3579 = vld [vmem:[%s3547 + $0xf8] sm:$0xff]
        %s3580 = scalar_lea.vmem %s6, 4
        %v3581 = vld [vmem:[%s3580] ss:$8 sm:$0x3]
        %v3583 = vlaneseq
        %v3584 = vshrl.u32 %v3583, 7
        %v3585 = vsub.s32 0, %v3584
        %v3586 = vrot.slane %v3581, %v3585
        %v3587 = vlaneseq
        %v3588 = vshrl.u32 %v3587, 7
        %v3589 = vsub.s32 1, %v3588
        %v3590 = vrot.slane %v3581, %v3589
        %v3625 = vunpack.c.l.b16 %v3548
        %v3626 = vunpack.c.h.b16 %v3548
        %v3627 = vunpack.c.l.b16 %v3549
        %v3628 = vunpack.c.h.b16 %v3549
        %v3629 = vunpack.c.l.b16 %v3550
        %v3630 = vunpack.c.h.b16 %v3550
        %v3631 = vunpack.c.l.b16 %v3551
        %v3632 = vunpack.c.h.b16 %v3551
        %v3633 = vunpack.c.l.b16 %v3552
        %v3634 = vunpack.c.h.b16 %v3552
        %v3635 = vunpack.c.l.b16 %v3553
        %v3636 = vunpack.c.h.b16 %v3553
        %v3637 = vunpack.c.l.b16 %v3554
        %v3638 = vunpack.c.h.b16 %v3554
        %v3639 = vunpack.c.l.b16 %v3555
        %v3640 = vunpack.c.h.b16 %v3555
        %v3641 = vunpack.c.l.b16 %v3556
        %v3642 = vunpack.c.h.b16 %v3556
        %v3643 = vunpack.c.l.b16 %v3557
        %v3644 = vunpack.c.h.b16 %v3557
        %v3645 = vunpack.c.l.b16 %v3558
        %v3646 = vunpack.c.h.b16 %v3558
        %v3647 = vunpack.c.l.b16 %v3559
        %v3648 = vunpack.c.h.b16 %v3559
        %v3649 = vunpack.c.l.b16 %v3560
        %v3650 = vunpack.c.h.b16 %v3560
        %v3651 = vunpack.c.l.b16 %v3561
        %v3652 = vunpack.c.h.b16 %v3561
        %v3653 = vunpack.c.l.b16 %v3562
        %v3654 = vunpack.c.h.b16 %v3562
        %v3655 = vunpack.c.l.b16 %v3563
        %v3656 = vunpack.c.h.b16 %v3563
        %v3657 = vunpack.c.l.b16 %v3564
        %v3658 = vunpack.c.h.b16 %v3564
        %v3659 = vunpack.c.l.b16 %v3565
        %v3660 = vunpack.c.h.b16 %v3565
        %v3661 = vunpack.c.l.b16 %v3566
        %v3662 = vunpack.c.h.b16 %v3566
        %v3663 = vunpack.c.l.b16 %v3567
        %v3664 = vunpack.c.h.b16 %v3567
        %v3665 = vunpack.c.l.b16 %v3568
        %v3666 = vunpack.c.h.b16 %v3568
        %v3667 = vunpack.c.l.b16 %v3569
        %v3668 = vunpack.c.h.b16 %v3569
        %v3669 = vunpack.c.l.b16 %v3570
        %v3670 = vunpack.c.h.b16 %v3570
        %v3671 = vunpack.c.l.b16 %v3571
        %v3672 = vunpack.c.h.b16 %v3571
        %v3673 = vunpack.c.l.b16 %v3572
        %v3674 = vunpack.c.h.b16 %v3572
        %v3675 = vunpack.c.l.b16 %v3573
        %v3676 = vunpack.c.h.b16 %v3573
        %v3677 = vunpack.c.l.b16 %v3574
        %v3678 = vunpack.c.h.b16 %v3574
        %v3679 = vunpack.c.l.b16 %v3575
        %v3680 = vunpack.c.h.b16 %v3575
        %v3681 = vunpack.c.l.b16 %v3576
        %v3682 = vunpack.c.h.b16 %v3576
        %v3683 = vunpack.c.l.b16 %v3577
        %v3684 = vunpack.c.h.b16 %v3577
        %v3685 = vunpack.c.l.b16 %v3578
        %v3686 = vunpack.c.h.b16 %v3578
        %v3687 = vunpack.c.l.b16 %v3579
        %v3688 = vunpack.c.h.b16 %v3579
        %v3689 = vpack.c.b16 %v3627, %v3625
        %v3690 = vpack.c.b16 %v3628, %v3626
        %v3691 = vpack.c.b16 %v3631, %v3629
        %v3692 = vpack.c.b16 %v3632, %v3630
        %v3693 = vpack.c.b16 %v3635, %v3633
        %v3694 = vpack.c.b16 %v3636, %v3634
        %v3695 = vpack.c.b16 %v3639, %v3637
        %v3696 = vpack.c.b16 %v3640, %v3638
        %v3697 = vpack.c.b16 %v3643, %v3641
        %v3698 = vpack.c.b16 %v3644, %v3642
        %v3699 = vpack.c.b16 %v3647, %v3645
        %v3700 = vpack.c.b16 %v3648, %v3646
        %v3701 = vpack.c.b16 %v3651, %v3649
        %v3702 = vpack.c.b16 %v3652, %v3650
        %v3703 = vpack.c.b16 %v3655, %v3653
        %v3704 = vpack.c.b16 %v3656, %v3654
        %v3705 = vpack.c.b16 %v3659, %v3657
        %v3706 = vpack.c.b16 %v3660, %v3658
        %v3707 = vpack.c.b16 %v3663, %v3661
        %v3708 = vpack.c.b16 %v3664, %v3662
        %v3709 = vpack.c.b16 %v3667, %v3665
        %v3710 = vpack.c.b16 %v3668, %v3666
        %v3711 = vpack.c.b16 %v3671, %v3669
        %v3712 = vpack.c.b16 %v3672, %v3670
        %v3713 = vpack.c.b16 %v3675, %v3673
        %v3714 = vpack.c.b16 %v3676, %v3674
        %v3715 = vpack.c.b16 %v3679, %v3677
        %v3716 = vpack.c.b16 %v3680, %v3678
        %v3717 = vpack.c.b16 %v3683, %v3681
        %v3718 = vpack.c.b16 %v3684, %v3682
        %v3719 = vpack.c.b16 %v3687, %v3685
        %v3720 = vpack.c.b16 %v3688, %v3686
        %3753 = vmatprep.subr.bf16.mxu0 %v3704
        %3754 = vmatpush1.bf16.msra.mxu0 %v3703
        %3755 = vmatprep.subr.bf16.mxu0 %v3702
        %3756 = vmatpush1.bf16.msra.mxu0 %v3701
        %3757 = vmatprep.subr.bf16.mxu0 %v3700
        %3758 = vmatpush1.bf16.msra.mxu0 %v3699
        %3759 = vmatprep.subr.bf16.mxu0 %v3698
        %3760 = vmatpush1.bf16.msra.mxu0 %v3697
        %3761 = vmatprep.subr.bf16.mxu0 %v3696
        %3762 = vmatpush1.bf16.msra.mxu0 %v3695
        %3763 = vmatprep.subr.bf16.mxu0 %v3694
        %3764 = vmatpush1.bf16.msra.mxu0 %v3693
        %3765 = vmatprep.subr.bf16.mxu0 %v3692
        %3766 = vmatpush1.bf16.msra.mxu0 %v3691
        %3767 = vmatprep.subr.bf16.mxu0 %v3690
        %3768 = vmatpush1.bf16.msra.mxu0 %v3689
        %3769 = vmatprep.subr.bf16.mxu0 %v3720
        %3770 = vmatpush2.bf16.msra.mxu0 %v3719
        %3771 = vmatprep.subr.bf16.mxu0 %v3718
        %3772 = vmatpush2.bf16.msra.mxu0 %v3717
        %3773 = vmatprep.subr.bf16.mxu0 %v3716
        %3774 = vmatpush2.bf16.msra.mxu0 %v3715
        %3775 = vmatprep.subr.bf16.mxu0 %v3714
        %3776 = vmatpush2.bf16.msra.mxu0 %v3713
        %3777 = vmatprep.subr.bf16.mxu0 %v3712
        %3778 = vmatpush2.bf16.msra.mxu0 %v3711
        %3779 = vmatprep.subr.bf16.mxu0 %v3710
        %3780 = vmatpush2.bf16.msra.mxu0 %v3709
        %3781 = vmatprep.subr.bf16.mxu0 %v3708
        %3782 = vmatpush2.bf16.msra.mxu0 %v3707
        %3783 = vmatprep.subr.bf16.mxu0 %v3706
        %3784 = vmatpush2.bf16.msra.mxu0 %v3705
        %3785 = vmatprep.mubr.bf16.mxu0 %v3534
        %3786 = vmatmul.mubr.bf16.gmra.mxu0 %v3533
        %v3787 = vpop.f32.mrf.mxu0
        %v3788 = vadd.f32 %v3586, %v3787
        %v3789 = vpop.f32.mrf.mxu0
        %v3790 = vadd.f32 %v3590, %v3789
        %v3791 = vpop.f32.mrf.mxu0
        %v3792 = vadd.f32 %v3586, %v3791
        %v3793 = vpop.f32.mrf.mxu0
        %v3794 = vadd.f32 %v3590, %v3793
        %3795 = vmatprep.mubr.bf16.mxu0 %v3536
        %3796 = vmatmul.mubr.bf16.gmra.mxu0 %v3535
        %v3797 = vpop.f32.mrf.mxu0
        %v3798 = vadd.f32 %v3586, %v3797
        %v3799 = vpop.f32.mrf.mxu0
        %v3800 = vadd.f32 %v3590, %v3799
        %v3801 = vpop.f32.mrf.mxu0
        %v3802 = vadd.f32 %v3586, %v3801
        %v3803 = vpop.f32.mrf.mxu0
        %v3804 = vadd.f32 %v3590, %v3803
        %3805 = vmatprep.mubr.bf16.mxu0 %v3538
        %3806 = vmatmul.mubr.bf16.gmra.mxu0 %v3537
        %v3807 = vpop.f32.mrf.mxu0
        %v3808 = vadd.f32 %v3586, %v3807
        %v3809 = vpop.f32.mrf.mxu0
        %v3810 = vadd.f32 %v3590, %v3809
        %v3811 = vpop.f32.mrf.mxu0
        %v3812 = vadd.f32 %v3586, %v3811
        %v3813 = vpop.f32.mrf.mxu0
        %v3814 = vadd.f32 %v3590, %v3813
        %3815 = vmatprep.mubr.bf16.mxu0 %v3540
        %3816 = vmatmul.mubr.bf16.gmra.mxu0 %v3539
        %v3817 = vpop.f32.mrf.mxu0
        %v3818 = vadd.f32 %v3586, %v3817
        %v3819 = vpop.f32.mrf.mxu0
        %v3820 = vadd.f32 %v3590, %v3819
        %v3821 = vpop.f32.mrf.mxu0
        %v3822 = vadd.f32 %v3586, %v3821
        %v3823 = vpop.f32.mrf.mxu0
        %v3824 = vadd.f32 %v3590, %v3823
        %3825 = vmatprep.mubr.bf16.mxu0 %v3542
        %3826 = vmatmul.mubr.bf16.gmra.mxu0 %v3541
        %v3827 = vpop.f32.mrf.mxu0
        %v3828 = vadd.f32 %v3586, %v3827
        %v3829 = vpop.f32.mrf.mxu0
        %v3830 = vadd.f32 %v3590, %v3829
        %v3831 = vpop.f32.mrf.mxu0
        %v3832 = vadd.f32 %v3586, %v3831
        %v3833 = vpop.f32.mrf.mxu0
        %v3834 = vadd.f32 %v3590, %v3833
        %3835 = vmatprep.mubr.bf16.mxu0 %v3544
        %3836 = vmatmul.mubr.bf16.gmra.mxu0 %v3543
        %v3837 = vpop.f32.mrf.mxu0
        %v3838 = vadd.f32 %v3586, %v3837
        %v3839 = vpop.f32.mrf.mxu0
        %v3840 = vadd.f32 %v3590, %v3839
        %v3841 = vpop.f32.mrf.mxu0
        %v3842 = vadd.f32 %v3586, %v3841
        %v3843 = vpop.f32.mrf.mxu0
        %v3844 = vadd.f32 %v3590, %v3843
        %3845 = vmatprep.mubr.bf16.mxu0 %v3546
        %3846 = vmatmul.mubr.bf16.gmra.mxu0 %v3545
        %v3847 = vpop.f32.mrf.mxu0
        %v3848 = vadd.f32 %v3586, %v3847
        %v3849 = vpop.f32.mrf.mxu0
        %v3850 = vadd.f32 %v3590, %v3849
        %v3851 = vpop.f32.mrf.mxu0
        %v3852 = vpop.f32.mrf.mxu0
        %3853 = vdwg.mxu0
        %s3854 = scalar_lea.vmem %s7, 4
        %v3855 = vld [vmem:[%s3854] ss:$8 sm:$0x3]
        %s3856 = scalar_lea.vmem %s8, 4
        %v3857 = vld [vmem:[%s3856] ss:$8 sm:$0x3]
        %v3858 = vadd.f32 %v3788, %v3790
        %3859 = vadd.xlane.f32.xlu0 %v3858
        %v3860 = vpop.xlane.xlu0 %3859
        %v3861 = vadd.f32 %v3792, %v3794
        %3862 = vadd.xlane.f32.xlu0 %v3861
        %v3863 = vpop.xlane.xlu0 %3862
        %v3864 = vadd.f32 %v3798, %v3800
        %3865 = vadd.xlane.f32.xlu0 %v3864
        %v3866 = vpop.xlane.xlu0 %3865
        %v3867 = vadd.f32 %v3802, %v3804
        %3868 = vadd.xlane.f32.xlu0 %v3867
        %v3869 = vpop.xlane.xlu0 %3868
        %v3870 = vadd.f32 %v3808, %v3810
        %3871 = vadd.xlane.f32.xlu0 %v3870
        %v3872 = vpop.xlane.xlu0 %3871
        %v3873 = vadd.f32 %v3812, %v3814
        %3874 = vadd.xlane.f32.xlu0 %v3873
        %v3875 = vpop.xlane.xlu0 %3874
        %v3876 = vadd.f32 %v3818, %v3820
        %3877 = vadd.xlane.f32.xlu0 %v3876
        %v3878 = vpop.xlane.xlu0 %3877
        %v3879 = vadd.f32 %v3822, %v3824
        %3880 = vadd.xlane.f32.xlu0 %v3879
        %v3881 = vpop.xlane.xlu0 %3880
        %v3882 = vadd.f32 %v3828, %v3830
        %3883 = vadd.xlane.f32.xlu0 %v3882
        %v3884 = vpop.xlane.xlu0 %3883
        %v3885 = vadd.f32 %v3832, %v3834
        %3886 = vadd.xlane.f32.xlu0 %v3885
        %v3887 = vpop.xlane.xlu0 %3886
        %v3888 = vadd.f32 %v3838, %v3840
        %3889 = vadd.xlane.f32.xlu0 %v3888
        %v3890 = vpop.xlane.xlu0 %3889
        %v3891 = vadd.f32 %v3842, %v3844
        %3892 = vadd.xlane.f32.xlu0 %v3891
        %v3893 = vpop.xlane.xlu0 %3892
        %v3894 = vadd.f32 %v3848, %v3850
        %3895 = vadd.xlane.f32.xlu0 %v3894
        %v3896 = vpop.xlane.xlu0 %3895
        %v3897 = vmul.f32 %v3860, %v1209
        %v3898 = vmul.f32 %v3863, %v1209
        %v3899 = vmul.f32 %v3866, %v1209
        %v3900 = vmul.f32 %v3869, %v1209
        %v3901 = vmul.f32 %v3872, %v1209
        %v3902 = vmul.f32 %v3875, %v1209
        %v3903 = vmul.f32 %v3878, %v1209
        %v3904 = vmul.f32 %v3881, %v1209
        %v3905 = vmul.f32 %v3884, %v1209
        %v3906 = vmul.f32 %v3887, %v1209
        %v3907 = vmul.f32 %v3890, %v1209
        %v3908 = vmul.f32 %v3893, %v1209
        %v3909 = vmul.f32 %v3896, %v1209
        %v3910 = vmul.f32 %v3788, %v3788
        %v3911 = vmul.f32 %v3790, %v3790
        %v3912 = vmul.f32 %v3792, %v3792
        %v3913 = vmul.f32 %v3794, %v3794
        %v3914 = vmul.f32 %v3798, %v3798
        %v3915 = vmul.f32 %v3800, %v3800
        %v3916 = vmul.f32 %v3802, %v3802
        %v3917 = vmul.f32 %v3804, %v3804
        %v3918 = vmul.f32 %v3808, %v3808
        %v3919 = vmul.f32 %v3810, %v3810
        %v3920 = vmul.f32 %v3812, %v3812
        %v3921 = vmul.f32 %v3814, %v3814
        %v3922 = vmul.f32 %v3818, %v3818
        %v3923 = vmul.f32 %v3820, %v3820
        %v3924 = vmul.f32 %v3822, %v3822
        %v3925 = vmul.f32 %v3824, %v3824
        %v3926 = vmul.f32 %v3828, %v3828
        %v3927 = vmul.f32 %v3830, %v3830
        %v3928 = vmul.f32 %v3832, %v3832
        %v3929 = vmul.f32 %v3834, %v3834
        %v3930 = vmul.f32 %v3838, %v3838
        %v3931 = vmul.f32 %v3840, %v3840
        %v3932 = vmul.f32 %v3842, %v3842
        %v3933 = vmul.f32 %v3844, %v3844
        %v3934 = vmul.f32 %v3848, %v3848
        %v3935 = vmul.f32 %v3850, %v3850
        %v3936 = vadd.f32 %v3910, %v3911
        %3937 = vadd.xlane.f32.xlu0 %v3936
        %v3938 = vpop.xlane.xlu0 %3937
        %v3939 = vadd.f32 %v3912, %v3913
        %3940 = vadd.xlane.f32.xlu0 %v3939
        %v3941 = vpop.xlane.xlu0 %3940
        %v3942 = vadd.f32 %v3914, %v3915
        %3943 = vadd.xlane.f32.xlu0 %v3942
        %v3944 = vpop.xlane.xlu0 %3943
        %v3945 = vadd.f32 %v3916, %v3917
        %3946 = vadd.xlane.f32.xlu0 %v3945
        %v3947 = vpop.xlane.xlu0 %3946
        %v3948 = vadd.f32 %v3918, %v3919
        %3949 = vadd.xlane.f32.xlu0 %v3948
        %v3950 = vpop.xlane.xlu0 %3949
        %v3951 = vadd.f32 %v3920, %v3921
        %3952 = vadd.xlane.f32.xlu0 %v3951
        %v3953 = vpop.xlane.xlu0 %3952
        %v3954 = vadd.f32 %v3922, %v3923
        %3955 = vadd.xlane.f32.xlu0 %v3954
        %v3956 = vpop.xlane.xlu0 %3955
        %v3957 = vadd.f32 %v3924, %v3925
        %3958 = vadd.xlane.f32.xlu0 %v3957
        %v3959 = vpop.xlane.xlu0 %3958
        %v3960 = vadd.f32 %v3926, %v3927
        %3961 = vadd.xlane.f32.xlu0 %v3960
        %v3962 = vpop.xlane.xlu0 %3961
        %v3963 = vadd.f32 %v3928, %v3929
        %3964 = vadd.xlane.f32.xlu0 %v3963
        %v3965 = vpop.xlane.xlu0 %3964
        %v3966 = vadd.f32 %v3930, %v3931
        %3967 = vadd.xlane.f32.xlu0 %v3966
        %v3968 = vpop.xlane.xlu0 %3967
        %v3969 = vadd.f32 %v3932, %v3933
        %3970 = vadd.xlane.f32.xlu0 %v3969
        %v3971 = vpop.xlane.xlu0 %3970
        %v3972 = vadd.f32 %v3934, %v3935
        %3973 = vadd.xlane.f32.xlu0 %v3972
        %v3974 = vpop.xlane.xlu0 %3973
        %v3975 = vmul.f32 %v3938, %v1209
        %v3976 = vmul.f32 %v3941, %v1209
        %v3977 = vmul.f32 %v3944, %v1209
        %v3978 = vmul.f32 %v3947, %v1209
        %v3979 = vmul.f32 %v3950, %v1209
        %v3980 = vmul.f32 %v3953, %v1209
        %v3981 = vmul.f32 %v3956, %v1209
        %v3982 = vmul.f32 %v3959, %v1209
        %v3983 = vmul.f32 %v3962, %v1209
        %v3984 = vmul.f32 %v3965, %v1209
        %v3985 = vmul.f32 %v3968, %v1209
        %v3986 = vmul.f32 %v3971, %v1209
        %v3987 = vmul.f32 %v3974, %v1209
        %v3988 = vmul.f32 %v3897, %v3897
        %v3989 = vmul.f32 %v3898, %v3898
        %v3990 = vmul.f32 %v3899, %v3899
        %v3991 = vmul.f32 %v3900, %v3900
        %v3992 = vmul.f32 %v3901, %v3901
        %v3993 = vmul.f32 %v3902, %v3902
        %v3994 = vmul.f32 %v3903, %v3903
        %v3995 = vmul.f32 %v3904, %v3904
        %v3996 = vmul.f32 %v3905, %v3905
        %v3997 = vmul.f32 %v3906, %v3906
        %v3998 = vmul.f32 %v3907, %v3907
        %v3999 = vmul.f32 %v3908, %v3908
        %v4000 = vmul.f32 %v3909, %v3909
        %v4001 = vsub.f32 %v3975, %v3988
        %v4002 = vsub.f32 %v3976, %v3989
        %v4003 = vsub.f32 %v3977, %v3990
        %v4004 = vsub.f32 %v3978, %v3991
        %v4005 = vsub.f32 %v3979, %v3992
        %v4006 = vsub.f32 %v3980, %v3993
        %v4007 = vsub.f32 %v3981, %v3994
        %v4008 = vsub.f32 %v3982, %v3995
        %v4009 = vsub.f32 %v3983, %v3996
        %v4010 = vsub.f32 %v3984, %v3997
        %v4011 = vsub.f32 %v3985, %v3998
        %v4012 = vsub.f32 %v3986, %v3999
        %v4013 = vsub.f32 %v3987, %v4000
        %v4014 = vmax.f32 %v4001, 0.0
        %v4015 = vmax.f32 %v4002, 0.0
        %v4016 = vmax.f32 %v4003, 0.0
        %v4017 = vmax.f32 %v4004, 0.0
        %v4018 = vmax.f32 %v4005, 0.0
        %v4019 = vmax.f32 %v4006, 0.0
        %v4020 = vmax.f32 %v4007, 0.0
        %v4021 = vmax.f32 %v4008, 0.0
        %v4022 = vmax.f32 %v4009, 0.0
        %v4023 = vmax.f32 %v4010, 0.0
        %v4024 = vmax.f32 %v4011, 0.0
        %v4025 = vmax.f32 %v4012, 0.0
        %v4026 = vmax.f32 %v4013, 0.0
        %v4027 = vsub.f32 %v3788, %v3897
        %v4028 = vsub.f32 %v3790, %v3897
        %v4029 = vsub.f32 %v3792, %v3898
        %v4030 = vsub.f32 %v3794, %v3898
        %v4031 = vsub.f32 %v3798, %v3899
        %v4032 = vsub.f32 %v3800, %v3899
        %v4033 = vsub.f32 %v3802, %v3900
        %v4034 = vsub.f32 %v3804, %v3900
        %v4035 = vsub.f32 %v3808, %v3901
        %v4036 = vsub.f32 %v3810, %v3901
        %v4037 = vsub.f32 %v3812, %v3902
        %v4038 = vsub.f32 %v3814, %v3902
        %v4039 = vsub.f32 %v3818, %v3903
        %v4040 = vsub.f32 %v3820, %v3903
        %v4041 = vsub.f32 %v3822, %v3904
        %v4042 = vsub.f32 %v3824, %v3904
        %v4043 = vsub.f32 %v3828, %v3905
        %v4044 = vsub.f32 %v3830, %v3905
        %v4045 = vsub.f32 %v3832, %v3906
        %v4046 = vsub.f32 %v3834, %v3906
        %v4047 = vsub.f32 %v3838, %v3907
        %v4048 = vsub.f32 %v3840, %v3907
        %v4049 = vsub.f32 %v3842, %v3908
        %v4050 = vsub.f32 %v3844, %v3908
        %v4051 = vsub.f32 %v3848, %v3909
        %v4052 = vsub.f32 %v3850, %v3909
        %v4053 = vadd.f32 %v4014, 1e-05
        %v4054 = vadd.f32 %v4015, 1e-05
        %v4055 = vadd.f32 %v4016, 1e-05
        %v4056 = vadd.f32 %v4017, 1e-05
        %v4057 = vadd.f32 %v4018, 1e-05
        %v4058 = vadd.f32 %v4019, 1e-05
        %v4059 = vadd.f32 %v4020, 1e-05
        %v4060 = vadd.f32 %v4021, 1e-05
        %v4061 = vadd.f32 %v4022, 1e-05
        %v4062 = vadd.f32 %v4023, 1e-05
        %v4063 = vadd.f32 %v4024, 1e-05
        %v4064 = vadd.f32 %v4025, 1e-05
        %v4065 = vadd.f32 %v4026, 1e-05
        %v4066 = vrsqrt.pop %v4053
        %v4067 = vrsqrt.pop %v4054
        %v4068 = vrsqrt.pop %v4055
        %v4069 = vrsqrt.pop %v4056
        %v4070 = vrsqrt.pop %v4057
        %v4071 = vrsqrt.pop %v4058
        %v4072 = vrsqrt.pop %v4059
        %v4073 = vrsqrt.pop %v4060
        %v4074 = vrsqrt.pop %v4061
        %v4075 = vrsqrt.pop %v4062
        %v4076 = vrsqrt.pop %v4063
        %v4077 = vrsqrt.pop %v4064
        %v4078 = vrsqrt.pop %v4065
        %v4079 = vmul.f32 %v4027, %v4066
        %v4080 = vmul.f32 %v4028, %v4066
        %v4081 = vmul.f32 %v4029, %v4067
        %v4082 = vmul.f32 %v4030, %v4067
        %v4083 = vmul.f32 %v4031, %v4068
        %v4084 = vmul.f32 %v4032, %v4068
        %v4085 = vmul.f32 %v4033, %v4069
        %v4086 = vmul.f32 %v4034, %v4069
        %v4087 = vmul.f32 %v4035, %v4070
        %v4088 = vmul.f32 %v4036, %v4070
        %v4089 = vmul.f32 %v4037, %v4071
        %v4090 = vmul.f32 %v4038, %v4071
        %v4091 = vmul.f32 %v4039, %v4072
        %v4092 = vmul.f32 %v4040, %v4072
        %v4093 = vmul.f32 %v4041, %v4073
        %v4094 = vmul.f32 %v4042, %v4073
        %v4095 = vmul.f32 %v4043, %v4074
        %v4096 = vmul.f32 %v4044, %v4074
        %v4097 = vmul.f32 %v4045, %v4075
        %v4098 = vmul.f32 %v4046, %v4075
        %v4099 = vmul.f32 %v4047, %v4076
        %v4100 = vmul.f32 %v4048, %v4076
        %v4101 = vmul.f32 %v4049, %v4077
        %v4102 = vmul.f32 %v4050, %v4077
        %v4103 = vmul.f32 %v4051, %v4078
        %v4104 = vmul.f32 %v4052, %v4078
        %v4106 = vlaneseq
        %v4107 = vshrl.u32 %v4106, 7
        %v4108 = vsub.s32 0, %v4107
        %v4109 = vrot.slane %v3855, %v4108
        %v4110 = vlaneseq
        %v4111 = vshrl.u32 %v4110, 7
        %v4112 = vsub.s32 1, %v4111
        %v4113 = vrot.slane %v3855, %v4112
        %v4116 = vmul.f32 %v4079, %v4109
        %v4117 = vmul.f32 %v4080, %v4113
        %v4118 = vmul.f32 %v4081, %v4109
        %v4119 = vmul.f32 %v4082, %v4113
        %v4120 = vmul.f32 %v4083, %v4109
        %v4121 = vmul.f32 %v4084, %v4113
        %v4122 = vmul.f32 %v4085, %v4109
        %v4123 = vmul.f32 %v4086, %v4113
        %v4124 = vmul.f32 %v4087, %v4109
        %v4125 = vmul.f32 %v4088, %v4113
        %v4126 = vmul.f32 %v4089, %v4109
        %v4127 = vmul.f32 %v4090, %v4113
        %v4128 = vmul.f32 %v4091, %v4109
        %v4129 = vmul.f32 %v4092, %v4113
        %v4130 = vmul.f32 %v4093, %v4109
        %v4131 = vmul.f32 %v4094, %v4113
        %v4132 = vmul.f32 %v4095, %v4109
        %v4133 = vmul.f32 %v4096, %v4113
        %v4134 = vmul.f32 %v4097, %v4109
        %v4135 = vmul.f32 %v4098, %v4113
        %v4136 = vmul.f32 %v4099, %v4109
        %v4137 = vmul.f32 %v4100, %v4113
        %v4138 = vmul.f32 %v4101, %v4109
        %v4139 = vmul.f32 %v4102, %v4113
        %v4140 = vmul.f32 %v4103, %v4109
        %v4141 = vmul.f32 %v4104, %v4113
        %v4143 = vlaneseq
        %v4144 = vshrl.u32 %v4143, 7
        %v4145 = vsub.s32 0, %v4144
        %v4146 = vrot.slane %v3857, %v4145
        %v4147 = vlaneseq
        %v4148 = vshrl.u32 %v4147, 7
        %v4149 = vsub.s32 1, %v4148
        %v4150 = vrot.slane %v3857, %v4149
        %v4153 = vadd.f32 %v4116, %v4146
        %v4154 = vadd.f32 %v4117, %v4150
        %v4155 = vadd.f32 %v4118, %v4146
        %v4156 = vadd.f32 %v4119, %v4150
        %v4157 = vadd.f32 %v4120, %v4146
        %v4158 = vadd.f32 %v4121, %v4150
        %v4159 = vadd.f32 %v4122, %v4146
        %v4160 = vadd.f32 %v4123, %v4150
        %v4161 = vadd.f32 %v4124, %v4146
        %v4162 = vadd.f32 %v4125, %v4150
        %v4163 = vadd.f32 %v4126, %v4146
        %v4164 = vadd.f32 %v4127, %v4150
        %v4165 = vadd.f32 %v4128, %v4146
        %v4166 = vadd.f32 %v4129, %v4150
        %v4167 = vadd.f32 %v4130, %v4146
        %v4168 = vadd.f32 %v4131, %v4150
        %v4169 = vadd.f32 %v4132, %v4146
        %v4170 = vadd.f32 %v4133, %v4150
        %v4171 = vadd.f32 %v4134, %v4146
        %v4172 = vadd.f32 %v4135, %v4150
        %v4173 = vadd.f32 %v4136, %v4146
        %v4174 = vadd.f32 %v4137, %v4150
        %v4175 = vadd.f32 %v4138, %v4146
        %v4176 = vadd.f32 %v4139, %v4150
        %v4177 = vadd.f32 %v4140, %v4146
        %v4178 = vadd.f32 %v4141, %v4150
        %v4179 = vmax.f32 %v4153, 0.0
        %v4180 = vmax.f32 %v4154, 0.0
        %v4181 = vmax.f32 %v4155, 0.0
        %v4182 = vmax.f32 %v4156, 0.0
        %v4183 = vmax.f32 %v4157, 0.0
        %v4184 = vmax.f32 %v4158, 0.0
        %v4185 = vmax.f32 %v4159, 0.0
        %v4186 = vmax.f32 %v4160, 0.0
        %v4187 = vmax.f32 %v4161, 0.0
        %v4188 = vmax.f32 %v4162, 0.0
        %v4189 = vmax.f32 %v4163, 0.0
        %v4190 = vmax.f32 %v4164, 0.0
        %v4191 = vmax.f32 %v4165, 0.0
        %v4192 = vmax.f32 %v4166, 0.0
        %v4193 = vmax.f32 %v4167, 0.0
        %v4194 = vmax.f32 %v4168, 0.0
        %v4195 = vmax.f32 %v4169, 0.0
        %v4196 = vmax.f32 %v4170, 0.0
        %v4197 = vmax.f32 %v4171, 0.0
        %v4198 = vmax.f32 %v4172, 0.0
        %v4199 = vmax.f32 %v4173, 0.0
        %v4200 = vmax.f32 %v4174, 0.0
        %v4201 = vmax.f32 %v4175, 0.0
        %v4202 = vmax.f32 %v4176, 0.0
        %v4203 = vmax.f32 %v4177, 0.0
        %v4204 = vmax.f32 %v4178, 0.0
        %v4205 = vpack.c.bf16 %v4181, %v4179
        %v4206 = vpack.c.bf16 %v4182, %v4180
        %v4207 = vpack.c.bf16 %v4185, %v4183
        %v4208 = vpack.c.bf16 %v4186, %v4184
        %v4209 = vpack.c.bf16 %v4189, %v4187
        %v4210 = vpack.c.bf16 %v4190, %v4188
        %v4211 = vpack.c.bf16 %v4193, %v4191
        %v4212 = vpack.c.bf16 %v4194, %v4192
        %v4213 = vpack.c.bf16 %v4197, %v4195
        %v4214 = vpack.c.bf16 %v4198, %v4196
        %v4215 = vpack.c.bf16 %v4201, %v4199
        %v4216 = vpack.c.bf16 %v4202, %v4200
        %v4217 = vpack.c.bf16 %v4203, %v4203
        %v4218 = vpack.c.bf16 %v4204, %v4204
        %s4219 = scalar_lea.vmem [#allocation2], 1024
        %v4220 = vld [vmem:[%s4219] sm:$0xff]
        %v4221 = vld [vmem:[%s4219 + $0x8] sm:$0xff]
        %v4222 = vld [vmem:[%s4219 + $0x10] sm:$0xff]
        %v4223 = vld [vmem:[%s4219 + $0x18] sm:$0xff]
        %v4224 = vld [vmem:[%s4219 + $0x20] sm:$0xff]
        %v4225 = vld [vmem:[%s4219 + $0x28] sm:$0xff]
        %v4226 = vld [vmem:[%s4219 + $0x30] sm:$0xff]
        %v4227 = vld [vmem:[%s4219 + $0x38] sm:$0xff]
        %v4228 = vld [vmem:[%s4219 + $0x40] sm:$0xff]
        %v4229 = vld [vmem:[%s4219 + $0x48] sm:$0xff]
        %v4230 = vld [vmem:[%s4219 + $0x50] sm:$0xff]
        %v4231 = vld [vmem:[%s4219 + $0x58] sm:$0xff]
        %v4232 = vld [vmem:[%s4219 + $0x60] sm:$0xff]
        %v4233 = vld [vmem:[%s4219 + $0x68] sm:$0xff]
        %v4234 = vld [vmem:[%s4219 + $0x70] sm:$0xff]
        %v4235 = vld [vmem:[%s4219 + $0x78] sm:$0xff]
        %v4236 = vld [vmem:[%s4219 + $0x80] sm:$0xff]
        %v4237 = vld [vmem:[%s4219 + $0x88] sm:$0xff]
        %v4238 = vld [vmem:[%s4219 + $0x90] sm:$0xff]
        %v4239 = vld [vmem:[%s4219 + $0x98] sm:$0xff]
        %v4240 = vld [vmem:[%s4219 + $0xa0] sm:$0xff]
        %v4241 = vld [vmem:[%s4219 + $0xa8] sm:$0xff]
        %v4242 = vld [vmem:[%s4219 + $0xb0] sm:$0xff]
        %v4243 = vld [vmem:[%s4219 + $0xb8] sm:$0xff]
        %v4244 = vld [vmem:[%s4219 + $0xc0] sm:$0xff]
        %v4245 = vld [vmem:[%s4219 + $0xc8] sm:$0xff]
        %v4246 = vld [vmem:[%s4219 + $0xd0] sm:$0xff]
        %v4247 = vld [vmem:[%s4219 + $0xd8] sm:$0xff]
        %v4248 = vld [vmem:[%s4219 + $0xe0] sm:$0xff]
        %v4249 = vld [vmem:[%s4219 + $0xe8] sm:$0xff]
        %v4250 = vld [vmem:[%s4219 + $0xf0] sm:$0xff]
        %v4251 = vld [vmem:[%s4219 + $0xf8] sm:$0xff]
        %s4252 = scalar_lea.vmem %s6, 5
        %v4253 = vld [vmem:[%s4252] ss:$8 sm:$0x3]
        %v4255 = vlaneseq
        %v4256 = vshrl.u32 %v4255, 7
        %v4257 = vsub.s32 0, %v4256
        %v4258 = vrot.slane %v4253, %v4257
        %v4259 = vlaneseq
        %v4260 = vshrl.u32 %v4259, 7
        %v4261 = vsub.s32 1, %v4260
        %v4262 = vrot.slane %v4253, %v4261
        %v4297 = vunpack.c.l.b16 %v4220
        %v4298 = vunpack.c.h.b16 %v4220
        %v4299 = vunpack.c.l.b16 %v4221
        %v4300 = vunpack.c.h.b16 %v4221
        %v4301 = vunpack.c.l.b16 %v4222
        %v4302 = vunpack.c.h.b16 %v4222
        %v4303 = vunpack.c.l.b16 %v4223
        %v4304 = vunpack.c.h.b16 %v4223
        %v4305 = vunpack.c.l.b16 %v4224
        %v4306 = vunpack.c.h.b16 %v4224
        %v4307 = vunpack.c.l.b16 %v4225
        %v4308 = vunpack.c.h.b16 %v4225
        %v4309 = vunpack.c.l.b16 %v4226
        %v4310 = vunpack.c.h.b16 %v4226
        %v4311 = vunpack.c.l.b16 %v4227
        %v4312 = vunpack.c.h.b16 %v4227
        %v4313 = vunpack.c.l.b16 %v4228
        %v4314 = vunpack.c.h.b16 %v4228
        %v4315 = vunpack.c.l.b16 %v4229
        %v4316 = vunpack.c.h.b16 %v4229
        %v4317 = vunpack.c.l.b16 %v4230
        %v4318 = vunpack.c.h.b16 %v4230
        %v4319 = vunpack.c.l.b16 %v4231
        %v4320 = vunpack.c.h.b16 %v4231
        %v4321 = vunpack.c.l.b16 %v4232
        %v4322 = vunpack.c.h.b16 %v4232
        %v4323 = vunpack.c.l.b16 %v4233
        %v4324 = vunpack.c.h.b16 %v4233
        %v4325 = vunpack.c.l.b16 %v4234
        %v4326 = vunpack.c.h.b16 %v4234
        %v4327 = vunpack.c.l.b16 %v4235
        %v4328 = vunpack.c.h.b16 %v4235
        %v4329 = vunpack.c.l.b16 %v4236
        %v4330 = vunpack.c.h.b16 %v4236
        %v4331 = vunpack.c.l.b16 %v4237
        %v4332 = vunpack.c.h.b16 %v4237
        %v4333 = vunpack.c.l.b16 %v4238
        %v4334 = vunpack.c.h.b16 %v4238
        %v4335 = vunpack.c.l.b16 %v4239
        %v4336 = vunpack.c.h.b16 %v4239
        %v4337 = vunpack.c.l.b16 %v4240
        %v4338 = vunpack.c.h.b16 %v4240
        %v4339 = vunpack.c.l.b16 %v4241
        %v4340 = vunpack.c.h.b16 %v4241
        %v4341 = vunpack.c.l.b16 %v4242
        %v4342 = vunpack.c.h.b16 %v4242
        %v4343 = vunpack.c.l.b16 %v4243
        %v4344 = vunpack.c.h.b16 %v4243
        %v4345 = vunpack.c.l.b16 %v4244
        %v4346 = vunpack.c.h.b16 %v4244
        %v4347 = vunpack.c.l.b16 %v4245
        %v4348 = vunpack.c.h.b16 %v4245
        %v4349 = vunpack.c.l.b16 %v4246
        %v4350 = vunpack.c.h.b16 %v4246
        %v4351 = vunpack.c.l.b16 %v4247
        %v4352 = vunpack.c.h.b16 %v4247
        %v4353 = vunpack.c.l.b16 %v4248
        %v4354 = vunpack.c.h.b16 %v4248
        %v4355 = vunpack.c.l.b16 %v4249
        %v4356 = vunpack.c.h.b16 %v4249
        %v4357 = vunpack.c.l.b16 %v4250
        %v4358 = vunpack.c.h.b16 %v4250
        %v4359 = vunpack.c.l.b16 %v4251
        %v4360 = vunpack.c.h.b16 %v4251
        %v4361 = vpack.c.b16 %v4299, %v4297
        %v4362 = vpack.c.b16 %v4300, %v4298
        %v4363 = vpack.c.b16 %v4303, %v4301
        %v4364 = vpack.c.b16 %v4304, %v4302
        %v4365 = vpack.c.b16 %v4307, %v4305
        %v4366 = vpack.c.b16 %v4308, %v4306
        %v4367 = vpack.c.b16 %v4311, %v4309
        %v4368 = vpack.c.b16 %v4312, %v4310
        %v4369 = vpack.c.b16 %v4315, %v4313
        %v4370 = vpack.c.b16 %v4316, %v4314
        %v4371 = vpack.c.b16 %v4319, %v4317
        %v4372 = vpack.c.b16 %v4320, %v4318
        %v4373 = vpack.c.b16 %v4323, %v4321
        %v4374 = vpack.c.b16 %v4324, %v4322
        %v4375 = vpack.c.b16 %v4327, %v4325
        %v4376 = vpack.c.b16 %v4328, %v4326
        %v4377 = vpack.c.b16 %v4331, %v4329
        %v4378 = vpack.c.b16 %v4332, %v4330
        %v4379 = vpack.c.b16 %v4335, %v4333
        %v4380 = vpack.c.b16 %v4336, %v4334
        %v4381 = vpack.c.b16 %v4339, %v4337
        %v4382 = vpack.c.b16 %v4340, %v4338
        %v4383 = vpack.c.b16 %v4343, %v4341
        %v4384 = vpack.c.b16 %v4344, %v4342
        %v4385 = vpack.c.b16 %v4347, %v4345
        %v4386 = vpack.c.b16 %v4348, %v4346
        %v4387 = vpack.c.b16 %v4351, %v4349
        %v4388 = vpack.c.b16 %v4352, %v4350
        %v4389 = vpack.c.b16 %v4355, %v4353
        %v4390 = vpack.c.b16 %v4356, %v4354
        %v4391 = vpack.c.b16 %v4359, %v4357
        %v4392 = vpack.c.b16 %v4360, %v4358
        %4425 = vmatprep.subr.bf16.mxu0 %v4376
        %4426 = vmatpush1.bf16.msra.mxu0 %v4375
        %4427 = vmatprep.subr.bf16.mxu0 %v4374
        %4428 = vmatpush1.bf16.msra.mxu0 %v4373
        %4429 = vmatprep.subr.bf16.mxu0 %v4372
        %4430 = vmatpush1.bf16.msra.mxu0 %v4371
        %4431 = vmatprep.subr.bf16.mxu0 %v4370
        %4432 = vmatpush1.bf16.msra.mxu0 %v4369
        %4433 = vmatprep.subr.bf16.mxu0 %v4368
        %4434 = vmatpush1.bf16.msra.mxu0 %v4367
        %4435 = vmatprep.subr.bf16.mxu0 %v4366
        %4436 = vmatpush1.bf16.msra.mxu0 %v4365
        %4437 = vmatprep.subr.bf16.mxu0 %v4364
        %4438 = vmatpush1.bf16.msra.mxu0 %v4363
        %4439 = vmatprep.subr.bf16.mxu0 %v4362
        %4440 = vmatpush1.bf16.msra.mxu0 %v4361
        %4441 = vmatprep.subr.bf16.mxu0 %v4392
        %4442 = vmatpush2.bf16.msra.mxu0 %v4391
        %4443 = vmatprep.subr.bf16.mxu0 %v4390
        %4444 = vmatpush2.bf16.msra.mxu0 %v4389
        %4445 = vmatprep.subr.bf16.mxu0 %v4388
        %4446 = vmatpush2.bf16.msra.mxu0 %v4387
        %4447 = vmatprep.subr.bf16.mxu0 %v4386
        %4448 = vmatpush2.bf16.msra.mxu0 %v4385
        %4449 = vmatprep.subr.bf16.mxu0 %v4384
        %4450 = vmatpush2.bf16.msra.mxu0 %v4383
        %4451 = vmatprep.subr.bf16.mxu0 %v4382
        %4452 = vmatpush2.bf16.msra.mxu0 %v4381
        %4453 = vmatprep.subr.bf16.mxu0 %v4380
        %4454 = vmatpush2.bf16.msra.mxu0 %v4379
        %4455 = vmatprep.subr.bf16.mxu0 %v4378
        %4456 = vmatpush2.bf16.msra.mxu0 %v4377
        %4457 = vmatprep.mubr.bf16.mxu0 %v4206
        %4458 = vmatmul.mubr.bf16.gmra.mxu0 %v4205
        %v4459 = vpop.f32.mrf.mxu0
        %v4460 = vadd.f32 %v4258, %v4459
        %v4461 = vpop.f32.mrf.mxu0
        %v4462 = vadd.f32 %v4262, %v4461
        %v4463 = vpop.f32.mrf.mxu0
        %v4464 = vadd.f32 %v4258, %v4463
        %v4465 = vpop.f32.mrf.mxu0
        %v4466 = vadd.f32 %v4262, %v4465
        %4467 = vmatprep.mubr.bf16.mxu0 %v4208
        %4468 = vmatmul.mubr.bf16.gmra.mxu0 %v4207
        %v4469 = vpop.f32.mrf.mxu0
        %v4470 = vadd.f32 %v4258, %v4469
        %v4471 = vpop.f32.mrf.mxu0
        %v4472 = vadd.f32 %v4262, %v4471
        %v4473 = vpop.f32.mrf.mxu0
        %v4474 = vadd.f32 %v4258, %v4473
        %v4475 = vpop.f32.mrf.mxu0
        %v4476 = vadd.f32 %v4262, %v4475
        %4477 = vmatprep.mubr.bf16.mxu0 %v4210
        %4478 = vmatmul.mubr.bf16.gmra.mxu0 %v4209
        %v4479 = vpop.f32.mrf.mxu0
        %v4480 = vadd.f32 %v4258, %v4479
        %v4481 = vpop.f32.mrf.mxu0
        %v4482 = vadd.f32 %v4262, %v4481
        %v4483 = vpop.f32.mrf.mxu0
        %v4484 = vadd.f32 %v4258, %v4483
        %v4485 = vpop.f32.mrf.mxu0
        %v4486 = vadd.f32 %v4262, %v4485
        %4487 = vmatprep.mubr.bf16.mxu0 %v4212
        %4488 = vmatmul.mubr.bf16.gmra.mxu0 %v4211
        %v4489 = vpop.f32.mrf.mxu0
        %v4490 = vadd.f32 %v4258, %v4489
        %v4491 = vpop.f32.mrf.mxu0
        %v4492 = vadd.f32 %v4262, %v4491
        %v4493 = vpop.f32.mrf.mxu0
        %v4494 = vadd.f32 %v4258, %v4493
        %v4495 = vpop.f32.mrf.mxu0
        %v4496 = vadd.f32 %v4262, %v4495
        %4497 = vmatprep.mubr.bf16.mxu0 %v4214
        %4498 = vmatmul.mubr.bf16.gmra.mxu0 %v4213
        %v4499 = vpop.f32.mrf.mxu0
        %v4500 = vadd.f32 %v4258, %v4499
        %v4501 = vpop.f32.mrf.mxu0
        %v4502 = vadd.f32 %v4262, %v4501
        %v4503 = vpop.f32.mrf.mxu0
        %v4504 = vadd.f32 %v4258, %v4503
        %v4505 = vpop.f32.mrf.mxu0
        %v4506 = vadd.f32 %v4262, %v4505
        %4507 = vmatprep.mubr.bf16.mxu0 %v4216
        %4508 = vmatmul.mubr.bf16.gmra.mxu0 %v4215
        %v4509 = vpop.f32.mrf.mxu0
        %v4510 = vadd.f32 %v4258, %v4509
        %v4511 = vpop.f32.mrf.mxu0
        %v4512 = vadd.f32 %v4262, %v4511
        %v4513 = vpop.f32.mrf.mxu0
        %v4514 = vadd.f32 %v4258, %v4513
        %v4515 = vpop.f32.mrf.mxu0
        %v4516 = vadd.f32 %v4262, %v4515
        %4517 = vmatprep.mubr.bf16.mxu0 %v4218
        %4518 = vmatmul.mubr.bf16.gmra.mxu0 %v4217
        %v4519 = vpop.f32.mrf.mxu0
        %v4520 = vadd.f32 %v4258, %v4519
        %v4521 = vpop.f32.mrf.mxu0
        %v4522 = vadd.f32 %v4262, %v4521
        %v4523 = vpop.f32.mrf.mxu0
        %v4524 = vpop.f32.mrf.mxu0
        %4525 = vdwg.mxu0
        %s4526 = scalar_lea.vmem %s7, 5
        %v4527 = vld [vmem:[%s4526] ss:$8 sm:$0x3]
        %s4528 = scalar_lea.vmem %s8, 5
        %v4529 = vld [vmem:[%s4528] ss:$8 sm:$0x3]
        %v4530 = vadd.f32 %v4460, %v4462
        %4531 = vadd.xlane.f32.xlu0 %v4530
        %v4532 = vpop.xlane.xlu0 %4531
        %v4533 = vadd.f32 %v4464, %v4466
        %4534 = vadd.xlane.f32.xlu0 %v4533
        %v4535 = vpop.xlane.xlu0 %4534
        %v4536 = vadd.f32 %v4470, %v4472
        %4537 = vadd.xlane.f32.xlu0 %v4536
        %v4538 = vpop.xlane.xlu0 %4537
        %v4539 = vadd.f32 %v4474, %v4476
        %4540 = vadd.xlane.f32.xlu0 %v4539
        %v4541 = vpop.xlane.xlu0 %4540
        %v4542 = vadd.f32 %v4480, %v4482
        %4543 = vadd.xlane.f32.xlu0 %v4542
        %v4544 = vpop.xlane.xlu0 %4543
        %v4545 = vadd.f32 %v4484, %v4486
        %4546 = vadd.xlane.f32.xlu0 %v4545
        %v4547 = vpop.xlane.xlu0 %4546
        %v4548 = vadd.f32 %v4490, %v4492
        %4549 = vadd.xlane.f32.xlu0 %v4548
        %v4550 = vpop.xlane.xlu0 %4549
        %v4551 = vadd.f32 %v4494, %v4496
        %4552 = vadd.xlane.f32.xlu0 %v4551
        %v4553 = vpop.xlane.xlu0 %4552
        %v4554 = vadd.f32 %v4500, %v4502
        %4555 = vadd.xlane.f32.xlu0 %v4554
        %v4556 = vpop.xlane.xlu0 %4555
        %v4557 = vadd.f32 %v4504, %v4506
        %4558 = vadd.xlane.f32.xlu0 %v4557
        %v4559 = vpop.xlane.xlu0 %4558
        %v4560 = vadd.f32 %v4510, %v4512
        %4561 = vadd.xlane.f32.xlu0 %v4560
        %v4562 = vpop.xlane.xlu0 %4561
        %v4563 = vadd.f32 %v4514, %v4516
        %4564 = vadd.xlane.f32.xlu0 %v4563
        %v4565 = vpop.xlane.xlu0 %4564
        %v4566 = vadd.f32 %v4520, %v4522
        %4567 = vadd.xlane.f32.xlu0 %v4566
        %v4568 = vpop.xlane.xlu0 %4567
        %v4569 = vmul.f32 %v4532, %v1209
        %v4570 = vmul.f32 %v4535, %v1209
        %v4571 = vmul.f32 %v4538, %v1209
        %v4572 = vmul.f32 %v4541, %v1209
        %v4573 = vmul.f32 %v4544, %v1209
        %v4574 = vmul.f32 %v4547, %v1209
        %v4575 = vmul.f32 %v4550, %v1209
        %v4576 = vmul.f32 %v4553, %v1209
        %v4577 = vmul.f32 %v4556, %v1209
        %v4578 = vmul.f32 %v4559, %v1209
        %v4579 = vmul.f32 %v4562, %v1209
        %v4580 = vmul.f32 %v4565, %v1209
        %v4581 = vmul.f32 %v4568, %v1209
        %v4582 = vmul.f32 %v4460, %v4460
        %v4583 = vmul.f32 %v4462, %v4462
        %v4584 = vmul.f32 %v4464, %v4464
        %v4585 = vmul.f32 %v4466, %v4466
        %v4586 = vmul.f32 %v4470, %v4470
        %v4587 = vmul.f32 %v4472, %v4472
        %v4588 = vmul.f32 %v4474, %v4474
        %v4589 = vmul.f32 %v4476, %v4476
        %v4590 = vmul.f32 %v4480, %v4480
        %v4591 = vmul.f32 %v4482, %v4482
        %v4592 = vmul.f32 %v4484, %v4484
        %v4593 = vmul.f32 %v4486, %v4486
        %v4594 = vmul.f32 %v4490, %v4490
        %v4595 = vmul.f32 %v4492, %v4492
        %v4596 = vmul.f32 %v4494, %v4494
        %v4597 = vmul.f32 %v4496, %v4496
        %v4598 = vmul.f32 %v4500, %v4500
        %v4599 = vmul.f32 %v4502, %v4502
        %v4600 = vmul.f32 %v4504, %v4504
        %v4601 = vmul.f32 %v4506, %v4506
        %v4602 = vmul.f32 %v4510, %v4510
        %v4603 = vmul.f32 %v4512, %v4512
        %v4604 = vmul.f32 %v4514, %v4514
        %v4605 = vmul.f32 %v4516, %v4516
        %v4606 = vmul.f32 %v4520, %v4520
        %v4607 = vmul.f32 %v4522, %v4522
        %v4608 = vadd.f32 %v4582, %v4583
        %4609 = vadd.xlane.f32.xlu0 %v4608
        %v4610 = vpop.xlane.xlu0 %4609
        %v4611 = vadd.f32 %v4584, %v4585
        %4612 = vadd.xlane.f32.xlu0 %v4611
        %v4613 = vpop.xlane.xlu0 %4612
        %v4614 = vadd.f32 %v4586, %v4587
        %4615 = vadd.xlane.f32.xlu0 %v4614
        %v4616 = vpop.xlane.xlu0 %4615
        %v4617 = vadd.f32 %v4588, %v4589
        %4618 = vadd.xlane.f32.xlu0 %v4617
        %v4619 = vpop.xlane.xlu0 %4618
        %v4620 = vadd.f32 %v4590, %v4591
        %4621 = vadd.xlane.f32.xlu0 %v4620
        %v4622 = vpop.xlane.xlu0 %4621
        %v4623 = vadd.f32 %v4592, %v4593
        %4624 = vadd.xlane.f32.xlu0 %v4623
        %v4625 = vpop.xlane.xlu0 %4624
        %v4626 = vadd.f32 %v4594, %v4595
        %4627 = vadd.xlane.f32.xlu0 %v4626
        %v4628 = vpop.xlane.xlu0 %4627
        %v4629 = vadd.f32 %v4596, %v4597
        %4630 = vadd.xlane.f32.xlu0 %v4629
        %v4631 = vpop.xlane.xlu0 %4630
        %v4632 = vadd.f32 %v4598, %v4599
        %4633 = vadd.xlane.f32.xlu0 %v4632
        %v4634 = vpop.xlane.xlu0 %4633
        %v4635 = vadd.f32 %v4600, %v4601
        %4636 = vadd.xlane.f32.xlu0 %v4635
        %v4637 = vpop.xlane.xlu0 %4636
        %v4638 = vadd.f32 %v4602, %v4603
        %4639 = vadd.xlane.f32.xlu0 %v4638
        %v4640 = vpop.xlane.xlu0 %4639
        %v4641 = vadd.f32 %v4604, %v4605
        %4642 = vadd.xlane.f32.xlu0 %v4641
        %v4643 = vpop.xlane.xlu0 %4642
        %v4644 = vadd.f32 %v4606, %v4607
        %4645 = vadd.xlane.f32.xlu0 %v4644
        %v4646 = vpop.xlane.xlu0 %4645
        %v4647 = vmul.f32 %v4610, %v1209
        %v4648 = vmul.f32 %v4613, %v1209
        %v4649 = vmul.f32 %v4616, %v1209
        %v4650 = vmul.f32 %v4619, %v1209
        %v4651 = vmul.f32 %v4622, %v1209
        %v4652 = vmul.f32 %v4625, %v1209
        %v4653 = vmul.f32 %v4628, %v1209
        %v4654 = vmul.f32 %v4631, %v1209
        %v4655 = vmul.f32 %v4634, %v1209
        %v4656 = vmul.f32 %v4637, %v1209
        %v4657 = vmul.f32 %v4640, %v1209
        %v4658 = vmul.f32 %v4643, %v1209
        %v4659 = vmul.f32 %v4646, %v1209
        %v4660 = vmul.f32 %v4569, %v4569
        %v4661 = vmul.f32 %v4570, %v4570
        %v4662 = vmul.f32 %v4571, %v4571
        %v4663 = vmul.f32 %v4572, %v4572
        %v4664 = vmul.f32 %v4573, %v4573
        %v4665 = vmul.f32 %v4574, %v4574
        %v4666 = vmul.f32 %v4575, %v4575
        %v4667 = vmul.f32 %v4576, %v4576
        %v4668 = vmul.f32 %v4577, %v4577
        %v4669 = vmul.f32 %v4578, %v4578
        %v4670 = vmul.f32 %v4579, %v4579
        %v4671 = vmul.f32 %v4580, %v4580
        %v4672 = vmul.f32 %v4581, %v4581
        %v4673 = vsub.f32 %v4647, %v4660
        %v4674 = vsub.f32 %v4648, %v4661
        %v4675 = vsub.f32 %v4649, %v4662
        %v4676 = vsub.f32 %v4650, %v4663
        %v4677 = vsub.f32 %v4651, %v4664
        %v4678 = vsub.f32 %v4652, %v4665
        %v4679 = vsub.f32 %v4653, %v4666
        %v4680 = vsub.f32 %v4654, %v4667
        %v4681 = vsub.f32 %v4655, %v4668
        %v4682 = vsub.f32 %v4656, %v4669
        %v4683 = vsub.f32 %v4657, %v4670
        %v4684 = vsub.f32 %v4658, %v4671
        %v4685 = vsub.f32 %v4659, %v4672
        %v4686 = vmax.f32 %v4673, 0.0
        %v4687 = vmax.f32 %v4674, 0.0
        %v4688 = vmax.f32 %v4675, 0.0
        %v4689 = vmax.f32 %v4676, 0.0
        %v4690 = vmax.f32 %v4677, 0.0
        %v4691 = vmax.f32 %v4678, 0.0
        %v4692 = vmax.f32 %v4679, 0.0
        %v4693 = vmax.f32 %v4680, 0.0
        %v4694 = vmax.f32 %v4681, 0.0
        %v4695 = vmax.f32 %v4682, 0.0
        %v4696 = vmax.f32 %v4683, 0.0
        %v4697 = vmax.f32 %v4684, 0.0
        %v4698 = vmax.f32 %v4685, 0.0
        %v4699 = vsub.f32 %v4460, %v4569
        %v4700 = vsub.f32 %v4462, %v4569
        %v4701 = vsub.f32 %v4464, %v4570
        %v4702 = vsub.f32 %v4466, %v4570
        %v4703 = vsub.f32 %v4470, %v4571
        %v4704 = vsub.f32 %v4472, %v4571
        %v4705 = vsub.f32 %v4474, %v4572
        %v4706 = vsub.f32 %v4476, %v4572
        %v4707 = vsub.f32 %v4480, %v4573
        %v4708 = vsub.f32 %v4482, %v4573
        %v4709 = vsub.f32 %v4484, %v4574
        %v4710 = vsub.f32 %v4486, %v4574
        %v4711 = vsub.f32 %v4490, %v4575
        %v4712 = vsub.f32 %v4492, %v4575
        %v4713 = vsub.f32 %v4494, %v4576
        %v4714 = vsub.f32 %v4496, %v4576
        %v4715 = vsub.f32 %v4500, %v4577
        %v4716 = vsub.f32 %v4502, %v4577
        %v4717 = vsub.f32 %v4504, %v4578
        %v4718 = vsub.f32 %v4506, %v4578
        %v4719 = vsub.f32 %v4510, %v4579
        %v4720 = vsub.f32 %v4512, %v4579
        %v4721 = vsub.f32 %v4514, %v4580
        %v4722 = vsub.f32 %v4516, %v4580
        %v4723 = vsub.f32 %v4520, %v4581
        %v4724 = vsub.f32 %v4522, %v4581
        %v4725 = vadd.f32 %v4686, 1e-05
        %v4726 = vadd.f32 %v4687, 1e-05
        %v4727 = vadd.f32 %v4688, 1e-05
        %v4728 = vadd.f32 %v4689, 1e-05
        %v4729 = vadd.f32 %v4690, 1e-05
        %v4730 = vadd.f32 %v4691, 1e-05
        %v4731 = vadd.f32 %v4692, 1e-05
        %v4732 = vadd.f32 %v4693, 1e-05
        %v4733 = vadd.f32 %v4694, 1e-05
        %v4734 = vadd.f32 %v4695, 1e-05
        %v4735 = vadd.f32 %v4696, 1e-05
        %v4736 = vadd.f32 %v4697, 1e-05
        %v4737 = vadd.f32 %v4698, 1e-05
        %v4738 = vrsqrt.pop %v4725
        %v4739 = vrsqrt.pop %v4726
        %v4740 = vrsqrt.pop %v4727
        %v4741 = vrsqrt.pop %v4728
        %v4742 = vrsqrt.pop %v4729
        %v4743 = vrsqrt.pop %v4730
        %v4744 = vrsqrt.pop %v4731
        %v4745 = vrsqrt.pop %v4732
        %v4746 = vrsqrt.pop %v4733
        %v4747 = vrsqrt.pop %v4734
        %v4748 = vrsqrt.pop %v4735
        %v4749 = vrsqrt.pop %v4736
        %v4750 = vrsqrt.pop %v4737
        %v4751 = vmul.f32 %v4699, %v4738
        %v4752 = vmul.f32 %v4700, %v4738
        %v4753 = vmul.f32 %v4701, %v4739
        %v4754 = vmul.f32 %v4702, %v4739
        %v4755 = vmul.f32 %v4703, %v4740
        %v4756 = vmul.f32 %v4704, %v4740
        %v4757 = vmul.f32 %v4705, %v4741
        %v4758 = vmul.f32 %v4706, %v4741
        %v4759 = vmul.f32 %v4707, %v4742
        %v4760 = vmul.f32 %v4708, %v4742
        %v4761 = vmul.f32 %v4709, %v4743
        %v4762 = vmul.f32 %v4710, %v4743
        %v4763 = vmul.f32 %v4711, %v4744
        %v4764 = vmul.f32 %v4712, %v4744
        %v4765 = vmul.f32 %v4713, %v4745
        %v4766 = vmul.f32 %v4714, %v4745
        %v4767 = vmul.f32 %v4715, %v4746
        %v4768 = vmul.f32 %v4716, %v4746
        %v4769 = vmul.f32 %v4717, %v4747
        %v4770 = vmul.f32 %v4718, %v4747
        %v4771 = vmul.f32 %v4719, %v4748
        %v4772 = vmul.f32 %v4720, %v4748
        %v4773 = vmul.f32 %v4721, %v4749
        %v4774 = vmul.f32 %v4722, %v4749
        %v4775 = vmul.f32 %v4723, %v4750
        %v4776 = vmul.f32 %v4724, %v4750
        %v4778 = vlaneseq
        %v4779 = vshrl.u32 %v4778, 7
        %v4780 = vsub.s32 0, %v4779
        %v4781 = vrot.slane %v4527, %v4780
        %v4782 = vlaneseq
        %v4783 = vshrl.u32 %v4782, 7
        %v4784 = vsub.s32 1, %v4783
        %v4785 = vrot.slane %v4527, %v4784
        %v4788 = vmul.f32 %v4751, %v4781
        %v4789 = vmul.f32 %v4752, %v4785
        %v4790 = vmul.f32 %v4753, %v4781
        %v4791 = vmul.f32 %v4754, %v4785
        %v4792 = vmul.f32 %v4755, %v4781
        %v4793 = vmul.f32 %v4756, %v4785
        %v4794 = vmul.f32 %v4757, %v4781
        %v4795 = vmul.f32 %v4758, %v4785
        %v4796 = vmul.f32 %v4759, %v4781
        %v4797 = vmul.f32 %v4760, %v4785
        %v4798 = vmul.f32 %v4761, %v4781
        %v4799 = vmul.f32 %v4762, %v4785
        %v4800 = vmul.f32 %v4763, %v4781
        %v4801 = vmul.f32 %v4764, %v4785
        %v4802 = vmul.f32 %v4765, %v4781
        %v4803 = vmul.f32 %v4766, %v4785
        %v4804 = vmul.f32 %v4767, %v4781
        %v4805 = vmul.f32 %v4768, %v4785
        %v4806 = vmul.f32 %v4769, %v4781
        %v4807 = vmul.f32 %v4770, %v4785
        %v4808 = vmul.f32 %v4771, %v4781
        %v4809 = vmul.f32 %v4772, %v4785
        %v4810 = vmul.f32 %v4773, %v4781
        %v4811 = vmul.f32 %v4774, %v4785
        %v4812 = vmul.f32 %v4775, %v4781
        %v4813 = vmul.f32 %v4776, %v4785
        %v4815 = vlaneseq
        %v4816 = vshrl.u32 %v4815, 7
        %v4817 = vsub.s32 0, %v4816
        %v4818 = vrot.slane %v4529, %v4817
        %v4819 = vlaneseq
        %v4820 = vshrl.u32 %v4819, 7
        %v4821 = vsub.s32 1, %v4820
        %v4822 = vrot.slane %v4529, %v4821
        %v4825 = vadd.f32 %v4788, %v4818
        %v4826 = vadd.f32 %v4789, %v4822
        %v4827 = vadd.f32 %v4790, %v4818
        %v4828 = vadd.f32 %v4791, %v4822
        %v4829 = vadd.f32 %v4792, %v4818
        %v4830 = vadd.f32 %v4793, %v4822
        %v4831 = vadd.f32 %v4794, %v4818
        %v4832 = vadd.f32 %v4795, %v4822
        %v4833 = vadd.f32 %v4796, %v4818
        %v4834 = vadd.f32 %v4797, %v4822
        %v4835 = vadd.f32 %v4798, %v4818
        %v4836 = vadd.f32 %v4799, %v4822
        %v4837 = vadd.f32 %v4800, %v4818
        %v4838 = vadd.f32 %v4801, %v4822
        %v4839 = vadd.f32 %v4802, %v4818
        %v4840 = vadd.f32 %v4803, %v4822
        %v4841 = vadd.f32 %v4804, %v4818
        %v4842 = vadd.f32 %v4805, %v4822
        %v4843 = vadd.f32 %v4806, %v4818
        %v4844 = vadd.f32 %v4807, %v4822
        %v4845 = vadd.f32 %v4808, %v4818
        %v4846 = vadd.f32 %v4809, %v4822
        %v4847 = vadd.f32 %v4810, %v4818
        %v4848 = vadd.f32 %v4811, %v4822
        %v4849 = vadd.f32 %v4812, %v4818
        %v4850 = vadd.f32 %v4813, %v4822
        %v4851 = vmax.f32 %v4825, 0.0
        %v4852 = vmax.f32 %v4826, 0.0
        %v4853 = vmax.f32 %v4827, 0.0
        %v4854 = vmax.f32 %v4828, 0.0
        %v4855 = vmax.f32 %v4829, 0.0
        %v4856 = vmax.f32 %v4830, 0.0
        %v4857 = vmax.f32 %v4831, 0.0
        %v4858 = vmax.f32 %v4832, 0.0
        %v4859 = vmax.f32 %v4833, 0.0
        %v4860 = vmax.f32 %v4834, 0.0
        %v4861 = vmax.f32 %v4835, 0.0
        %v4862 = vmax.f32 %v4836, 0.0
        %v4863 = vmax.f32 %v4837, 0.0
        %v4864 = vmax.f32 %v4838, 0.0
        %v4865 = vmax.f32 %v4839, 0.0
        %v4866 = vmax.f32 %v4840, 0.0
        %v4867 = vmax.f32 %v4841, 0.0
        %v4868 = vmax.f32 %v4842, 0.0
        %v4869 = vmax.f32 %v4843, 0.0
        %v4870 = vmax.f32 %v4844, 0.0
        %v4871 = vmax.f32 %v4845, 0.0
        %v4872 = vmax.f32 %v4846, 0.0
        %v4873 = vmax.f32 %v4847, 0.0
        %v4874 = vmax.f32 %v4848, 0.0
        %v4875 = vmax.f32 %v4849, 0.0
        %v4876 = vmax.f32 %v4850, 0.0
        %v4877 = vpack.c.bf16 %v4853, %v4851
        %v4878 = vpack.c.bf16 %v4854, %v4852
        %v4879 = vpack.c.bf16 %v4857, %v4855
        %v4880 = vpack.c.bf16 %v4858, %v4856
        %v4881 = vpack.c.bf16 %v4861, %v4859
        %v4882 = vpack.c.bf16 %v4862, %v4860
        %v4883 = vpack.c.bf16 %v4865, %v4863
        %v4884 = vpack.c.bf16 %v4866, %v4864
        %v4885 = vpack.c.bf16 %v4869, %v4867
        %v4886 = vpack.c.bf16 %v4870, %v4868
        %v4887 = vpack.c.bf16 %v4873, %v4871
        %v4888 = vpack.c.bf16 %v4874, %v4872
        %v4889 = vpack.c.bf16 %v4875, %v4875
        %v4890 = vpack.c.bf16 %v4876, %v4876
        %v4891 = vld [vmem:[%s10] sm:$0xff]
        %v4892 = vld [vmem:[%s10 + $0x8] sm:$0xff]
        %v4893 = vld [vmem:[%s10 + $0x10] sm:$0xff]
        %v4894 = vld [vmem:[%s10 + $0x18] sm:$0xff]
        %v4895 = vld [vmem:[%s10 + $0x20] sm:$0xff]
        %v4896 = vld [vmem:[%s10 + $0x28] sm:$0xff]
        %v4897 = vld [vmem:[%s10 + $0x30] sm:$0xff]
        %v4898 = vld [vmem:[%s10 + $0x38] sm:$0xff]
        %v4899 = vld [vmem:[%s10 + $0x40] sm:$0xff]
        %v4900 = vld [vmem:[%s10 + $0x48] sm:$0xff]
        %v4901 = vld [vmem:[%s10 + $0x50] sm:$0xff]
        %v4902 = vld [vmem:[%s10 + $0x58] sm:$0xff]
        %v4903 = vld [vmem:[%s10 + $0x60] sm:$0xff]
        %v4904 = vld [vmem:[%s10 + $0x68] sm:$0xff]
        %v4905 = vld [vmem:[%s10 + $0x70] sm:$0xff]
        %v4906 = vld [vmem:[%s10 + $0x78] sm:$0xff]
        %v4907 = vld [vmem:[%s10 + $0x80] sm:$0xff]
        %v4908 = vld [vmem:[%s10 + $0x88] sm:$0xff]
        %v4909 = vld [vmem:[%s10 + $0x90] sm:$0xff]
        %v4910 = vld [vmem:[%s10 + $0x98] sm:$0xff]
        %v4911 = vld [vmem:[%s10 + $0xa0] sm:$0xff]
        %v4912 = vld [vmem:[%s10 + $0xa8] sm:$0xff]
        %v4913 = vld [vmem:[%s10 + $0xb0] sm:$0xff]
        %v4914 = vld [vmem:[%s10 + $0xb8] sm:$0xff]
        %v4915 = vld [vmem:[%s10 + $0xc0] sm:$0xff]
        %v4916 = vld [vmem:[%s10 + $0xc8] sm:$0xff]
        %v4917 = vld [vmem:[%s10 + $0xd0] sm:$0xff]
        %v4918 = vld [vmem:[%s10 + $0xd8] sm:$0xff]
        %v4919 = vld [vmem:[%s10 + $0xe0] sm:$0xff]
        %v4920 = vld [vmem:[%s10 + $0xe8] sm:$0xff]
        %v4921 = vld [vmem:[%s10 + $0xf0] sm:$0xff]
        %v4922 = vld [vmem:[%s10 + $0xf8] sm:$0xff]
        %v4923 = vld [vmem:[%s11] sm:$0x3]
        %v4925 = vlaneseq
        %v4926 = vshrl.u32 %v4925, 7
        %v4927 = vsub.s32 0, %v4926
        %v4928 = vrot.slane %v4923, %v4927
        %v4929 = vlaneseq
        %v4930 = vshrl.u32 %v4929, 7
        %v4931 = vsub.s32 1, %v4930
        %v4932 = vrot.slane %v4923, %v4931
        %v4967 = vunpack.c.l.b16 %v4891
        %v4968 = vunpack.c.h.b16 %v4891
        %v4969 = vunpack.c.l.b16 %v4892
        %v4970 = vunpack.c.h.b16 %v4892
        %v4971 = vunpack.c.l.b16 %v4893
        %v4972 = vunpack.c.h.b16 %v4893
        %v4973 = vunpack.c.l.b16 %v4894
        %v4974 = vunpack.c.h.b16 %v4894
        %v4975 = vunpack.c.l.b16 %v4895
        %v4976 = vunpack.c.h.b16 %v4895
        %v4977 = vunpack.c.l.b16 %v4896
        %v4978 = vunpack.c.h.b16 %v4896
        %v4979 = vunpack.c.l.b16 %v4897
        %v4980 = vunpack.c.h.b16 %v4897
        %v4981 = vunpack.c.l.b16 %v4898
        %v4982 = vunpack.c.h.b16 %v4898
        %v4983 = vunpack.c.l.b16 %v4899
        %v4984 = vunpack.c.h.b16 %v4899
        %v4985 = vunpack.c.l.b16 %v4900
        %v4986 = vunpack.c.h.b16 %v4900
        %v4987 = vunpack.c.l.b16 %v4901
        %v4988 = vunpack.c.h.b16 %v4901
        %v4989 = vunpack.c.l.b16 %v4902
        %v4990 = vunpack.c.h.b16 %v4902
        %v4991 = vunpack.c.l.b16 %v4903
        %v4992 = vunpack.c.h.b16 %v4903
        %v4993 = vunpack.c.l.b16 %v4904
        %v4994 = vunpack.c.h.b16 %v4904
        %v4995 = vunpack.c.l.b16 %v4905
        %v4996 = vunpack.c.h.b16 %v4905
        %v4997 = vunpack.c.l.b16 %v4906
        %v4998 = vunpack.c.h.b16 %v4906
        %v4999 = vunpack.c.l.b16 %v4907
        %v5000 = vunpack.c.h.b16 %v4907
        %v5001 = vunpack.c.l.b16 %v4908
        %v5002 = vunpack.c.h.b16 %v4908
        %v5003 = vunpack.c.l.b16 %v4909
        %v5004 = vunpack.c.h.b16 %v4909
        %v5005 = vunpack.c.l.b16 %v4910
        %v5006 = vunpack.c.h.b16 %v4910
        %v5007 = vunpack.c.l.b16 %v4911
        %v5008 = vunpack.c.h.b16 %v4911
        %v5009 = vunpack.c.l.b16 %v4912
        %v5010 = vunpack.c.h.b16 %v4912
        %v5011 = vunpack.c.l.b16 %v4913
        %v5012 = vunpack.c.h.b16 %v4913
        %v5013 = vunpack.c.l.b16 %v4914
        %v5014 = vunpack.c.h.b16 %v4914
        %v5015 = vunpack.c.l.b16 %v4915
        %v5016 = vunpack.c.h.b16 %v4915
        %v5017 = vunpack.c.l.b16 %v4916
        %v5018 = vunpack.c.h.b16 %v4916
        %v5019 = vunpack.c.l.b16 %v4917
        %v5020 = vunpack.c.h.b16 %v4917
        %v5021 = vunpack.c.l.b16 %v4918
        %v5022 = vunpack.c.h.b16 %v4918
        %v5023 = vunpack.c.l.b16 %v4919
        %v5024 = vunpack.c.h.b16 %v4919
        %v5025 = vunpack.c.l.b16 %v4920
        %v5026 = vunpack.c.h.b16 %v4920
        %v5027 = vunpack.c.l.b16 %v4921
        %v5028 = vunpack.c.h.b16 %v4921
        %v5029 = vunpack.c.l.b16 %v4922
        %v5030 = vunpack.c.h.b16 %v4922
        %v5031 = vpack.c.b16 %v4969, %v4967
        %v5032 = vpack.c.b16 %v4970, %v4968
        %v5033 = vpack.c.b16 %v4973, %v4971
        %v5034 = vpack.c.b16 %v4974, %v4972
        %v5035 = vpack.c.b16 %v4977, %v4975
        %v5036 = vpack.c.b16 %v4978, %v4976
        %v5037 = vpack.c.b16 %v4981, %v4979
        %v5038 = vpack.c.b16 %v4982, %v4980
        %v5039 = vpack.c.b16 %v4985, %v4983
        %v5040 = vpack.c.b16 %v4986, %v4984
        %v5041 = vpack.c.b16 %v4989, %v4987
        %v5042 = vpack.c.b16 %v4990, %v4988
        %v5043 = vpack.c.b16 %v4993, %v4991
        %v5044 = vpack.c.b16 %v4994, %v4992
        %v5045 = vpack.c.b16 %v4997, %v4995
        %v5046 = vpack.c.b16 %v4998, %v4996
        %v5047 = vpack.c.b16 %v5001, %v4999
        %v5048 = vpack.c.b16 %v5002, %v5000
        %v5049 = vpack.c.b16 %v5005, %v5003
        %v5050 = vpack.c.b16 %v5006, %v5004
        %v5051 = vpack.c.b16 %v5009, %v5007
        %v5052 = vpack.c.b16 %v5010, %v5008
        %v5053 = vpack.c.b16 %v5013, %v5011
        %v5054 = vpack.c.b16 %v5014, %v5012
        %v5055 = vpack.c.b16 %v5017, %v5015
        %v5056 = vpack.c.b16 %v5018, %v5016
        %v5057 = vpack.c.b16 %v5021, %v5019
        %v5058 = vpack.c.b16 %v5022, %v5020
        %v5059 = vpack.c.b16 %v5025, %v5023
        %v5060 = vpack.c.b16 %v5026, %v5024
        %v5061 = vpack.c.b16 %v5029, %v5027
        %v5062 = vpack.c.b16 %v5030, %v5028
        %5095 = vmatprep.subr.bf16.mxu0 %v5046
        %5096 = vmatpush1.bf16.msra.mxu0 %v5045
        %5097 = vmatprep.subr.bf16.mxu0 %v5044
        %5098 = vmatpush1.bf16.msra.mxu0 %v5043
        %5099 = vmatprep.subr.bf16.mxu0 %v5042
        %5100 = vmatpush1.bf16.msra.mxu0 %v5041
        %5101 = vmatprep.subr.bf16.mxu0 %v5040
        %5102 = vmatpush1.bf16.msra.mxu0 %v5039
        %5103 = vmatprep.subr.bf16.mxu0 %v5038
        %5104 = vmatpush1.bf16.msra.mxu0 %v5037
        %5105 = vmatprep.subr.bf16.mxu0 %v5036
        %5106 = vmatpush1.bf16.msra.mxu0 %v5035
        %5107 = vmatprep.subr.bf16.mxu0 %v5034
        %5108 = vmatpush1.bf16.msra.mxu0 %v5033
        %5109 = vmatprep.subr.bf16.mxu0 %v5032
        %5110 = vmatpush1.bf16.msra.mxu0 %v5031
        %5111 = vmatprep.subr.bf16.mxu0 %v5062
        %5112 = vmatpush2.bf16.msra.mxu0 %v5061
        %5113 = vmatprep.subr.bf16.mxu0 %v5060
        %5114 = vmatpush2.bf16.msra.mxu0 %v5059
        %5115 = vmatprep.subr.bf16.mxu0 %v5058
        %5116 = vmatpush2.bf16.msra.mxu0 %v5057
        %5117 = vmatprep.subr.bf16.mxu0 %v5056
        %5118 = vmatpush2.bf16.msra.mxu0 %v5055
        %5119 = vmatprep.subr.bf16.mxu0 %v5054
        %5120 = vmatpush2.bf16.msra.mxu0 %v5053
        %5121 = vmatprep.subr.bf16.mxu0 %v5052
        %5122 = vmatpush2.bf16.msra.mxu0 %v5051
        %5123 = vmatprep.subr.bf16.mxu0 %v5050
        %5124 = vmatpush2.bf16.msra.mxu0 %v5049
        %5125 = vmatprep.subr.bf16.mxu0 %v5048
        %5126 = vmatpush2.bf16.msra.mxu0 %v5047
        %5127 = vmatprep.mubr.bf16.mxu0 %v4878
        %5128 = vmatmul.mubr.bf16.gmra.mxu0 %v4877
        %v5129 = vpop.f32.mrf.mxu0
        %v5130 = vadd.f32 %v4928, %v5129
        %v5131 = vpop.f32.mrf.mxu0
        %v5132 = vadd.f32 %v4932, %v5131
        %v5133 = vpop.f32.mrf.mxu0
        %v5134 = vadd.f32 %v4928, %v5133
        %v5135 = vpop.f32.mrf.mxu0
        %v5136 = vadd.f32 %v4932, %v5135
        %5137 = vmatprep.mubr.bf16.mxu0 %v4880
        %5138 = vmatmul.mubr.bf16.gmra.mxu0 %v4879
        %v5139 = vpop.f32.mrf.mxu0
        %v5140 = vadd.f32 %v4928, %v5139
        %v5141 = vpop.f32.mrf.mxu0
        %v5142 = vadd.f32 %v4932, %v5141
        %v5143 = vpop.f32.mrf.mxu0
        %v5144 = vadd.f32 %v4928, %v5143
        %v5145 = vpop.f32.mrf.mxu0
        %v5146 = vadd.f32 %v4932, %v5145
        %5147 = vmatprep.mubr.bf16.mxu0 %v4882
        %5148 = vmatmul.mubr.bf16.gmra.mxu0 %v4881
        %v5149 = vpop.f32.mrf.mxu0
        %v5150 = vadd.f32 %v4928, %v5149
        %v5151 = vpop.f32.mrf.mxu0
        %v5152 = vadd.f32 %v4932, %v5151
        %v5153 = vpop.f32.mrf.mxu0
        %v5154 = vadd.f32 %v4928, %v5153
        %v5155 = vpop.f32.mrf.mxu0
        %v5156 = vadd.f32 %v4932, %v5155
        %5157 = vmatprep.mubr.bf16.mxu0 %v4884
        %5158 = vmatmul.mubr.bf16.gmra.mxu0 %v4883
        %v5159 = vpop.f32.mrf.mxu0
        %v5160 = vadd.f32 %v4928, %v5159
        %v5161 = vpop.f32.mrf.mxu0
        %v5162 = vadd.f32 %v4932, %v5161
        %v5163 = vpop.f32.mrf.mxu0
        %v5164 = vadd.f32 %v4928, %v5163
        %v5165 = vpop.f32.mrf.mxu0
        %v5166 = vadd.f32 %v4932, %v5165
        %5167 = vmatprep.mubr.bf16.mxu0 %v4886
        %5168 = vmatmul.mubr.bf16.gmra.mxu0 %v4885
        %v5169 = vpop.f32.mrf.mxu0
        %v5170 = vadd.f32 %v4928, %v5169
        %v5171 = vpop.f32.mrf.mxu0
        %v5172 = vadd.f32 %v4932, %v5171
        %v5173 = vpop.f32.mrf.mxu0
        %v5174 = vadd.f32 %v4928, %v5173
        %v5175 = vpop.f32.mrf.mxu0
        %v5176 = vadd.f32 %v4932, %v5175
        %5177 = vmatprep.mubr.bf16.mxu0 %v4888
        %5178 = vmatmul.mubr.bf16.gmra.mxu0 %v4887
        %v5179 = vpop.f32.mrf.mxu0
        %v5180 = vadd.f32 %v4928, %v5179
        %v5181 = vpop.f32.mrf.mxu0
        %v5182 = vadd.f32 %v4932, %v5181
        %v5183 = vpop.f32.mrf.mxu0
        %v5184 = vadd.f32 %v4928, %v5183
        %v5185 = vpop.f32.mrf.mxu0
        %v5186 = vadd.f32 %v4932, %v5185
        %5187 = vmatprep.mubr.bf16.mxu0 %v4890
        %5188 = vmatmul.mubr.bf16.gmra.mxu0 %v4889
        %v5189 = vpop.f32.mrf.mxu0
        %v5190 = vadd.f32 %v4928, %v5189
        %v5191 = vpop.f32.mrf.mxu0
        %v5192 = vadd.f32 %v4932, %v5191
        %v5193 = vpop.f32.mrf.mxu0
        %v5194 = vpop.f32.mrf.mxu0
        %5195 = vdwg.mxu0
        %v5196 = vld [vmem:[%s12] sm:$0xf]
        %v5197 = vld [vmem:[%s12 + $0x4] sm:$0xf]
        %v5198 = vld [vmem:[%s12 + $0x8] sm:$0xf]
        %v5199 = vld [vmem:[%s12 + $0xc] sm:$0xf]
        %v5200 = vld [vmem:[%s12 + $0x10] sm:$0xf]
        %v5201 = vld [vmem:[%s12 + $0x14] sm:$0xf]
        %v5202 = vld [vmem:[%s12 + $0x18] sm:$0xf]
        %v5203 = vld [vmem:[%s12 + $0x1c] sm:$0xf]
        %v5204 = vld [vmem:[%s12 + $0x20] sm:$0xf]
        %v5205 = vld [vmem:[%s12 + $0x24] sm:$0xf]
        %v5206 = vld [vmem:[%s12 + $0x28] sm:$0xf]
        %v5207 = vld [vmem:[%s12 + $0x2c] sm:$0xf]
        %v5208 = vld [vmem:[%s12 + $0x30] sm:$0xf]
        %v5209 = vld [vmem:[%s12 + $0x34] sm:$0xf]
        %v5210 = vld [vmem:[%s12 + $0x38] sm:$0xf]
        %v5211 = vld [vmem:[%s12 + $0x3c] sm:$0xf]
        %v5212 = vld [vmem:[%s12 + $0x40] sm:$0xf]
        %v5213 = vld [vmem:[%s12 + $0x44] sm:$0xf]
        %v5214 = vld [vmem:[%s12 + $0x48] sm:$0xf]
        %v5215 = vld [vmem:[%s12 + $0x4c] sm:$0xf]
        %v5216 = vld [vmem:[%s12 + $0x50] sm:$0xf]
        %v5217 = vld [vmem:[%s12 + $0x54] sm:$0xf]
        %v5218 = vld [vmem:[%s12 + $0x58] sm:$0xf]
        %v5219 = vld [vmem:[%s12 + $0x5c] sm:$0xf]
        %v5220 = vld [vmem:[%s12 + $0x60] sm:$0xf]
        %v5221 = vld [vmem:[%s12 + $0x64] sm:$0xf]
        %v5222 = vld [vmem:[%s12 + $0x68] sm:$0xf]
        %v5223 = vld [vmem:[%s12 + $0x6c] sm:$0xf]
        %v5224 = vld [vmem:[%s12 + $0x70] sm:$0xf]
        %v5225 = vld [vmem:[%s12 + $0x74] sm:$0xf]
        %v5226 = vld [vmem:[%s12 + $0x78] sm:$0xf]
        %v5227 = vld [vmem:[%s12 + $0x7c] sm:$0xf]
        %v5228 = vld [vmem:[%s13] sm:$0x1]
        %v5230 = vlaneseq
        %v5231 = vshrl.u32 %v5230, 7
        %v5232 = vsub.s32 0, %v5231
        %v5233 = vrot.slane %v5228, %v5232
        %v5267 = vunpack.c.l.b16 %v5196
        %v5268 = vunpack.c.l.b16 %v5197
        %v5269 = vunpack.c.l.b16 %v5198
        %v5270 = vunpack.c.l.b16 %v5199
        %v5271 = vunpack.c.l.b16 %v5200
        %v5272 = vunpack.c.l.b16 %v5201
        %v5273 = vunpack.c.l.b16 %v5202
        %v5274 = vunpack.c.l.b16 %v5203
        %v5275 = vunpack.c.l.b16 %v5204
        %v5276 = vunpack.c.l.b16 %v5205
        %v5277 = vunpack.c.l.b16 %v5206
        %v5278 = vunpack.c.l.b16 %v5207
        %v5279 = vunpack.c.l.b16 %v5208
        %v5280 = vunpack.c.l.b16 %v5209
        %v5281 = vunpack.c.l.b16 %v5210
        %v5282 = vunpack.c.l.b16 %v5211
        %v5283 = vunpack.c.l.b16 %v5212
        %v5284 = vunpack.c.l.b16 %v5213
        %v5285 = vunpack.c.l.b16 %v5214
        %v5286 = vunpack.c.l.b16 %v5215
        %v5287 = vunpack.c.l.b16 %v5216
        %v5288 = vunpack.c.l.b16 %v5217
        %v5289 = vunpack.c.l.b16 %v5218
        %v5290 = vunpack.c.l.b16 %v5219
        %v5291 = vunpack.c.l.b16 %v5220
        %v5292 = vunpack.c.l.b16 %v5221
        %v5293 = vunpack.c.l.b16 %v5222
        %v5294 = vunpack.c.l.b16 %v5223
        %v5295 = vunpack.c.l.b16 %v5224
        %v5296 = vunpack.c.l.b16 %v5225
        %v5297 = vunpack.c.l.b16 %v5226
        %v5298 = vunpack.c.l.b16 %v5227
        %v5299 = vpack.c.b16 %v5268, %v5267
        %v5300 = vpack.c.b16 %v5270, %v5269
        %v5301 = vpack.c.b16 %v5272, %v5271
        %v5302 = vpack.c.b16 %v5274, %v5273
        %v5303 = vpack.c.b16 %v5276, %v5275
        %v5304 = vpack.c.b16 %v5278, %v5277
        %v5305 = vpack.c.b16 %v5280, %v5279
        %v5306 = vpack.c.b16 %v5282, %v5281
        %v5307 = vpack.c.b16 %v5284, %v5283
        %v5308 = vpack.c.b16 %v5286, %v5285
        %v5309 = vpack.c.b16 %v5288, %v5287
        %v5310 = vpack.c.b16 %v5290, %v5289
        %v5311 = vpack.c.b16 %v5292, %v5291
        %v5312 = vpack.c.b16 %v5294, %v5293
        %v5313 = vpack.c.b16 %v5296, %v5295
        %v5314 = vpack.c.b16 %v5298, %v5297
        %5331 = vmatprep.subr.bf16.mxu0 0
        %5332 = vmatpush1.bf16.msra.mxu0 %v5306
        %5333 = vmatprep.subr.bf16.mxu0 0
        %5334 = vmatpush1.bf16.msra.mxu0 %v5305
        %5335 = vmatprep.subr.bf16.mxu0 0
        %5336 = vmatpush1.bf16.msra.mxu0 %v5304
        %5337 = vmatprep.subr.bf16.mxu0 0
        %5338 = vmatpush1.bf16.msra.mxu0 %v5303
        %5339 = vmatprep.subr.bf16.mxu0 0
        %5340 = vmatpush1.bf16.msra.mxu0 %v5302
        %5341 = vmatprep.subr.bf16.mxu0 0
        %5342 = vmatpush1.bf16.msra.mxu0 %v5301
        %5343 = vmatprep.subr.bf16.mxu0 0
        %5344 = vmatpush1.bf16.msra.mxu0 %v5300
        %5345 = vmatprep.subr.bf16.mxu0 0
        %5346 = vmatpush1.bf16.msra.mxu0 %v5299
        %5347 = vmatprep.subr.bf16.mxu0 0
        %5348 = vmatpush2.bf16.msra.mxu0 %v5314
        %5349 = vmatprep.subr.bf16.mxu0 0
        %5350 = vmatpush2.bf16.msra.mxu0 %v5313
        %5351 = vmatprep.subr.bf16.mxu0 0
        %5352 = vmatpush2.bf16.msra.mxu0 %v5312
        %5353 = vmatprep.subr.bf16.mxu0 0
        %5354 = vmatpush2.bf16.msra.mxu0 %v5311
        %5355 = vmatprep.subr.bf16.mxu0 0
        %5356 = vmatpush2.bf16.msra.mxu0 %v5310
        %5357 = vmatprep.subr.bf16.mxu0 0
        %5358 = vmatpush2.bf16.msra.mxu0 %v5309
        %5359 = vmatprep.subr.bf16.mxu0 0
        %5360 = vmatpush2.bf16.msra.mxu0 %v5308
        %5361 = vmatprep.subr.bf16.mxu0 0
        %5362 = vmatpush2.bf16.msra.mxu0 %v5307
        %5363 = vmatprep.mubr.bf16.mxu0 %v4878
        %5364 = vmatmul.mubr.bf16.gmra.mxu0 %v4877
        %v5365 = vpop.f32.mrf.mxu0
        %v5366 = vadd.f32 %v5233, %v5365
        %v5367 = vpop.f32.mrf.mxu0
        %v5368 = vpop.f32.mrf.mxu0
        %v5369 = vadd.f32 %v5233, %v5368
        %v5370 = vpop.f32.mrf.mxu0
        %5371 = vmatprep.mubr.bf16.mxu0 %v4880
        %5372 = vmatmul.mubr.bf16.gmra.mxu0 %v4879
        %v5373 = vpop.f32.mrf.mxu0
        %v5374 = vadd.f32 %v5233, %v5373
        %v5375 = vpop.f32.mrf.mxu0
        %v5376 = vpop.f32.mrf.mxu0
        %v5377 = vadd.f32 %v5233, %v5376
        %v5378 = vpop.f32.mrf.mxu0
        %5379 = vmatprep.mubr.bf16.mxu0 %v4882
        %5380 = vmatmul.mubr.bf16.gmra.mxu0 %v4881
        %v5381 = vpop.f32.mrf.mxu0
        %v5382 = vadd.f32 %v5233, %v5381
        %v5383 = vpop.f32.mrf.mxu0
        %v5384 = vpop.f32.mrf.mxu0
        %v5385 = vadd.f32 %v5233, %v5384
        %v5386 = vpop.f32.mrf.mxu0
        %5387 = vmatprep.mubr.bf16.mxu0 %v4884
        %5388 = vmatmul.mubr.bf16.gmra.mxu0 %v4883
        %v5389 = vpop.f32.mrf.mxu0
        %v5390 = vadd.f32 %v5233, %v5389
        %v5391 = vpop.f32.mrf.mxu0
        %v5392 = vpop.f32.mrf.mxu0
        %v5393 = vadd.f32 %v5233, %v5392
        %v5394 = vpop.f32.mrf.mxu0
        %5395 = vmatprep.mubr.bf16.mxu0 %v4886
        %5396 = vmatmul.mubr.bf16.gmra.mxu0 %v4885
        %v5397 = vpop.f32.mrf.mxu0
        %v5398 = vadd.f32 %v5233, %v5397
        %v5399 = vpop.f32.mrf.mxu0
        %v5400 = vpop.f32.mrf.mxu0
        %v5401 = vadd.f32 %v5233, %v5400
        %v5402 = vpop.f32.mrf.mxu0
        %5403 = vmatprep.mubr.bf16.mxu0 %v4888
        %5404 = vmatmul.mubr.bf16.gmra.mxu0 %v4887
        %v5405 = vpop.f32.mrf.mxu0
        %v5406 = vadd.f32 %v5233, %v5405
        %v5407 = vpop.f32.mrf.mxu0
        %v5408 = vpop.f32.mrf.mxu0
        %v5409 = vadd.f32 %v5233, %v5408
        %v5410 = vpop.f32.mrf.mxu0
        %5411 = vmatprep.mubr.bf16.mxu0 %v4890
        %5412 = vmatmul.mubr.bf16.gmra.mxu0 %v4889
        %v5413 = vpop.f32.mrf.mxu0
        %v5414 = vadd.f32 %v5233, %v5413
        %v5415 = vpop.f32.mrf.mxu0
        %v5416 = vpop.f32.mrf.mxu0
        %v5417 = vpop.f32.mrf.mxu0
        %5418 = vdwg.mxu0
        %v5419 = vlaneseq
        %v5420 = vand.u32 %v5419, 127
        %v5421 = vadd.s32 %v5420, 128
        %v5422 = vmul.f32 %v5130, 0.5
        %v5423 = vmul.f32 %v5132, 0.5
        %v5424 = vmul.f32 %v5134, 0.5
        %v5425 = vmul.f32 %v5136, 0.5
        %v5426 = vmul.f32 %v5140, 0.5
        %v5427 = vmul.f32 %v5142, 0.5
        %v5428 = vmul.f32 %v5144, 0.5
        %v5429 = vmul.f32 %v5146, 0.5
        %v5430 = vmul.f32 %v5150, 0.5
        %v5431 = vmul.f32 %v5152, 0.5
        %v5432 = vmul.f32 %v5154, 0.5
        %v5433 = vmul.f32 %v5156, 0.5
        %v5434 = vmul.f32 %v5160, 0.5
        %v5435 = vmul.f32 %v5162, 0.5
        %v5436 = vmul.f32 %v5164, 0.5
        %v5437 = vmul.f32 %v5166, 0.5
        %v5438 = vmul.f32 %v5170, 0.5
        %v5439 = vmul.f32 %v5172, 0.5
        %v5440 = vmul.f32 %v5174, 0.5
        %v5441 = vmul.f32 %v5176, 0.5
        %v5442 = vmul.f32 %v5180, 0.5
        %v5443 = vmul.f32 %v5182, 0.5
        %v5444 = vmul.f32 %v5184, 0.5
        %v5445 = vmul.f32 %v5186, 0.5
        %v5446 = vmul.f32 %v5190, 0.5
        %v5447 = vmul.f32 %v5192, 0.5
        %v5448 = vmul.f32 %v5422, 1.442695
        %v5449 = vpow.pop %v5448
        %v5450 = vmul.f32 %v5423, 1.442695
        %v5451 = vpow.pop %v5450
        %v5452 = vmul.f32 %v5424, 1.442695
        %v5453 = vpow.pop %v5452
        %v5454 = vmul.f32 %v5425, 1.442695
        %v5455 = vpow.pop %v5454
        %v5456 = vmul.f32 %v5426, 1.442695
        %v5457 = vpow.pop %v5456
        %v5458 = vmul.f32 %v5427, 1.442695
        %v5459 = vpow.pop %v5458
        %v5460 = vmul.f32 %v5428, 1.442695
        %v5461 = vpow.pop %v5460
        %v5462 = vmul.f32 %v5429, 1.442695
        %v5463 = vpow.pop %v5462
        %v5464 = vmul.f32 %v5430, 1.442695
        %v5465 = vpow.pop %v5464
        %v5466 = vmul.f32 %v5431, 1.442695
        %v5467 = vpow.pop %v5466
        %v5468 = vmul.f32 %v5432, 1.442695
        %v5469 = vpow.pop %v5468
        %v5470 = vmul.f32 %v5433, 1.442695
        %v5471 = vpow.pop %v5470
        %v5472 = vmul.f32 %v5434, 1.442695
        %v5473 = vpow.pop %v5472
        %v5474 = vmul.f32 %v5435, 1.442695
        %v5475 = vpow.pop %v5474
        %v5476 = vmul.f32 %v5436, 1.442695
        %v5477 = vpow.pop %v5476
        %v5478 = vmul.f32 %v5437, 1.442695
        %v5479 = vpow.pop %v5478
        %v5480 = vmul.f32 %v5438, 1.442695
        %v5481 = vpow.pop %v5480
        %v5482 = vmul.f32 %v5439, 1.442695
        %v5483 = vpow.pop %v5482
        %v5484 = vmul.f32 %v5440, 1.442695
        %v5485 = vpow.pop %v5484
        %v5486 = vmul.f32 %v5441, 1.442695
        %v5487 = vpow.pop %v5486
        %v5488 = vmul.f32 %v5442, 1.442695
        %v5489 = vpow.pop %v5488
        %v5490 = vmul.f32 %v5443, 1.442695
        %v5491 = vpow.pop %v5490
        %v5492 = vmul.f32 %v5444, 1.442695
        %v5493 = vpow.pop %v5492
        %v5494 = vmul.f32 %v5445, 1.442695
        %v5495 = vpow.pop %v5494
        %v5496 = vmul.f32 %v5446, 1.442695
        %v5497 = vpow.pop %v5496
        %v5498 = vmul.f32 %v5447, 1.442695
        %v5499 = vpow.pop %v5498
        %v5500 = vmax.f32 %v5449, 1e-06
        %v5501 = vmax.f32 %v5451, 1e-06
        %v5502 = vmax.f32 %v5453, 1e-06
        %v5503 = vmax.f32 %v5455, 1e-06
        %v5504 = vmax.f32 %v5457, 1e-06
        %v5505 = vmax.f32 %v5459, 1e-06
        %v5506 = vmax.f32 %v5461, 1e-06
        %v5507 = vmax.f32 %v5463, 1e-06
        %v5508 = vmax.f32 %v5465, 1e-06
        %v5509 = vmax.f32 %v5467, 1e-06
        %v5510 = vmax.f32 %v5469, 1e-06
        %v5511 = vmax.f32 %v5471, 1e-06
        %v5512 = vmax.f32 %v5473, 1e-06
        %v5513 = vmax.f32 %v5475, 1e-06
        %v5514 = vmax.f32 %v5477, 1e-06
        %v5515 = vmax.f32 %v5479, 1e-06
        %v5516 = vmax.f32 %v5481, 1e-06
        %v5517 = vmax.f32 %v5483, 1e-06
        %v5518 = vmax.f32 %v5485, 1e-06
        %v5519 = vmax.f32 %v5487, 1e-06
        %v5520 = vmax.f32 %v5489, 1e-06
        %v5521 = vmax.f32 %v5491, 1e-06
        %v5522 = vmax.f32 %v5493, 1e-06
        %v5523 = vmax.f32 %v5495, 1e-06
        %v5524 = vmax.f32 %v5497, 1e-06
        %v5525 = vmax.f32 %v5499, 1e-06
        %vm5526 = vcmp.ge.s32.totalorder %v5420, 128
        %vm5527 = vcmp.ge.s32.totalorder %v5421, 128
        %v5528 = vsel %vm5526, %v5500, %v5130
        %v5529 = vsel %vm5527, %v5501, %v5132
        %v5530 = vsel %vm5526, %v5502, %v5134
        %v5531 = vsel %vm5527, %v5503, %v5136
        %v5532 = vsel %vm5526, %v5504, %v5140
        %v5533 = vsel %vm5527, %v5505, %v5142
        %v5534 = vsel %vm5526, %v5506, %v5144
        %v5535 = vsel %vm5527, %v5507, %v5146
        %v5536 = vsel %vm5526, %v5508, %v5150
        %v5537 = vsel %vm5527, %v5509, %v5152
        %v5538 = vsel %vm5526, %v5510, %v5154
        %v5539 = vsel %vm5527, %v5511, %v5156
        %v5540 = vsel %vm5526, %v5512, %v5160
        %v5541 = vsel %vm5527, %v5513, %v5162
        %v5542 = vsel %vm5526, %v5514, %v5164
        %v5543 = vsel %vm5527, %v5515, %v5166
        %v5544 = vsel %vm5526, %v5516, %v5170
        %v5545 = vsel %vm5527, %v5517, %v5172
        %v5546 = vsel %vm5526, %v5518, %v5174
        %v5547 = vsel %vm5527, %v5519, %v5176
        %v5548 = vsel %vm5526, %v5520, %v5180
        %v5549 = vsel %vm5527, %v5521, %v5182
        %v5550 = vsel %vm5526, %v5522, %v5184
        %v5551 = vsel %vm5527, %v5523, %v5186
        %v5552 = vsel %vm5526, %v5524, %v5190
        %v5553 = vsel %vm5527, %v5525, %v5192
        %v5554 = vmul.f32 %v5366, 0.5
        %v5555 = vmul.f32 %v5369, 0.5
        %v5556 = vmul.f32 %v5374, 0.5
        %v5557 = vmul.f32 %v5377, 0.5
        %v5558 = vmul.f32 %v5382, 0.5
        %v5559 = vmul.f32 %v5385, 0.5
        %v5560 = vmul.f32 %v5390, 0.5
        %v5561 = vmul.f32 %v5393, 0.5
        %v5562 = vmul.f32 %v5398, 0.5
        %v5563 = vmul.f32 %v5401, 0.5
        %v5564 = vmul.f32 %v5406, 0.5
        %v5565 = vmul.f32 %v5409, 0.5
        %v5566 = vmul.f32 %v5414, 0.5
        %v5567 = vmul.f32 %v5554, 1.442695
        %v5568 = vpow.pop %v5567
        %v5569 = vmul.f32 %v5555, 1.442695
        %v5570 = vpow.pop %v5569
        %v5571 = vmul.f32 %v5556, 1.442695
        %v5572 = vpow.pop %v5571
        %v5573 = vmul.f32 %v5557, 1.442695
        %v5574 = vpow.pop %v5573
        %v5575 = vmul.f32 %v5558, 1.442695
        %v5576 = vpow.pop %v5575
        %v5577 = vmul.f32 %v5559, 1.442695
        %v5578 = vpow.pop %v5577
        %v5579 = vmul.f32 %v5560, 1.442695
        %v5580 = vpow.pop %v5579
        %v5581 = vmul.f32 %v5561, 1.442695
        %v5582 = vpow.pop %v5581
        %v5583 = vmul.f32 %v5562, 1.442695
        %v5584 = vpow.pop %v5583
        %v5585 = vmul.f32 %v5563, 1.442695
        %v5586 = vpow.pop %v5585
        %v5587 = vmul.f32 %v5564, 1.442695
        %v5588 = vpow.pop %v5587
        %v5589 = vmul.f32 %v5565, 1.442695
        %v5590 = vpow.pop %v5589
        %v5591 = vmul.f32 %v5566, 1.442695
        %v5592 = vpow.pop %v5591
        %v5593 = vmax.f32 %v5568, 1e-06
        %v5594 = vmax.f32 %v5570, 1e-06
        %v5595 = vmax.f32 %v5572, 1e-06
        %v5596 = vmax.f32 %v5574, 1e-06
        %v5597 = vmax.f32 %v5576, 1e-06
        %v5598 = vmax.f32 %v5578, 1e-06
        %v5599 = vmax.f32 %v5580, 1e-06
        %v5600 = vmax.f32 %v5582, 1e-06
        %v5601 = vmax.f32 %v5584, 1e-06
        %v5602 = vmax.f32 %v5586, 1e-06
        %v5603 = vmax.f32 %v5588, 1e-06
        %v5604 = vmax.f32 %v5590, 1e-06
        %v5605 = vmax.f32 %v5592, 1e-06
        %v5606 = vunpack.c.l.bf16 %v710
        %v5607 = vunpack.c.l.bf16 %v711
        %v5608 = vunpack.c.l.bf16 %v712
        %v5609 = vunpack.c.l.bf16 %v713
        %v5610 = vunpack.c.l.bf16 %v714
        %v5611 = vunpack.c.l.bf16 %v715
        %v5612 = vunpack.c.l.bf16 %v716
        %v5613 = vunpack.c.l.bf16 %v717
        %v5614 = vunpack.c.l.bf16 %v718
        %v5615 = vunpack.c.l.bf16 %v719
        %v5616 = vunpack.c.l.bf16 %v720
        %v5617 = vunpack.c.l.bf16 %v721
        %v5618 = vunpack.c.l.bf16 %v722
        %v5619 = vmul.f32 %v5593, %v5606
        %v5620 = vmul.f32 %v5594, %v5607
        %v5621 = vmul.f32 %v5595, %v5608
        %v5622 = vmul.f32 %v5596, %v5609
        %v5623 = vmul.f32 %v5597, %v5610
        %v5624 = vmul.f32 %v5598, %v5611
        %v5625 = vmul.f32 %v5599, %v5612
        %v5626 = vmul.f32 %v5600, %v5613
        %v5627 = vmul.f32 %v5601, %v5614
        %v5628 = vmul.f32 %v5602, %v5615
        %v5629 = vmul.f32 %v5603, %v5616
        %v5630 = vmul.f32 %v5604, %v5617
        %v5631 = vmul.f32 %v5605, %v5618
        %v5632 = vsel %vm812, %v5619, 0.0
        %v5633 = vsel %vm812, %v5620, 0.0
        %v5634 = vsel %vm812, %v5621, 0.0
        %v5635 = vsel %vm812, %v5622, 0.0
        %v5636 = vsel %vm812, %v5623, 0.0
        %v5637 = vsel %vm812, %v5624, 0.0
        %v5638 = vsel %vm812, %v5625, 0.0
        %v5639 = vsel %vm812, %v5626, 0.0
        %v5640 = vsel %vm812, %v5627, 0.0
        %v5641 = vsel %vm812, %v5628, 0.0
        %v5642 = vsel %vm812, %v5629, 0.0
        %v5643 = vsel %vm812, %v5630, 0.0
        %v5644 = vsel %vm812, %v5631, 0.0
        %v5645 = vadd.f32 %v5528, %v5632
        %v5646 = vadd.f32 %v5529, 0.0
        %v5647 = vadd.f32 %v5530, %v5633
        %v5648 = vadd.f32 %v5531, 0.0
        %v5649 = vadd.f32 %v5532, %v5634
        %v5650 = vadd.f32 %v5533, 0.0
        %v5651 = vadd.f32 %v5534, %v5635
        %v5652 = vadd.f32 %v5535, 0.0
        %v5653 = vadd.f32 %v5536, %v5636
        %v5654 = vadd.f32 %v5537, 0.0
        %v5655 = vadd.f32 %v5538, %v5637
        %v5656 = vadd.f32 %v5539, 0.0
        %v5657 = vadd.f32 %v5540, %v5638
        %v5658 = vadd.f32 %v5541, 0.0
        %v5659 = vadd.f32 %v5542, %v5639
        %v5660 = vadd.f32 %v5543, 0.0
        %v5661 = vadd.f32 %v5544, %v5640
        %v5662 = vadd.f32 %v5545, 0.0
        %v5663 = vadd.f32 %v5546, %v5641
        %v5664 = vadd.f32 %v5547, 0.0
        %v5665 = vadd.f32 %v5548, %v5642
        %v5666 = vadd.f32 %v5549, 0.0
        %v5667 = vadd.f32 %v5550, %v5643
        %v5668 = vadd.f32 %v5551, 0.0
        %v5669 = vadd.f32 %v5552, %v5644
        %v5670 = vadd.f32 %v5553, 0.0
        %5671 = vst [vmem:[%s540] sm:$0xff] %v5645
        %5672 = vst.msk [vmem:[%s540 + $0x8] sm:$0xff] %vm812, %v5646
        %5673 = vst [vmem:[%s540 + $0x10] sm:$0xff] %v5647
        %5674 = vst.msk [vmem:[%s540 + $0x18] sm:$0xff] %vm812, %v5648
        %5675 = vst [vmem:[%s540 + $0x20] sm:$0xff] %v5649
        %5676 = vst.msk [vmem:[%s540 + $0x28] sm:$0xff] %vm812, %v5650
        %5677 = vst [vmem:[%s540 + $0x30] sm:$0xff] %v5651
        %5678 = vst.msk [vmem:[%s540 + $0x38] sm:$0xff] %vm812, %v5652
        %5679 = vst [vmem:[%s540 + $0x40] sm:$0xff] %v5653
        %5680 = vst.msk [vmem:[%s540 + $0x48] sm:$0xff] %vm812, %v5654
        %5681 = vst [vmem:[%s540 + $0x50] sm:$0xff] %v5655
        %5682 = vst.msk [vmem:[%s540 + $0x58] sm:$0xff] %vm812, %v5656
        %5683 = vst [vmem:[%s540 + $0x60] sm:$0xff] %v5657
        %5684 = vst.msk [vmem:[%s540 + $0x68] sm:$0xff] %vm812, %v5658
        %5685 = vst [vmem:[%s540 + $0x70] sm:$0xff] %v5659
        %5686 = vst.msk [vmem:[%s540 + $0x78] sm:$0xff] %vm812, %v5660
        %5687 = vst [vmem:[%s540 + $0x80] sm:$0xff] %v5661
        %5688 = vst.msk [vmem:[%s540 + $0x88] sm:$0xff] %vm812, %v5662
        %5689 = vst [vmem:[%s540 + $0x90] sm:$0xff] %v5663
        %5690 = vst.msk [vmem:[%s540 + $0x98] sm:$0xff] %vm812, %v5664
        %5691 = vst [vmem:[%s540 + $0xa0] sm:$0xff] %v5665
        %5692 = vst.msk [vmem:[%s540 + $0xa8] sm:$0xff] %vm812, %v5666
        %5693 = vst [vmem:[%s540 + $0xb0] sm:$0xff] %v5667
        %5694 = vst.msk [vmem:[%s540 + $0xb8] sm:$0xff] %vm812, %v5668
        %5695 = vst [vmem:[%s540 + $0xc0] sm:$0xff] %v5669
        %5696 = vst.msk [vmem:[%s540 + $0xc8] sm:$0xff] %vm812, %v5670
        %s5697 = sand.u32 %s343, 1
        %s5698 = sand.u32 %s343, 1
        %s5699 = smul.addr %s5698, 208
        %s5700 = scalar_lea.vmem [#allocation4], %s5699
        // Predicated region
        $region81: #{timbre_encoder_pallas.1} parent=75 // pred_check
          %p5701 = pneg %p353
        $region82: #{timbre_encoder_pallas.1} parent=75 // pred_check_branch
          %5703 = sbr.rel (%p5701) target = $region84
        $region83: #{timbre_encoder_pallas.1} parent=75 // pred_region
          %s5704 = smul.u32 13, %s26
          %s5705 = ssub.s32 25, %s5704
          %p5706 = scmp.lt.s32.totalorder %s5705, 13
          %s5707 = scalar_select %p5706, %s5705, 13
          %s5708 = smul.u32 128, %s5707
          %s5709 = smul.u32 %s5708, 2
          %p5710 = scmp.ne.s32.totalorder 0, %s5709
          %s5711 = smul.addr %s5704, 2
          %s5712 = smul.addr %s5711, 8
          %s5713 = scalar_lea.vmem %s14, %s5712
          // Predicated region
          $region85: #{timbre_encoder_pallas.1} parent=83 // pred_check
            %p5714 = pneg %p5710
          $region86: #{timbre_encoder_pallas.1} parent=83 // pred_check_branch
            %5716 = sbr.rel (%p5714) target = $region88
          $region87: #{timbre_encoder_pallas.1} parent=83 // pred_region
            // Predicated region
            $region89: #{timbre_encoder_pallas.1} parent=87 // pred_check
              _
            $region90: #{timbre_encoder_pallas.1} parent=87 // pred_check_branch
              %5718 = sbr.rel (0) target = $region92
            $region91: #{timbre_encoder_pallas.1} parent=87 // pred_region
              %s5719 = sdiv.u32.pop %s5707, 13
              %s5720 = srem.u32.pop %s5707, 13
              // While loop
              $region93: #{timbre_encoder_pallas.1} parent=91 // loop_pre_header
                _
              $region94: #{timbre_encoder_pallas.1} parent=91 // loop_header
                %s5722 = sphi 0, %s5724
                %p5723 = scmp.ge.s32.totalorder %s5722, %s5719
                %s5727 = sphi 0, %s5784
                %s5728 = sphi %s5700, %s5787
                %s5729 = sphi %s5713, %s5788
              $region95: #{timbre_encoder_pallas.1} parent=91 // loop_header_branch
                %5726 = sbr.rel (%p5723) target = $region99
              $region96: #{timbre_encoder_pallas.1} parent=91 // loop_body
                %v5730 = vld [vmem:[%s5728] sm:$0xff]
                %5731 = vst [vmem:[%s5729] sm:$0xff] %v5730
                %v5732 = vld [vmem:[%s5728 + $0x10] sm:$0xff]
                %5733 = vst [vmem:[%s5729 + $0x10] sm:$0xff] %v5732
                %v5734 = vld [vmem:[%s5728 + $0x20] sm:$0xff]
                %5735 = vst [vmem:[%s5729 + $0x20] sm:$0xff] %v5734
                %v5736 = vld [vmem:[%s5728 + $0x30] sm:$0xff]
                %5737 = vst [vmem:[%s5729 + $0x30] sm:$0xff] %v5736
                %v5738 = vld [vmem:[%s5728 + $0x40] sm:$0xff]
                %5739 = vst [vmem:[%s5729 + $0x40] sm:$0xff] %v5738
                %v5740 = vld [vmem:[%s5728 + $0x50] sm:$0xff]
                %5741 = vst [vmem:[%s5729 + $0x50] sm:$0xff] %v5740
                %v5742 = vld [vmem:[%s5728 + $0x60] sm:$0xff]
                %5743 = vst [vmem:[%s5729 + $0x60] sm:$0xff] %v5742
                %v5744 = vld [vmem:[%s5728 + $0x70] sm:$0xff]
                %5745 = vst [vmem:[%s5729 + $0x70] sm:$0xff] %v5744
                %v5746 = vld [vmem:[%s5728 + $0x80] sm:$0xff]
                %5747 = vst [vmem:[%s5729 + $0x80] sm:$0xff] %v5746
                %v5748 = vld [vmem:[%s5728 + $0x90] sm:$0xff]
                %5749 = vst [vmem:[%s5729 + $0x90] sm:$0xff] %v5748
                %v5750 = vld [vmem:[%s5728 + $0xa0] sm:$0xff]
                %5751 = vst [vmem:[%s5729 + $0xa0] sm:$0xff] %v5750
                %v5752 = vld [vmem:[%s5728 + $0xb0] sm:$0xff]
                %5753 = vst [vmem:[%s5729 + $0xb0] sm:$0xff] %v5752
                %v5754 = vld [vmem:[%s5728 + $0xc0] sm:$0xff]
                %5755 = vst [vmem:[%s5729 + $0xc0] sm:$0xff] %v5754
                %v5756 = vld [vmem:[%s5728 + $0x8] sm:$0xff]
                %5757 = vst [vmem:[%s5729 + $0x8] sm:$0xff] %v5756
                %v5758 = vld [vmem:[%s5728 + $0x18] sm:$0xff]
                %5759 = vst [vmem:[%s5729 + $0x18] sm:$0xff] %v5758
                %v5760 = vld [vmem:[%s5728 + $0x28] sm:$0xff]
                %5761 = vst [vmem:[%s5729 + $0x28] sm:$0xff] %v5760
                %v5762 = vld [vmem:[%s5728 + $0x38] sm:$0xff]
                %5763 = vst [vmem:[%s5729 + $0x38] sm:$0xff] %v5762
                %v5764 = vld [vmem:[%s5728 + $0x48] sm:$0xff]
                %5765 = vst [vmem:[%s5729 + $0x48] sm:$0xff] %v5764
                %v5766 = vld [vmem:[%s5728 + $0x58] sm:$0xff]
                %5767 = vst [vmem:[%s5729 + $0x58] sm:$0xff] %v5766
                %v5768 = vld [vmem:[%s5728 + $0x68] sm:$0xff]
                %5769 = vst [vmem:[%s5729 + $0x68] sm:$0xff] %v5768
                %v5770 = vld [vmem:[%s5728 + $0x78] sm:$0xff]
                %5771 = vst [vmem:[%s5729 + $0x78] sm:$0xff] %v5770
                %v5772 = vld [vmem:[%s5728 + $0x88] sm:$0xff]
                %5773 = vst [vmem:[%s5729 + $0x88] sm:$0xff] %v5772
                %v5774 = vld [vmem:[%s5728 + $0x98] sm:$0xff]
                %5775 = vst [vmem:[%s5729 + $0x98] sm:$0xff] %v5774
                %v5776 = vld [vmem:[%s5728 + $0xa8] sm:$0xff]
                %5777 = vst [vmem:[%s5729 + $0xa8] sm:$0xff] %v5776
                %v5778 = vld [vmem:[%s5728 + $0xb8] sm:$0xff]
                %5779 = vst [vmem:[%s5729 + $0xb8] sm:$0xff] %v5778
                %v5780 = vld [vmem:[%s5728 + $0xc8] sm:$0xff]
                %5781 = vst [vmem:[%s5729 + $0xc8] sm:$0xff] %v5780
                %s5782 = sadd.s32 1, %s5727
                %p5783 = scmp.ge.s32.totalorder %s5782, %s5719
                %s5784 = scalar_select %p5783, 0, %s5782
                %s5785 = smul.u32 %s5784, 208
                %s5786 = smul.u32 %s5784, 208
                %s5787 = scalar_lea.vmem %s5700, %s5785 [#allocation4]
                %s5788 = scalar_lea.vmem %s5713, %s5786
              $region97: #{timbre_encoder_pallas.1} parent=91 // loop_footer
                %s5724 = sadd.s32 %s5722, 1
              $region98: #{timbre_encoder_pallas.1} parent=91 // loop_footer_branch
                %5721 = sbr.rel target = $region94
              $region99: #{timbre_encoder_pallas.1} parent=91 // loop_exit
                _
              %s5789 = sdiv.u32.pop %s5707, 13
              %s5790 = srem.u32.pop %s5707, 13
              %s5791 = smul.u32 %s5789, 13
              %s5792 = smul.u32 16, %s5791
              %s5793 = scalar_lea.vmem %s5700, %s5792 [#allocation4]
              %s5794 = smul.u32 16, %s5791
              %s5795 = scalar_lea.vmem %s5713, %s5794
              // While loop
              $region100: #{timbre_encoder_pallas.1} parent=91 // loop_pre_header
                _
              $region101: #{timbre_encoder_pallas.1} parent=91 // loop_header
                %s5797 = sphi 0, %s5799
                %p5798 = scmp.ge.s32.totalorder %s5797, %s5790
                %s5802 = sphi 0, %s5811
                %s5803 = sphi %s5793, %s5814
                %s5804 = sphi %s5795, %s5815
              $region102: #{timbre_encoder_pallas.1} parent=91 // loop_header_branch
                %5801 = sbr.rel (%p5798) target = $region106
              $region103: #{timbre_encoder_pallas.1} parent=91 // loop_body
                %v5805 = vld [vmem:[%s5803] sm:$0xff]
                %5806 = vst [vmem:[%s5804] sm:$0xff] %v5805
                %v5807 = vld [vmem:[%s5803 + $0x8] sm:$0xff]
                %5808 = vst [vmem:[%s5804 + $0x8] sm:$0xff] %v5807
                %s5809 = sadd.s32 1, %s5802
                %p5810 = scmp.ge.s32.totalorder %s5809, %s5790
                %s5811 = scalar_select %p5810, 0, %s5809
                %s5812 = smul.u32 %s5811, 16
                %s5813 = smul.u32 %s5811, 16
                %s5814 = scalar_lea.vmem %s5793, %s5812 [#allocation4]
                %s5815 = scalar_lea.vmem %s5795, %s5813
              $region104: #{timbre_encoder_pallas.1} parent=91 // loop_footer
                %s5799 = sadd.s32 %s5797, 1
              $region105: #{timbre_encoder_pallas.1} parent=91 // loop_footer_branch
                %5796 = sbr.rel target = $region101
              $region106: #{timbre_encoder_pallas.1} parent=91 // loop_exit
                _
            $region92: #{timbre_encoder_pallas.1} parent=87 // pred_fallthru
              _
            // Predicated region
            $region107: #{timbre_encoder_pallas.1} parent=87 // pred_check
              _
            $region108: #{timbre_encoder_pallas.1} parent=87 // pred_check_branch
              %5817 = sbr.rel target = $region110
            $region109: #{timbre_encoder_pallas.1} parent=87 // pred_region
              _
            $region110: #{timbre_encoder_pallas.1} parent=87 // pred_fallthru
              _
          $region88: #{timbre_encoder_pallas.1} parent=83 // pred_fallthru
            _
          %5818 = vnop
        $region84: #{timbre_encoder_pallas.1} parent=75 // pred_fallthru
          _
      $region76: #{timbre_encoder_pallas.1} parent=5 // pred_fallthru
        _
      %p5819 = scmp.le.s32.totalorder 2, %s21
      // Predicated region
      $region111: #{timbre_encoder_pallas.1} parent=5 // pred_check
        %p5820 = pneg %p5819
      $region112: #{timbre_encoder_pallas.1} parent=5 // pred_check_branch
        %5822 = sbr.rel (%p5820) target = $region114
      $region113: #{timbre_encoder_pallas.1} parent=5 // pred_region
        %s5823 = ssub.s32 %s21, 2
        // Predicated region
        $region115: #{timbre_encoder_pallas.1} parent=113 // pred_check
          %p5824 = pneg %p359
        $region116: #{timbre_encoder_pallas.1} parent=113 // pred_check_branch
          %5826 = sbr.rel (%p5824) target = $region118
        $region117: #{timbre_encoder_pallas.1} parent=113 // pred_region
          %s5827 = sand.u32 %s344, 1
          %s5828 = sand.u32 %s344, 1
          %s5829 = smul.addr %s5828, 208
          %s5830 = scalar_lea.vmem [#allocation4], %s5829
        $region118: #{timbre_encoder_pallas.1} parent=113 // pred_fallthru
          _
      $region114: #{timbre_encoder_pallas.1} parent=5 // pred_fallthru
        _
    $region6: #{timbre_encoder_pallas.1} parent=1 // loop_footer
      %s25 = sadd.s32 1, %s21
    $region7: #{timbre_encoder_pallas.1} parent=1 // loop_footer_branch
      %20 = sbr.rel target = $region3
    $region8: #{timbre_encoder_pallas.1} parent=1 // loop_exit
      _
    %5831 = vsyncpa [#allocation3], 1
    %s5832 = scalar_lea.sflag [#allocation3], 1
    %5833 = vsyncpa %s5832, 1

</llo_original>
